<compile_context>
chip_gen: v7x
topology: tpu7x:2x2x1
jax: 0.10.0
libtpu: 0.0.40
codegen_flags: <defaults>
</compile_context>

<pallas_src>
import functools

import numpy as np
import jax
import jax.numpy as jnp
from jax import lax
from jax.experimental import pallas as pl
from jax.experimental.pallas import tpu as pltpu


# ----------------------------- configuration -------------------------------
# Decoder(n=32)  ->  x = log2(32) - 4 = 1
LATENT = 200
HIDDEN = 1024          # 2**(9+x)
C0 = 16                # 2**(3+x) : channels after Linear + view
C1 = 8                 # channels after main[0]
C2 = 3                 # RGB output channels
H0 = W0 = 8            # spatial size after view
KPAD = 256             # latent(200) + bias column(1), zero-padded to 256
HALO = 128             # halo width of the conv-2 input scratch
NEG_SLOPE = 0.01       # nn.LeakyReLU default
BN_EPS = 1e-5
ROWS1 = 4 * C1         # 32 parity-plane rows after conv-1 (a, b, c1)
ROWS2 = 16 * C2        # 48 rows after conv-2 (alpha, beta, a2, b2, co)
TAPS = 9 * ROWS1       # 288 contraction rows of the conv-2 im2col stack


# --------------------------- weight preparation ----------------------------
def _pack_convt_weight6(w):
    """ConvTranspose2d(k=4, s=2, p=1) weight [Cin, Cout, 4, 4] ->
    packed[c, r, s, a, b, co] such that

      y[n, co, 2i+a, 2j+b] = sum_{c,r,s} xpad[n, c, i+r, j+s] * packed[c,r,s,a,b,co]

    with xpad = pad(x, 1)   (sub-pixel / pixel-shuffle decomposition)."""
    w = np.asarray(w, np.float32)
    cin, cout = w.shape[0], w.shape[1]
    packed = np.zeros((cin, 3, 3, 2, 2, cout), np.float32)
    for a in range(2):
        for b in range(2):
            for r in range(a, a + 2):
                for s in range(b, b + 2):
                    packed[:, r, s, a, b, :] = w[:, :, 3 + a - 2 * r, 3 + b - 2 * s]
    return packed


def pack_params(p):
    """Fold Linear + view + ConvT1 + BN(eval) into one matrix, and pack ConvT2
    weights for the parity-plane / 9-shift im2col matmul."""
    bn_scale = np.asarray(p["bn_gamma"]) / np.sqrt(np.asarray(p["bn_var"]) + BN_EPS)
    bn_shift = ((np.asarray(p["ct1_b"]) - np.asarray(p["bn_mean"])) * bn_scale
                + np.asarray(p["bn_beta"]))

    # ---- fused  latent -> conv-1 pre-activation  matrix (256, 2048) --------
    w1p = np.zeros((KPAD, HIDDEN), np.float32)
    w1p[:LATENT] = np.asarray(p["w1"], np.float32)
    w1p[LATENT] = np.asarray(p["b1"], np.float32)       # matched by ones-column
    w1v = w1p.reshape(KPAD, C0, H0, W0)
    w1pad = np.pad(w1v, ((0, 0), (0, 0), (1, 1), (1, 1)))
    packed1 = (_pack_convt_weight6(p["ct1_w"])
               * bn_scale[None, None, None, None, None, :])   # BN scale folded
    wf = np.zeros((KPAD, 2, 2, C1, H0, W0), np.float32)
    for r in range(3):
        for s in range(3):
            wf += np.einsum("kcij,cabo->kaboij",
                            w1pad[:, :, r:r + H0, s:s + W0], packed1[:, r, s])
    wf[LATENT] += bn_shift[None, None, :, None, None]          # BN shift folded
    wfused = wf.reshape(KPAD, ROWS1 * H0 * W0)   # lane = ((2a+b)*8+c1)*64 + i*8+j

    # ---- conv-2 weights: rows (alpha,beta,a2,b2,co), cols (shift, a', b', c1)
    packed2 = _pack_convt_weight6(p["ct2_w"])
    w2 = np.zeros((2, 2, 2, 2, C2, 3, 3, 2, 2, C1), np.float32)
    for alpha in range(2):
        for r in range(3):
            t = alpha + r - 1
            di, ap = t // 2, t % 2             # t = 2*di + ap, di in {-1,0,1}
            for beta in range(2):
                for s in range(3):
                    u = beta + s - 1
                    dj, bp = u // 2, u % 2
                    w2[alpha, beta, :, :, :, di + 1, dj + 1, ap, bp, :] += \
                        np.transpose(packed2[:, r, s], (1, 2, 3, 0))
    w2big = w2.reshape(ROWS2, TAPS)                                     # (48, 288)

    bias2 = np.tile(np.asarray(p["ct2_b"], np.float32), 16)[:, None]    # (48, 1)

    return {
        "wfused": jnp.asarray(wfused, jnp.bfloat16),   # (256, 2048)
        "w2big": jnp.asarray(w2big, jnp.bfloat16),     # (48, 288)
        "bias2": jnp.asarray(bias2, jnp.float32),      # (48, 1)
    }


def _make_masks(B):
    """9 boundary masks (one per (di,dj) lane shift) on the (n, 8, 8) lanes."""
    ii, jj = np.meshgrid(np.arange(H0), np.arange(W0), indexing="ij")
    base = np.zeros((9, H0 * W0), np.float32)
    for di in (-1, 0, 1):
        for dj in (-1, 0, 1):
            valid = ((ii + di >= 0) & (ii + di < H0) &
                     (jj + dj >= 0) & (jj + dj < W0))
            base[(di + 1) * 3 + (dj + 1)] = valid.reshape(-1).astype(np.float32)
    return np.tile(base, (1, B))            # (9, B*64); identical per batch elem


# ------------------------------ Pallas kernel -------------------------------
def _decoder_kernel(B, vec_ref, wf_ref, w2_ref, mask_ref, b2_ref, out_ref,
                    h_ref, a1_ref, x2_ref):
    f32 = jnp.float32
    bf16 = jnp.bfloat16
    L1 = B * H0 * W0                      # lane width (batch * 8 * 8)

    # ---- stage 1: fused Linear + view + ConvT1 + BN as ONE MXU matmul ------
    y1 = jnp.dot(vec_ref[...], wf_ref[...], preferred_element_type=f32)
    h_ref[...] = jnp.maximum(y1, NEG_SLOPE * y1)          # LeakyReLU
    # TODO(synk): Dropout2d(p=0.25) is a no-op here (eval-mode semantics).

    # ---- relayout  h[n, rho*64+p] -> a1[rho, HALO + n*64 + p]  -------------
    # (parity-plane rows move from lanes to sublanes; 32*B tiny copies,
    #  negligible at B=2).  Only the halo lanes are zero-initialized.
    a1_ref[:, :HALO] = jnp.zeros((ROWS1, HALO), f32)
    a1_ref[:, HALO + L1:] = jnp.zeros((ROWS1, HALO), f32)
    for rho in range(ROWS1):
        blk = h_ref[:, rho * 64:(rho + 1) * 64]            # (Bp, 64)
        for n in range(B):
            dst = HALO + n * 64
            a1_ref[rho:rho + 1, dst:dst + 64] = blk[n:n + 1, :]

    # ---- stage 2: ConvT2 as ONE K=288 matmul over 9 shifted windows --------
    # host-precomputed 0/1 masks -> a single multiply per window; the stacked
    # im2col lands in a bf16 scratch at aligned 32-row offsets.
    k = 0
    for di in (-1, 0, 1):
        for dj in (-1, 0, 1):
            d = di * W0 + dj
            xs = a1_ref[:, HALO + d: HALO + d + L1] * mask_ref[k:k + 1, :]
            x2_ref[k * ROWS1:(k + 1) * ROWS1, :] = xs.astype(bf16)
            k += 1
    y2 = jnp.dot(w2_ref[...], x2_ref[...], preferred_element_type=f32)
    y2 = y2 + b2_ref[...]
    # sigmoid: exp and approximate reciprocal both go to the EUP slot.
    out_ref[...] = pl.reciprocal(1.0 + jnp.exp(-y2), approx=True)


# ------------------------------ jitted wrapper -------------------------------
@jax.jit
def decoder_forward(packed, vector):
    """Fused Pallas decoder forward.  vector: [B, 200] -> image [B, 3, 32, 32]."""
    B = vector.shape[0]
    Bp = max(8, ((B + 7) // 8) * 8)          # pad batch rows to a sublane multiple
    L1 = B * H0 * W0

    vec_p = jnp.zeros((Bp, KPAD), jnp.bfloat16)
    vec_p = vec_p.at[:B, :LATENT].set(vector.astype(jnp.bfloat16))
    vec_p = vec_p.at[:B, LATENT].set(1.0)    # ones column -> folded biases/shifts
    masks = jnp.asarray(_make_masks(B), jnp.float32)

    out = pl.pallas_call(
        functools.partial(_decoder_kernel, B),
        out_shape=jax.ShapeDtypeStruct((ROWS2, L1), jnp.float32),
        scratch_shapes=[
            pltpu.VMEM((Bp, ROWS1 * H0 * W0), jnp.float32),    # stage-1 activation
            pltpu.VMEM((ROWS1, L1 + 2 * HALO), jnp.float32),   # conv-2 input (haloed)
            pltpu.VMEM((TAPS, L1), jnp.bfloat16),              # conv-2 im2col stack
        ],
    )(vec_p, packed["wfused"], packed["w2big"], masks, packed["bias2"])

    # out[a*24+b*12+a2*6+b2*3+co, n*64+i*8+j] == img[n, co, 4i+2a+a2, 4j+2b+b2]
    o = out.reshape(2, 2, 2, 2, C2, B, H0, W0)
    img = o.transpose(5, 4, 6, 0, 2, 7, 1, 3).reshape(B, C2, 4 * H0, 4 * W0)
    return img


# ------------------------------ parameters ----------------------------------
def init_params(key):
    ks = jax.random.split(key, 10)
    p = {}
    p["w1"] = 0.05 * jax.random.normal(ks[0], (LATENT, HIDDEN), jnp.float32)
    p["b1"] = 0.05 * jax.random.normal(ks[1], (HIDDEN,), jnp.float32)
    # main[0]: ConvTranspose2d(16, 8, 4, 2, 1) + BatchNorm2d(8)
    p["ct1_w"] = 0.1 * jax.random.normal(ks[2], (C0, C1, 4, 4), jnp.float32)
    p["ct1_b"] = 0.1 * jax.random.normal(ks[3], (C1,), jnp.float32)
    p["bn_gamma"] = 1.0 + 0.1 * jax.random.normal(ks[4], (C1,), jnp.float32)
    p["bn_beta"] = 0.1 * jax.random.normal(ks[5], (C1,), jnp.float32)
    p["bn_mean"] = 0.1 * jax.random.normal(ks[6], (C1,), jnp.float32)
    p["bn_var"] = 0.5 + jax.random.uniform(ks[7], (C1,), jnp.float32)
    # final: ConvTranspose2d(8, 3, 4, 2, 1)
    p["ct2_w"] = 0.1 * jax.random.normal(ks[8], (C1, C2, 4, 4), jnp.float32)
    p["ct2_b"] = 0.1 * jax.random.normal(ks[9], (C2,), jnp.float32)
    return p


# --------------------------- pure-JAX reference ------------------------------
def _convt_ref(x, w, b):
    wt = jnp.transpose(w, (1, 0, 2, 3))[:, :, ::-1, ::-1]
    y = lax.conv_general_dilated(
        x, wt, window_strides=(1, 1), padding=[(2, 2), (2, 2)],
        lhs_dilation=(2, 2), dimension_numbers=("NCHW", "OIHW", "NCHW"))
    return y + b[None, :, None, None]


def decoder_ref(params, vector):
    h = vector @ params["w1"] + params["b1"]
    x = h.reshape(-1, C0, H0, W0)
    y = _convt_ref(x, params["ct1_w"], params["ct1_b"])
    scale = params["bn_gamma"] / jnp.sqrt(params["bn_var"] + BN_EPS)
    y = (y - params["bn_mean"][None, :, None, None]) * scale[None, :, None, None] \
        + params["bn_beta"][None, :, None, None]
    y = jnp.where(y >= 0, y, NEG_SLOPE * y)
    y = _convt_ref(y, params["ct2_w"], params["ct2_b"])
    return 1.0 / (1.0 + jnp.exp(-y))


# ---------------------------------- main -------------------------------------
if __name__ == "__main__":
    key = jax.random.PRNGKey(0)
    kp, kv = jax.random.split(key)
    params = init_params(kp)
    packed = pack_params(params)
    vector = jax.random.normal(kv, (2, LATENT), jnp.float32)   # batch=2, latent=200

    img = jax.block_until_ready(decoder_forward(packed, vector))
    assert img.shape == (2, 3, 32, 32), img.shape

    ref = jax.block_until_ready(decoder_ref(params, vector))
    np.testing.assert_allclose(np.asarray(img), np.asarray(ref), atol=2e-2, rtol=0)

    print("KERNEL_OK")
</pallas_src>

<mosaic_0001>
module attributes {stable_mosaic.version = 11 : i64} {
  func.func @_decoder_kernel(%arg0: memref<8x256xbf16, #tpu.memory_space<vmem>>, %arg1: memref<256x2048xbf16, #tpu.memory_space<vmem>>, %arg2: memref<48x288xbf16, #tpu.memory_space<vmem>>, %arg3: memref<9x128xf32, #tpu.memory_space<vmem>>, %arg4: memref<48x1xf32, #tpu.memory_space<vmem>>, %arg5: memref<48x128xf32, #tpu.memory_space<vmem>>, %arg6: memref<8x2048xf32, #tpu.memory_space<vmem>>, %arg7: memref<32x384xf32, #tpu.memory_space<vmem>>, %arg8: memref<288x128xbf16, #tpu.memory_space<vmem>>) attributes {dimension_semantics = [], scalar_prefetch = 0 : i64, scratch_operands = 3 : i64, tpu.core_type = #tpu.core_type<tc>} {
    %c0 = arith.constant 0 : index
    %c0_0 = arith.constant 0 : index
    %0 = vector.load %arg0[%c0, %c0_0] : memref<8x256xbf16, #tpu.memory_space<vmem>>, vector<8x256xbf16>
    %c0_1 = arith.constant 0 : index
    %c0_2 = arith.constant 0 : index
    %1 = vector.load %arg1[%c0_1, %c0_2] : memref<256x2048xbf16, #tpu.memory_space<vmem>>, vector<256x2048xbf16>
    %cst = arith.constant dense<0.000000e+00> : vector<8x2048xf32>
    %2 = tpu.matmul %0, %1, %cst {dimension_numbers = #tpu.dot_dimension_numbers<[1], [0], [0], [1], [0, 0, 1, 1], [], []>} : vector<8x256xbf16>, vector<256x2048xbf16>, vector<8x2048xf32> -> vector<8x2048xf32>
    %cst_3 = arith.constant 0.00999999977 : f32
    %3 = vector.broadcast %cst_3 : f32 to vector<8x2048xf32>
    %4 = arith.mulf %3, %2 : vector<8x2048xf32>
    %5 = arith.maximumf %2, %4 : vector<8x2048xf32>
    %c0_4 = arith.constant 0 : index
    %c0_5 = arith.constant 0 : index
    %6 = vector.load %arg6[%c0_4, %c0_5] : memref<8x2048xf32, #tpu.memory_space<vmem>>, vector<8x2048xf32>
    tpu.vector_store %arg6[%c0_4, %c0_5], %5 {strides = array<i32>} : memref<8x2048xf32, #tpu.memory_space<vmem>>, vector<8x2048xf32>,
    %cst_6 = arith.constant 0.000000e+00 : f32
    %7 = vector.broadcast %cst_6 : f32 to vector<32x128xf32>
    %c0_7 = arith.constant 0 : index
    %c0_8 = arith.constant 0 : index
    %8 = vector.load %arg7[%c0_7, %c0_8] : memref<32x384xf32, #tpu.memory_space<vmem>>, vector<32x128xf32>
    tpu.vector_store %arg7[%c0_7, %c0_8], %7 {strides = array<i32>} : memref<32x384xf32, #tpu.memory_space<vmem>>, vector<32x128xf32>,
    %cst_9 = arith.constant 0.000000e+00 : f32
    %9 = vector.broadcast %cst_9 : f32 to vector<32x128xf32>
    %c0_10 = arith.constant 0 : index
    %c256 = arith.constant 256 : index
    %10 = vector.load %arg7[%c0_10, %c256] : memref<32x384xf32, #tpu.memory_space<vmem>>, vector<32x128xf32>
    tpu.vector_store %arg7[%c0_10, %c256], %9 {strides = array<i32>} : memref<32x384xf32, #tpu.memory_space<vmem>>, vector<32x128xf32>,
    %c0_11 = arith.constant 0 : index
    %c0_12 = arith.constant 0 : index
    %11 = vector.load %arg6[%c0_11, %c0_12] : memref<8x2048xf32, #tpu.memory_space<vmem>>, vector<8x64xf32>
    %12 = vector.extract_strided_slice %11 {offsets = [0, 0], sizes = [1, 64], strides = [1, 1]} : vector<8x64xf32> to vector<1x64xf32>
    %c0_13 = arith.constant 0 : index
    %c128 = arith.constant 128 : index
    %13 = vector.load %arg7[%c0_13, %c128] : memref<32x384xf32, #tpu.memory_space<vmem>>, vector<1x64xf32>
    tpu.vector_store %arg7[%c0_13, %c128], %12 {strides = array<i32>} : memref<32x384xf32, #tpu.memory_space<vmem>>, vector<1x64xf32>,
    %14 = vector.extract_strided_slice %11 {offsets = [1, 0], sizes = [1, 64], strides = [1, 1]} : vector<8x64xf32> to vector<1x64xf32>
    %c0_14 = arith.constant 0 : index
    %c192 = arith.constant 192 : index
    %15 = vector.load %arg7[%c0_14, %c192] : memref<32x384xf32, #tpu.memory_space<vmem>>, vector<1x64xf32>
    tpu.vector_store %arg7[%c0_14, %c192], %14 {strides = array<i32>} : memref<32x384xf32, #tpu.memory_space<vmem>>, vector<1x64xf32>,
    %c0_15 = arith.constant 0 : index
    %c64 = arith.constant 64 : index
    %16 = vector.load %arg6[%c0_15, %c64] : memref<8x2048xf32, #tpu.memory_space<vmem>>, vector<8x64xf32>
    %17 = vector.extract_strided_slice %16 {offsets = [0, 0], sizes = [1, 64], strides = [1, 1]} : vector<8x64xf32> to vector<1x64xf32>
    %c1 = arith.constant 1 : index
    %c128_16 = arith.constant 128 : index
    %18 = vector.load %arg7[%c1, %c128_16] : memref<32x384xf32, #tpu.memory_space<vmem>>, vector<1x64xf32>
    tpu.vector_store %arg7[%c1, %c128_16], %17 {strides = array<i32>} : memref<32x384xf32, #tpu.memory_space<vmem>>, vector<1x64xf32>,
    %19 = vector.extract_strided_slice %16 {offsets = [1, 0], sizes = [1, 64], strides = [1, 1]} : vector<8x64xf32> to vector<1x64xf32>
    %c1_17 = arith.constant 1 : index
    %c192_18 = arith.constant 192 : index
    %20 = vector.load %arg7[%c1_17, %c192_18] : memref<32x384xf32, #tpu.memory_space<vmem>>, vector<1x64xf32>
    tpu.vector_store %arg7[%c1_17, %c192_18], %19 {strides = array<i32>} : memref<32x384xf32, #tpu.memory_space<vmem>>, vector<1x64xf32>,
    %c0_19 = arith.constant 0 : index
    %c128_20 = arith.constant 128 : index
    %21 = vector.load %arg6[%c0_19, %c128_20] : memref<8x2048xf32, #tpu.memory_space<vmem>>, vector<8x64xf32>
    %22 = vector.extract_strided_slice %21 {offsets = [0, 0], sizes = [1, 64], strides = [1, 1]} : vector<8x64xf32> to vector<1x64xf32>
    %c2 = arith.constant 2 : index
    %c128_21 = arith.constant 128 : index
    %23 = vector.load %arg7[%c2, %c128_21] : memref<32x384xf32, #tpu.memory_space<vmem>>, vector<1x64xf32>
    tpu.vector_store %arg7[%c2, %c128_21], %22 {strides = array<i32>} : memref<32x384xf32, #tpu.memory_space<vmem>>, vector<1x64xf32>,
    %24 = vector.extract_strided_slice %21 {offsets = [1, 0], sizes = [1, 64], strides = [1, 1]} : vector<8x64xf32> to vector<1x64xf32>
    %c2_22 = arith.constant 2 : index
    %c192_23 = arith.constant 192 : index
    %25 = vector.load %arg7[%c2_22, %c192_23] : memref<32x384xf32, #tpu.memory_space<vmem>>, vector<1x64xf32>
    tpu.vector_store %arg7[%c2_22, %c192_23], %24 {strides = array<i32>} : memref<32x384xf32, #tpu.memory_space<vmem>>, vector<1x64xf32>,
    %c0_24 = arith.constant 0 : index
    %c192_25 = arith.constant 192 : index
    %26 = vector.load %arg6[%c0_24, %c192_25] : memref<8x2048xf32, #tpu.memory_space<vmem>>, vector<8x64xf32>
    %27 = vector.extract_strided_slice %26 {offsets = [0, 0], sizes = [1, 64], strides = [1, 1]} : vector<8x64xf32> to vector<1x64xf32>
    %c3 = arith.constant 3 : index
    %c128_26 = arith.constant 128 : index
    %28 = vector.load %arg7[%c3, %c128_26] : memref<32x384xf32, #tpu.memory_space<vmem>>, vector<1x64xf32>
    tpu.vector_store %arg7[%c3, %c128_26], %27 {strides = array<i32>} : memref<32x384xf32, #tpu.memory_space<vmem>>, vector<1x64xf32>,
    %29 = vector.extract_strided_slice %26 {offsets = [1, 0], sizes = [1, 64], strides = [1, 1]} : vector<8x64xf32> to vector<1x64xf32>
    %c3_27 = arith.constant 3 : index
    %c192_28 = arith.constant 192 : index
    %30 = vector.load %arg7[%c3_27, %c192_28] : memref<32x384xf32, #tpu.memory_space<vmem>>, vector<1x64xf32>
    tpu.vector_store %arg7[%c3_27, %c192_28], %29 {strides = array<i32>} : memref<32x384xf32, #tpu.memory_space<vmem>>, vector<1x64xf32>,
    %c0_29 = arith.constant 0 : index
    %c256_30 = arith.constant 256 : index
    %31 = vector.load %arg6[%c0_29, %c256_30] : memref<8x2048xf32, #tpu.memory_space<vmem>>, vector<8x64xf32>
    %32 = vector.extract_strided_slice %31 {offsets = [0, 0], sizes = [1, 64], strides = [1, 1]} : vector<8x64xf32> to vector<1x64xf32>
    %c4 = arith.constant 4 : index
    %c128_31 = arith.constant 128 : index
    %33 = vector.load %arg7[%c4, %c128_31] : memref<32x384xf32, #tpu.memory_space<vmem>>, vector<1x64xf32>
    tpu.vector_store %arg7[%c4, %c128_31], %32 {strides = array<i32>} : memref<32x384xf32, #tpu.memory_space<vmem>>, vector<1x64xf32>,
    %34 = vector.extract_strided_slice %31 {offsets = [1, 0], sizes = [1, 64], strides = [1, 1]} : vector<8x64xf32> to vector<1x64xf32>
    %c4_32 = arith.constant 4 : index
    %c192_33 = arith.constant 192 : index
    %35 = vector.load %arg7[%c4_32, %c192_33] : memref<32x384xf32, #tpu.memory_space<vmem>>, vector<1x64xf32>
    tpu.vector_store %arg7[%c4_32, %c192_33], %34 {strides = array<i32>} : memref<32x384xf32, #tpu.memory_space<vmem>>, vector<1x64xf32>,
    %c0_34 = arith.constant 0 : index
    %c320 = arith.constant 320 : index
    %36 = vector.load %arg6[%c0_34, %c320] : memref<8x2048xf32, #tpu.memory_space<vmem>>, vector<8x64xf32>
    %37 = vector.extract_strided_slice %36 {offsets = [0, 0], sizes = [1, 64], strides = [1, 1]} : vector<8x64xf32> to vector<1x64xf32>
    %c5 = arith.constant 5 : index
    %c128_35 = arith.constant 128 : index
    %38 = vector.load %arg7[%c5, %c128_35] : memref<32x384xf32, #tpu.memory_space<vmem>>, vector<1x64xf32>
    tpu.vector_store %arg7[%c5, %c128_35], %37 {strides = array<i32>} : memref<32x384xf32, #tpu.memory_space<vmem>>, vector<1x64xf32>,
    %39 = vector.extract_strided_slice %36 {offsets = [1, 0], sizes = [1, 64], strides = [1, 1]} : vector<8x64xf32> to vector<1x64xf32>
    %c5_36 = arith.constant 5 : index
    %c192_37 = arith.constant 192 : index
    %40 = vector.load %arg7[%c5_36, %c192_37] : memref<32x384xf32, #tpu.memory_space<vmem>>, vector<1x64xf32>
    tpu.vector_store %arg7[%c5_36, %c192_37], %39 {strides = array<i32>} : memref<32x384xf32, #tpu.memory_space<vmem>>, vector<1x64xf32>,
    %c0_38 = arith.constant 0 : index
    %c384 = arith.constant 384 : index
    %41 = vector.load %arg6[%c0_38, %c384] : memref<8x2048xf32, #tpu.memory_space<vmem>>, vector<8x64xf32>
    %42 = vector.extract_strided_slice %41 {offsets = [0, 0], sizes = [1, 64], strides = [1, 1]} : vector<8x64xf32> to vector<1x64xf32>
    %c6 = arith.constant 6 : index
    %c128_39 = arith.constant 128 : index
    %43 = vector.load %arg7[%c6, %c128_39] : memref<32x384xf32, #tpu.memory_space<vmem>>, vector<1x64xf32>
    tpu.vector_store %arg7[%c6, %c128_39], %42 {strides = array<i32>} : memref<32x384xf32, #tpu.memory_space<vmem>>, vector<1x64xf32>,
    %44 = vector.extract_strided_slice %41 {offsets = [1, 0], sizes = [1, 64], strides = [1, 1]} : vector<8x64xf32> to vector<1x64xf32>
    %c6_40 = arith.constant 6 : index
    %c192_41 = arith.constant 192 : index
    %45 = vector.load %arg7[%c6_40, %c192_41] : memref<32x384xf32, #tpu.memory_space<vmem>>, vector<1x64xf32>
    tpu.vector_store %arg7[%c6_40, %c192_41], %44 {strides = array<i32>} : memref<32x384xf32, #tpu.memory_space<vmem>>, vector<1x64xf32>,
    %c0_42 = arith.constant 0 : index
    %c448 = arith.constant 448 : index
    %46 = vector.load %arg6[%c0_42, %c448] : memref<8x2048xf32, #tpu.memory_space<vmem>>, vector<8x64xf32>
    %47 = vector.extract_strided_slice %46 {offsets = [0, 0], sizes = [1, 64], strides = [1, 1]} : vector<8x64xf32> to vector<1x64xf32>
    %c7 = arith.constant 7 : index
    %c128_43 = arith.constant 128 : index
    %48 = vector.load %arg7[%c7, %c128_43] : memref<32x384xf32, #tpu.memory_space<vmem>>, vector<1x64xf32>
    tpu.vector_store %arg7[%c7, %c128_43], %47 {strides = array<i32>} : memref<32x384xf32, #tpu.memory_space<vmem>>, vector<1x64xf32>,
    %49 = vector.extract_strided_slice %46 {offsets = [1, 0], sizes = [1, 64], strides = [1, 1]} : vector<8x64xf32> to vector<1x64xf32>
    %c7_44 = arith.constant 7 : index
    %c192_45 = arith.constant 192 : index
    %50 = vector.load %arg7[%c7_44, %c192_45] : memref<32x384xf32, #tpu.memory_space<vmem>>, vector<1x64xf32>
    tpu.vector_store %arg7[%c7_44, %c192_45], %49 {strides = array<i32>} : memref<32x384xf32, #tpu.memory_space<vmem>>, vector<1x64xf32>,
    %c0_46 = arith.constant 0 : index
    %c512 = arith.constant 512 : index
    %51 = vector.load %arg6[%c0_46, %c512] : memref<8x2048xf32, #tpu.memory_space<vmem>>, vector<8x64xf32>
    %52 = vector.extract_strided_slice %51 {offsets = [0, 0], sizes = [1, 64], strides = [1, 1]} : vector<8x64xf32> to vector<1x64xf32>
    %c8 = arith.constant 8 : index
    %c128_47 = arith.constant 128 : index
    %53 = vector.load %arg7[%c8, %c128_47] : memref<32x384xf32, #tpu.memory_space<vmem>>, vector<1x64xf32>
    tpu.vector_store %arg7[%c8, %c128_47], %52 {strides = array<i32>} : memref<32x384xf32, #tpu.memory_space<vmem>>, vector<1x64xf32>,
    %54 = vector.extract_strided_slice %51 {offsets = [1, 0], sizes = [1, 64], strides = [1, 1]} : vector<8x64xf32> to vector<1x64xf32>
    %c8_48 = arith.constant 8 : index
    %c192_49 = arith.constant 192 : index
    %55 = vector.load %arg7[%c8_48, %c192_49] : memref<32x384xf32, #tpu.memory_space<vmem>>, vector<1x64xf32>
    tpu.vector_store %arg7[%c8_48, %c192_49], %54 {strides = array<i32>} : memref<32x384xf32, #tpu.memory_space<vmem>>, vector<1x64xf32>,
    %c0_50 = arith.constant 0 : index
    %c576 = arith.constant 576 : index
    %56 = vector.load %arg6[%c0_50, %c576] : memref<8x2048xf32, #tpu.memory_space<vmem>>, vector<8x64xf32>
    %57 = vector.extract_strided_slice %56 {offsets = [0, 0], sizes = [1, 64], strides = [1, 1]} : vector<8x64xf32> to vector<1x64xf32>
    %c9 = arith.constant 9 : index
    %c128_51 = arith.constant 128 : index
    %58 = vector.load %arg7[%c9, %c128_51] : memref<32x384xf32, #tpu.memory_space<vmem>>, vector<1x64xf32>
    tpu.vector_store %arg7[%c9, %c128_51], %57 {strides = array<i32>} : memref<32x384xf32, #tpu.memory_space<vmem>>, vector<1x64xf32>,
    %59 = vector.extract_strided_slice %56 {offsets = [1, 0], sizes = [1, 64], strides = [1, 1]} : vector<8x64xf32> to vector<1x64xf32>
    %c9_52 = arith.constant 9 : index
    %c192_53 = arith.constant 192 : index
    %60 = vector.load %arg7[%c9_52, %c192_53] : memref<32x384xf32, #tpu.memory_space<vmem>>, vector<1x64xf32>
    tpu.vector_store %arg7[%c9_52, %c192_53], %59 {strides = array<i32>} : memref<32x384xf32, #tpu.memory_space<vmem>>, vector<1x64xf32>,
    %c0_54 = arith.constant 0 : index
    %c640 = arith.constant 640 : index
    %61 = vector.load %arg6[%c0_54, %c640] : memref<8x2048xf32, #tpu.memory_space<vmem>>, vector<8x64xf32>
    %62 = vector.extract_strided_slice %61 {offsets = [0, 0], sizes = [1, 64], strides = [1, 1]} : vector<8x64xf32> to vector<1x64xf32>
    %c10 = arith.constant 10 : index
    %c128_55 = arith.constant 128 : index
    %63 = vector.load %arg7[%c10, %c128_55] : memref<32x384xf32, #tpu.memory_space<vmem>>, vector<1x64xf32>
    tpu.vector_store %arg7[%c10, %c128_55], %62 {strides = array<i32>} : memref<32x384xf32, #tpu.memory_space<vmem>>, vector<1x64xf32>,
    %64 = vector.extract_strided_slice %61 {offsets = [1, 0], sizes = [1, 64], strides = [1, 1]} : vector<8x64xf32> to vector<1x64xf32>
    %c10_56 = arith.constant 10 : index
    %c192_57 = arith.constant 192 : index
    %65 = vector.load %arg7[%c10_56, %c192_57] : memref<32x384xf32, #tpu.memory_space<vmem>>, vector<1x64xf32>
    tpu.vector_store %arg7[%c10_56, %c192_57], %64 {strides = array<i32>} : memref<32x384xf32, #tpu.memory_space<vmem>>, vector<1x64xf32>,
    %c0_58 = arith.constant 0 : index
    %c704 = arith.constant 704 : index
    %66 = vector.load %arg6[%c0_58, %c704] : memref<8x2048xf32, #tpu.memory_space<vmem>>, vector<8x64xf32>
    %67 = vector.extract_strided_slice %66 {offsets = [0, 0], sizes = [1, 64], strides = [1, 1]} : vector<8x64xf32> to vector<1x64xf32>
    %c11 = arith.constant 11 : index
    %c128_59 = arith.constant 128 : index
    %68 = vector.load %arg7[%c11, %c128_59] : memref<32x384xf32, #tpu.memory_space<vmem>>, vector<1x64xf32>
    tpu.vector_store %arg7[%c11, %c128_59], %67 {strides = array<i32>} : memref<32x384xf32, #tpu.memory_space<vmem>>, vector<1x64xf32>,
    %69 = vector.extract_strided_slice %66 {offsets = [1, 0], sizes = [1, 64], strides = [1, 1]} : vector<8x64xf32> to vector<1x64xf32>
    %c11_60 = arith.constant 11 : index
    %c192_61 = arith.constant 192 : index
    %70 = vector.load %arg7[%c11_60, %c192_61] : memref<32x384xf32, #tpu.memory_space<vmem>>, vector<1x64xf32>
    tpu.vector_store %arg7[%c11_60, %c192_61], %69 {strides = array<i32>} : memref<32x384xf32, #tpu.memory_space<vmem>>, vector<1x64xf32>,
    %c0_62 = arith.constant 0 : index
    %c768 = arith.constant 768 : index
    %71 = vector.load %arg6[%c0_62, %c768] : memref<8x2048xf32, #tpu.memory_space<vmem>>, vector<8x64xf32>
    %72 = vector.extract_strided_slice %71 {offsets = [0, 0], sizes = [1, 64], strides = [1, 1]} : vector<8x64xf32> to vector<1x64xf32>
    %c12 = arith.constant 12 : index
    %c128_63 = arith.constant 128 : index
    %73 = vector.load %arg7[%c12, %c128_63] : memref<32x384xf32, #tpu.memory_space<vmem>>, vector<1x64xf32>
    tpu.vector_store %arg7[%c12, %c128_63], %72 {strides = array<i32>} : memref<32x384xf32, #tpu.memory_space<vmem>>, vector<1x64xf32>,
    %74 = vector.extract_strided_slice %71 {offsets = [1, 0], sizes = [1, 64], strides = [1, 1]} : vector<8x64xf32> to vector<1x64xf32>
    %c12_64 = arith.constant 12 : index
    %c192_65 = arith.constant 192 : index
    %75 = vector.load %arg7[%c12_64, %c192_65] : memref<32x384xf32, #tpu.memory_space<vmem>>, vector<1x64xf32>
    tpu.vector_store %arg7[%c12_64, %c192_65], %74 {strides = array<i32>} : memref<32x384xf32, #tpu.memory_space<vmem>>, vector<1x64xf32>,
    %c0_66 = arith.constant 0 : index
    %c832 = arith.constant 832 : index
    %76 = vector.load %arg6[%c0_66, %c832] : memref<8x2048xf32, #tpu.memory_space<vmem>>, vector<8x64xf32>
    %77 = vector.extract_strided_slice %76 {offsets = [0, 0], sizes = [1, 64], strides = [1, 1]} : vector<8x64xf32> to vector<1x64xf32>
    %c13 = arith.constant 13 : index
    %c128_67 = arith.constant 128 : index
    %78 = vector.load %arg7[%c13, %c128_67] : memref<32x384xf32, #tpu.memory_space<vmem>>, vector<1x64xf32>
    tpu.vector_store %arg7[%c13, %c128_67], %77 {strides = array<i32>} : memref<32x384xf32, #tpu.memory_space<vmem>>, vector<1x64xf32>,
    %79 = vector.extract_strided_slice %76 {offsets = [1, 0], sizes = [1, 64], strides = [1, 1]} : vector<8x64xf32> to vector<1x64xf32>
    %c13_68 = arith.constant 13 : index
    %c192_69 = arith.constant 192 : index
    %80 = vector.load %arg7[%c13_68, %c192_69] : memref<32x384xf32, #tpu.memory_space<vmem>>, vector<1x64xf32>
    tpu.vector_store %arg7[%c13_68, %c192_69], %79 {strides = array<i32>} : memref<32x384xf32, #tpu.memory_space<vmem>>, vector<1x64xf32>,
    %c0_70 = arith.constant 0 : index
    %c896 = arith.constant 896 : index
    %81 = vector.load %arg6[%c0_70, %c896] : memref<8x2048xf32, #tpu.memory_space<vmem>>, vector<8x64xf32>
    %82 = vector.extract_strided_slice %81 {offsets = [0, 0], sizes = [1, 64], strides = [1, 1]} : vector<8x64xf32> to vector<1x64xf32>
    %c14 = arith.constant 14 : index
    %c128_71 = arith.constant 128 : index
    %83 = vector.load %arg7[%c14, %c128_71] : memref<32x384xf32, #tpu.memory_space<vmem>>, vector<1x64xf32>
    tpu.vector_store %arg7[%c14, %c128_71], %82 {strides = array<i32>} : memref<32x384xf32, #tpu.memory_space<vmem>>, vector<1x64xf32>,
    %84 = vector.extract_strided_slice %81 {offsets = [1, 0], sizes = [1, 64], strides = [1, 1]} : vector<8x64xf32> to vector<1x64xf32>
    %c14_72 = arith.constant 14 : index
    %c192_73 = arith.constant 192 : index
    %85 = vector.load %arg7[%c14_72, %c192_73] : memref<32x384xf32, #tpu.memory_space<vmem>>, vector<1x64xf32>
    tpu.vector_store %arg7[%c14_72, %c192_73], %84 {strides = array<i32>} : memref<32x384xf32, #tpu.memory_space<vmem>>, vector<1x64xf32>,
    %c0_74 = arith.constant 0 : index
    %c960 = arith.constant 960 : index
    %86 = vector.load %arg6[%c0_74, %c960] : memref<8x2048xf32, #tpu.memory_space<vmem>>, vector<8x64xf32>
    %87 = vector.extract_strided_slice %86 {offsets = [0, 0], sizes = [1, 64], strides = [1, 1]} : vector<8x64xf32> to vector<1x64xf32>
    %c15 = arith.constant 15 : index
    %c128_75 = arith.constant 128 : index
    %88 = vector.load %arg7[%c15, %c128_75] : memref<32x384xf32, #tpu.memory_space<vmem>>, vector<1x64xf32>
    tpu.vector_store %arg7[%c15, %c128_75], %87 {strides = array<i32>} : memref<32x384xf32, #tpu.memory_space<vmem>>, vector<1x64xf32>,
    %89 = vector.extract_strided_slice %86 {offsets = [1, 0], sizes = [1, 64], strides = [1, 1]} : vector<8x64xf32> to vector<1x64xf32>
    %c15_76 = arith.constant 15 : index
    %c192_77 = arith.constant 192 : index
    %90 = vector.load %arg7[%c15_76, %c192_77] : memref<32x384xf32, #tpu.memory_space<vmem>>, vector<1x64xf32>
    tpu.vector_store %arg7[%c15_76, %c192_77], %89 {strides = array<i32>} : memref<32x384xf32, #tpu.memory_space<vmem>>, vector<1x64xf32>,
    %c0_78 = arith.constant 0 : index
    %c1024 = arith.constant 1024 : index
    %91 = vector.load %arg6[%c0_78, %c1024] : memref<8x2048xf32, #tpu.memory_space<vmem>>, vector<8x64xf32>
    %92 = vector.extract_strided_slice %91 {offsets = [0, 0], sizes = [1, 64], strides = [1, 1]} : vector<8x64xf32> to vector<1x64xf32>
    %c16 = arith.constant 16 : index
    %c128_79 = arith.constant 128 : index
    %93 = vector.load %arg7[%c16, %c128_79] : memref<32x384xf32, #tpu.memory_space<vmem>>, vector<1x64xf32>
    tpu.vector_store %arg7[%c16, %c128_79], %92 {strides = array<i32>} : memref<32x384xf32, #tpu.memory_space<vmem>>, vector<1x64xf32>,
    %94 = vector.extract_strided_slice %91 {offsets = [1, 0], sizes = [1, 64], strides = [1, 1]} : vector<8x64xf32> to vector<1x64xf32>
    %c16_80 = arith.constant 16 : index
    %c192_81 = arith.constant 192 : index
    %95 = vector.load %arg7[%c16_80, %c192_81] : memref<32x384xf32, #tpu.memory_space<vmem>>, vector<1x64xf32>
    tpu.vector_store %arg7[%c16_80, %c192_81], %94 {strides = array<i32>} : memref<32x384xf32, #tpu.memory_space<vmem>>, vector<1x64xf32>,
    %c0_82 = arith.constant 0 : index
    %c1088 = arith.constant 1088 : index
    %96 = vector.load %arg6[%c0_82, %c1088] : memref<8x2048xf32, #tpu.memory_space<vmem>>, vector<8x64xf32>
    %97 = vector.extract_strided_slice %96 {offsets = [0, 0], sizes = [1, 64], strides = [1, 1]} : vector<8x64xf32> to vector<1x64xf32>
    %c17 = arith.constant 17 : index
    %c128_83 = arith.constant 128 : index
    %98 = vector.load %arg7[%c17, %c128_83] : memref<32x384xf32, #tpu.memory_space<vmem>>, vector<1x64xf32>
    tpu.vector_store %arg7[%c17, %c128_83], %97 {strides = array<i32>} : memref<32x384xf32, #tpu.memory_space<vmem>>, vector<1x64xf32>,
    %99 = vector.extract_strided_slice %96 {offsets = [1, 0], sizes = [1, 64], strides = [1, 1]} : vector<8x64xf32> to vector<1x64xf32>
    %c17_84 = arith.constant 17 : index
    %c192_85 = arith.constant 192 : index
    %100 = vector.load %arg7[%c17_84, %c192_85] : memref<32x384xf32, #tpu.memory_space<vmem>>, vector<1x64xf32>
    tpu.vector_store %arg7[%c17_84, %c192_85], %99 {strides = array<i32>} : memref<32x384xf32, #tpu.memory_space<vmem>>, vector<1x64xf32>,
    %c0_86 = arith.constant 0 : index
    %c1152 = arith.constant 1152 : index
    %101 = vector.load %arg6[%c0_86, %c1152] : memref<8x2048xf32, #tpu.memory_space<vmem>>, vector<8x64xf32>
    %102 = vector.extract_strided_slice %101 {offsets = [0, 0], sizes = [1, 64], strides = [1, 1]} : vector<8x64xf32> to vector<1x64xf32>
    %c18 = arith.constant 18 : index
    %c128_87 = arith.constant 128 : index
    %103 = vector.load %arg7[%c18, %c128_87] : memref<32x384xf32, #tpu.memory_space<vmem>>, vector<1x64xf32>
    tpu.vector_store %arg7[%c18, %c128_87], %102 {strides = array<i32>} : memref<32x384xf32, #tpu.memory_space<vmem>>, vector<1x64xf32>,
    %104 = vector.extract_strided_slice %101 {offsets = [1, 0], sizes = [1, 64], strides = [1, 1]} : vector<8x64xf32> to vector<1x64xf32>
    %c18_88 = arith.constant 18 : index
    %c192_89 = arith.constant 192 : index
    %105 = vector.load %arg7[%c18_88, %c192_89] : memref<32x384xf32, #tpu.memory_space<vmem>>, vector<1x64xf32>
    tpu.vector_store %arg7[%c18_88, %c192_89], %104 {strides = array<i32>} : memref<32x384xf32, #tpu.memory_space<vmem>>, vector<1x64xf32>,
    %c0_90 = arith.constant 0 : index
    %c1216 = arith.constant 1216 : index
    %106 = vector.load %arg6[%c0_90, %c1216] : memref<8x2048xf32, #tpu.memory_space<vmem>>, vector<8x64xf32>
    %107 = vector.extract_strided_slice %106 {offsets = [0, 0], sizes = [1, 64], strides = [1, 1]} : vector<8x64xf32> to vector<1x64xf32>
    %c19 = arith.constant 19 : index
    %c128_91 = arith.constant 128 : index
    %108 = vector.load %arg7[%c19, %c128_91] : memref<32x384xf32, #tpu.memory_space<vmem>>, vector<1x64xf32>
    tpu.vector_store %arg7[%c19, %c128_91], %107 {strides = array<i32>} : memref<32x384xf32, #tpu.memory_space<vmem>>, vector<1x64xf32>,
    %109 = vector.extract_strided_slice %106 {offsets = [1, 0], sizes = [1, 64], strides = [1, 1]} : vector<8x64xf32> to vector<1x64xf32>
    %c19_92 = arith.constant 19 : index
    %c192_93 = arith.constant 192 : index
    %110 = vector.load %arg7[%c19_92, %c192_93] : memref<32x384xf32, #tpu.memory_space<vmem>>, vector<1x64xf32>
    tpu.vector_store %arg7[%c19_92, %c192_93], %109 {strides = array<i32>} : memref<32x384xf32, #tpu.memory_space<vmem>>, vector<1x64xf32>,
    %c0_94 = arith.constant 0 : index
    %c1280 = arith.constant 1280 : index
    %111 = vector.load %arg6[%c0_94, %c1280] : memref<8x2048xf32, #tpu.memory_space<vmem>>, vector<8x64xf32>
    %112 = vector.extract_strided_slice %111 {offsets = [0, 0], sizes = [1, 64], strides = [1, 1]} : vector<8x64xf32> to vector<1x64xf32>
    %c20 = arith.constant 20 : index
    %c128_95 = arith.constant 128 : index
    %113 = vector.load %arg7[%c20, %c128_95] : memref<32x384xf32, #tpu.memory_space<vmem>>, vector<1x64xf32>
    tpu.vector_store %arg7[%c20, %c128_95], %112 {strides = array<i32>} : memref<32x384xf32, #tpu.memory_space<vmem>>, vector<1x64xf32>,
    %114 = vector.extract_strided_slice %111 {offsets = [1, 0], sizes = [1, 64], strides = [1, 1]} : vector<8x64xf32> to vector<1x64xf32>
    %c20_96 = arith.constant 20 : index
    %c192_97 = arith.constant 192 : index
    %115 = vector.load %arg7[%c20_96, %c192_97] : memref<32x384xf32, #tpu.memory_space<vmem>>, vector<1x64xf32>
    tpu.vector_store %arg7[%c20_96, %c192_97], %114 {strides = array<i32>} : memref<32x384xf32, #tpu.memory_space<vmem>>, vector<1x64xf32>,
    %c0_98 = arith.constant 0 : index
    %c1344 = arith.constant 1344 : index
    %116 = vector.load %arg6[%c0_98, %c1344] : memref<8x2048xf32, #tpu.memory_space<vmem>>, vector<8x64xf32>
    %117 = vector.extract_strided_slice %116 {offsets = [0, 0], sizes = [1, 64], strides = [1, 1]} : vector<8x64xf32> to vector<1x64xf32>
    %c21 = arith.constant 21 : index
    %c128_99 = arith.constant 128 : index
    %118 = vector.load %arg7[%c21, %c128_99] : memref<32x384xf32, #tpu.memory_space<vmem>>, vector<1x64xf32>
    tpu.vector_store %arg7[%c21, %c128_99], %117 {strides = array<i32>} : memref<32x384xf32, #tpu.memory_space<vmem>>, vector<1x64xf32>,
    %119 = vector.extract_strided_slice %116 {offsets = [1, 0], sizes = [1, 64], strides = [1, 1]} : vector<8x64xf32> to vector<1x64xf32>
    %c21_100 = arith.constant 21 : index
    %c192_101 = arith.constant 192 : index
    %120 = vector.load %arg7[%c21_100, %c192_101] : memref<32x384xf32, #tpu.memory_space<vmem>>, vector<1x64xf32>
    tpu.vector_store %arg7[%c21_100, %c192_101], %119 {strides = array<i32>} : memref<32x384xf32, #tpu.memory_space<vmem>>, vector<1x64xf32>,
    %c0_102 = arith.constant 0 : index
    %c1408 = arith.constant 1408 : index
    %121 = vector.load %arg6[%c0_102, %c1408] : memref<8x2048xf32, #tpu.memory_space<vmem>>, vector<8x64xf32>
    %122 = vector.extract_strided_slice %121 {offsets = [0, 0], sizes = [1, 64], strides = [1, 1]} : vector<8x64xf32> to vector<1x64xf32>
    %c22 = arith.constant 22 : index
    %c128_103 = arith.constant 128 : index
    %123 = vector.load %arg7[%c22, %c128_103] : memref<32x384xf32, #tpu.memory_space<vmem>>, vector<1x64xf32>
    tpu.vector_store %arg7[%c22, %c128_103], %122 {strides = array<i32>} : memref<32x384xf32, #tpu.memory_space<vmem>>, vector<1x64xf32>,
    %124 = vector.extract_strided_slice %121 {offsets = [1, 0], sizes = [1, 64], strides = [1, 1]} : vector<8x64xf32> to vector<1x64xf32>
    %c22_104 = arith.constant 22 : index
    %c192_105 = arith.constant 192 : index
    %125 = vector.load %arg7[%c22_104, %c192_105] : memref<32x384xf32, #tpu.memory_space<vmem>>, vector<1x64xf32>
    tpu.vector_store %arg7[%c22_104, %c192_105], %124 {strides = array<i32>} : memref<32x384xf32, #tpu.memory_space<vmem>>, vector<1x64xf32>,
    %c0_106 = arith.constant 0 : index
    %c1472 = arith.constant 1472 : index
    %126 = vector.load %arg6[%c0_106, %c1472] : memref<8x2048xf32, #tpu.memory_space<vmem>>, vector<8x64xf32>
    %127 = vector.extract_strided_slice %126 {offsets = [0, 0], sizes = [1, 64], strides = [1, 1]} : vector<8x64xf32> to vector<1x64xf32>
    %c23 = arith.constant 23 : index
    %c128_107 = arith.constant 128 : index
    %128 = vector.load %arg7[%c23, %c128_107] : memref<32x384xf32, #tpu.memory_space<vmem>>, vector<1x64xf32>
    tpu.vector_store %arg7[%c23, %c128_107], %127 {strides = array<i32>} : memref<32x384xf32, #tpu.memory_space<vmem>>, vector<1x64xf32>,
    %129 = vector.extract_strided_slice %126 {offsets = [1, 0], sizes = [1, 64], strides = [1, 1]} : vector<8x64xf32> to vector<1x64xf32>
    %c23_108 = arith.constant 23 : index
    %c192_109 = arith.constant 192 : index
    %130 = vector.load %arg7[%c23_108, %c192_109] : memref<32x384xf32, #tpu.memory_space<vmem>>, vector<1x64xf32>
    tpu.vector_store %arg7[%c23_108, %c192_109], %129 {strides = array<i32>} : memref<32x384xf32, #tpu.memory_space<vmem>>, vector<1x64xf32>,
    %c0_110 = arith.constant 0 : index
    %c1536 = arith.constant 1536 : index
    %131 = vector.load %arg6[%c0_110, %c1536] : memref<8x2048xf32, #tpu.memory_space<vmem>>, vector<8x64xf32>
    %132 = vector.extract_strided_slice %131 {offsets = [0, 0], sizes = [1, 64], strides = [1, 1]} : vector<8x64xf32> to vector<1x64xf32>
    %c24 = arith.constant 24 : index
    %c128_111 = arith.constant 128 : index
    %133 = vector.load %arg7[%c24, %c128_111] : memref<32x384xf32, #tpu.memory_space<vmem>>, vector<1x64xf32>
    tpu.vector_store %arg7[%c24, %c128_111], %132 {strides = array<i32>} : memref<32x384xf32, #tpu.memory_space<vmem>>, vector<1x64xf32>,
    %134 = vector.extract_strided_slice %131 {offsets = [1, 0], sizes = [1, 64], strides = [1, 1]} : vector<8x64xf32> to vector<1x64xf32>
    %c24_112 = arith.constant 24 : index
    %c192_113 = arith.constant 192 : index
    %135 = vector.load %arg7[%c24_112, %c192_113] : memref<32x384xf32, #tpu.memory_space<vmem>>, vector<1x64xf32>
    tpu.vector_store %arg7[%c24_112, %c192_113], %134 {strides = array<i32>} : memref<32x384xf32, #tpu.memory_space<vmem>>, vector<1x64xf32>,
    %c0_114 = arith.constant 0 : index
    %c1600 = arith.constant 1600 : index
    %136 = vector.load %arg6[%c0_114, %c1600] : memref<8x2048xf32, #tpu.memory_space<vmem>>, vector<8x64xf32>
    %137 = vector.extract_strided_slice %136 {offsets = [0, 0], sizes = [1, 64], strides = [1, 1]} : vector<8x64xf32> to vector<1x64xf32>
    %c25 = arith.constant 25 : index
    %c128_115 = arith.constant 128 : index
    %138 = vector.load %arg7[%c25, %c128_115] : memref<32x384xf32, #tpu.memory_space<vmem>>, vector<1x64xf32>
    tpu.vector_store %arg7[%c25, %c128_115], %137 {strides = array<i32>} : memref<32x384xf32, #tpu.memory_space<vmem>>, vector<1x64xf32>,
    %139 = vector.extract_strided_slice %136 {offsets = [1, 0], sizes = [1, 64], strides = [1, 1]} : vector<8x64xf32> to vector<1x64xf32>
    %c25_116 = arith.constant 25 : index
    %c192_117 = arith.constant 192 : index
    %140 = vector.load %arg7[%c25_116, %c192_117] : memref<32x384xf32, #tpu.memory_space<vmem>>, vector<1x64xf32>
    tpu.vector_store %arg7[%c25_116, %c192_117], %139 {strides = array<i32>} : memref<32x384xf32, #tpu.memory_space<vmem>>, vector<1x64xf32>,
    %c0_118 = arith.constant 0 : index
    %c1664 = arith.constant 1664 : index
    %141 = vector.load %arg6[%c0_118, %c1664] : memref<8x2048xf32, #tpu.memory_space<vmem>>, vector<8x64xf32>
    %142 = vector.extract_strided_slice %141 {offsets = [0, 0], sizes = [1, 64], strides = [1, 1]} : vector<8x64xf32> to vector<1x64xf32>
    %c26 = arith.constant 26 : index
    %c128_119 = arith.constant 128 : index
    %143 = vector.load %arg7[%c26, %c128_119] : memref<32x384xf32, #tpu.memory_space<vmem>>, vector<1x64xf32>
    tpu.vector_store %arg7[%c26, %c128_119], %142 {strides = array<i32>} : memref<32x384xf32, #tpu.memory_space<vmem>>, vector<1x64xf32>,
    %144 = vector.extract_strided_slice %141 {offsets = [1, 0], sizes = [1, 64], strides = [1, 1]} : vector<8x64xf32> to vector<1x64xf32>
    %c26_120 = arith.constant 26 : index
    %c192_121 = arith.constant 192 : index
    %145 = vector.load %arg7[%c26_120, %c192_121] : memref<32x384xf32, #tpu.memory_space<vmem>>, vector<1x64xf32>
    tpu.vector_store %arg7[%c26_120, %c192_121], %144 {strides = array<i32>} : memref<32x384xf32, #tpu.memory_space<vmem>>, vector<1x64xf32>,
    %c0_122 = arith.constant 0 : index
    %c1728 = arith.constant 1728 : index
    %146 = vector.load %arg6[%c0_122, %c1728] : memref<8x2048xf32, #tpu.memory_space<vmem>>, vector<8x64xf32>
    %147 = vector.extract_strided_slice %146 {offsets = [0, 0], sizes = [1, 64], strides = [1, 1]} : vector<8x64xf32> to vector<1x64xf32>
    %c27 = arith.constant 27 : index
    %c128_123 = arith.constant 128 : index
    %148 = vector.load %arg7[%c27, %c128_123] : memref<32x384xf32, #tpu.memory_space<vmem>>, vector<1x64xf32>
    tpu.vector_store %arg7[%c27, %c128_123], %147 {strides = array<i32>} : memref<32x384xf32, #tpu.memory_space<vmem>>, vector<1x64xf32>,
    %149 = vector.extract_strided_slice %146 {offsets = [1, 0], sizes = [1, 64], strides = [1, 1]} : vector<8x64xf32> to vector<1x64xf32>
    %c27_124 = arith.constant 27 : index
    %c192_125 = arith.constant 192 : index
    %150 = vector.load %arg7[%c27_124, %c192_125] : memref<32x384xf32, #tpu.memory_space<vmem>>, vector<1x64xf32>
    tpu.vector_store %arg7[%c27_124, %c192_125], %149 {strides = array<i32>} : memref<32x384xf32, #tpu.memory_space<vmem>>, vector<1x64xf32>,
    %c0_126 = arith.constant 0 : index
    %c1792 = arith.constant 1792 : index
    %151 = vector.load %arg6[%c0_126, %c1792] : memref<8x2048xf32, #tpu.memory_space<vmem>>, vector<8x64xf32>
    %152 = vector.extract_strided_slice %151 {offsets = [0, 0], sizes = [1, 64], strides = [1, 1]} : vector<8x64xf32> to vector<1x64xf32>
    %c28 = arith.constant 28 : index
    %c128_127 = arith.constant 128 : index
    %153 = vector.load %arg7[%c28, %c128_127] : memref<32x384xf32, #tpu.memory_space<vmem>>, vector<1x64xf32>
    tpu.vector_store %arg7[%c28, %c128_127], %152 {strides = array<i32>} : memref<32x384xf32, #tpu.memory_space<vmem>>, vector<1x64xf32>,
    %154 = vector.extract_strided_slice %151 {offsets = [1, 0], sizes = [1, 64], strides = [1, 1]} : vector<8x64xf32> to vector<1x64xf32>
    %c28_128 = arith.constant 28 : index
    %c192_129 = arith.constant 192 : index
    %155 = vector.load %arg7[%c28_128, %c192_129] : memref<32x384xf32, #tpu.memory_space<vmem>>, vector<1x64xf32>
    tpu.vector_store %arg7[%c28_128, %c192_129], %154 {strides = array<i32>} : memref<32x384xf32, #tpu.memory_space<vmem>>, vector<1x64xf32>,
    %c0_130 = arith.constant 0 : index
    %c1856 = arith.constant 1856 : index
    %156 = vector.load %arg6[%c0_130, %c1856] : memref<8x2048xf32, #tpu.memory_space<vmem>>, vector<8x64xf32>
    %157 = vector.extract_strided_slice %156 {offsets = [0, 0], sizes = [1, 64], strides = [1, 1]} : vector<8x64xf32> to vector<1x64xf32>
    %c29 = arith.constant 29 : index
    %c128_131 = arith.constant 128 : index
    %158 = vector.load %arg7[%c29, %c128_131] : memref<32x384xf32, #tpu.memory_space<vmem>>, vector<1x64xf32>
    tpu.vector_store %arg7[%c29, %c128_131], %157 {strides = array<i32>} : memref<32x384xf32, #tpu.memory_space<vmem>>, vector<1x64xf32>,
    %159 = vector.extract_strided_slice %156 {offsets = [1, 0], sizes = [1, 64], strides = [1, 1]} : vector<8x64xf32> to vector<1x64xf32>
    %c29_132 = arith.constant 29 : index
    %c192_133 = arith.constant 192 : index
    %160 = vector.load %arg7[%c29_132, %c192_133] : memref<32x384xf32, #tpu.memory_space<vmem>>, vector<1x64xf32>
    tpu.vector_store %arg7[%c29_132, %c192_133], %159 {strides = array<i32>} : memref<32x384xf32, #tpu.memory_space<vmem>>, vector<1x64xf32>,
    %c0_134 = arith.constant 0 : index
    %c1920 = arith.constant 1920 : index
    %161 = vector.load %arg6[%c0_134, %c1920] : memref<8x2048xf32, #tpu.memory_space<vmem>>, vector<8x64xf32>
    %162 = vector.extract_strided_slice %161 {offsets = [0, 0], sizes = [1, 64], strides = [1, 1]} : vector<8x64xf32> to vector<1x64xf32>
    %c30 = arith.constant 30 : index
    %c128_135 = arith.constant 128 : index
    %163 = vector.load %arg7[%c30, %c128_135] : memref<32x384xf32, #tpu.memory_space<vmem>>, vector<1x64xf32>
    tpu.vector_store %arg7[%c30, %c128_135], %162 {strides = array<i32>} : memref<32x384xf32, #tpu.memory_space<vmem>>, vector<1x64xf32>,
    %164 = vector.extract_strided_slice %161 {offsets = [1, 0], sizes = [1, 64], strides = [1, 1]} : vector<8x64xf32> to vector<1x64xf32>
    %c30_136 = arith.constant 30 : index
    %c192_137 = arith.constant 192 : index
    %165 = vector.load %arg7[%c30_136, %c192_137] : memref<32x384xf32, #tpu.memory_space<vmem>>, vector<1x64xf32>
    tpu.vector_store %arg7[%c30_136, %c192_137], %164 {strides = array<i32>} : memref<32x384xf32, #tpu.memory_space<vmem>>, vector<1x64xf32>,
    %c0_138 = arith.constant 0 : index
    %c1984 = arith.constant 1984 : index
    %166 = vector.load %arg6[%c0_138, %c1984] : memref<8x2048xf32, #tpu.memory_space<vmem>>, vector<8x64xf32>
    %167 = vector.extract_strided_slice %166 {offsets = [0, 0], sizes = [1, 64], strides = [1, 1]} : vector<8x64xf32> to vector<1x64xf32>
    %c31 = arith.constant 31 : index
    %c128_139 = arith.constant 128 : index
    %168 = vector.load %arg7[%c31, %c128_139] : memref<32x384xf32, #tpu.memory_space<vmem>>, vector<1x64xf32>
    tpu.vector_store %arg7[%c31, %c128_139], %167 {strides = array<i32>} : memref<32x384xf32, #tpu.memory_space<vmem>>, vector<1x64xf32>,
    %169 = vector.extract_strided_slice %166 {offsets = [1, 0], sizes = [1, 64], strides = [1, 1]} : vector<8x64xf32> to vector<1x64xf32>
    %c31_140 = arith.constant 31 : index
    %c192_141 = arith.constant 192 : index
    %170 = vector.load %arg7[%c31_140, %c192_141] : memref<32x384xf32, #tpu.memory_space<vmem>>, vector<1x64xf32>
    tpu.vector_store %arg7[%c31_140, %c192_141], %169 {strides = array<i32>} : memref<32x384xf32, #tpu.memory_space<vmem>>, vector<1x64xf32>,
    %c0_142 = arith.constant 0 : index
    %c119 = arith.constant 119 : index
    %171 = vector.load %arg7[%c0_142, %c119] : memref<32x384xf32, #tpu.memory_space<vmem>>, vector<32x128xf32>
    %c0_143 = arith.constant 0 : index
    %c0_144 = arith.constant 0 : index
    %172 = vector.load %arg3[%c0_143, %c0_144] : memref<9x128xf32, #tpu.memory_space<vmem>>, vector<1x128xf32>
    %173 = vector.broadcast %172 : vector<1x128xf32> to vector<32x128xf32>
    %174 = arith.mulf %171, %173 : vector<32x128xf32>
    %175 = arith.truncf %174 : vector<32x128xf32> to vector<32x128xbf16>
    %c0_145 = arith.constant 0 : index
    %c0_146 = arith.constant 0 : index
    %176 = vector.load %arg8[%c0_145, %c0_146] : memref<288x128xbf16, #tpu.memory_space<vmem>>, vector<32x128xbf16>
    tpu.vector_store %arg8[%c0_145, %c0_146], %175 {strides = array<i32>} : memref<288x128xbf16, #tpu.memory_space<vmem>>, vector<32x128xbf16>,
    %c0_147 = arith.constant 0 : index
    %c120 = arith.constant 120 : index
    %177 = vector.load %arg7[%c0_147, %c120] : memref<32x384xf32, #tpu.memory_space<vmem>>, vector<32x128xf32>
    %c1_148 = arith.constant 1 : index
    %c0_149 = arith.constant 0 : index
    %178 = vector.load %arg3[%c1_148, %c0_149] : memref<9x128xf32, #tpu.memory_space<vmem>>, vector<1x128xf32>
    %179 = vector.broadcast %178 : vector<1x128xf32> to vector<32x128xf32>
    %180 = arith.mulf %177, %179 : vector<32x128xf32>
    %181 = arith.truncf %180 : vector<32x128xf32> to vector<32x128xbf16>
    %c32 = arith.constant 32 : index
    %c0_150 = arith.constant 0 : index
    %182 = vector.load %arg8[%c32, %c0_150] : memref<288x128xbf16, #tpu.memory_space<vmem>>, vector<32x128xbf16>
    tpu.vector_store %arg8[%c32, %c0_150], %181 {strides = array<i32>} : memref<288x128xbf16, #tpu.memory_space<vmem>>, vector<32x128xbf16>,
    %c0_151 = arith.constant 0 : index
    %c121 = arith.constant 121 : index
    %183 = vector.load %arg7[%c0_151, %c121] : memref<32x384xf32, #tpu.memory_space<vmem>>, vector<32x128xf32>
    %c2_152 = arith.constant 2 : index
    %c0_153 = arith.constant 0 : index
    %184 = vector.load %arg3[%c2_152, %c0_153] : memref<9x128xf32, #tpu.memory_space<vmem>>, vector<1x128xf32>
    %185 = vector.broadcast %184 : vector<1x128xf32> to vector<32x128xf32>
    %186 = arith.mulf %183, %185 : vector<32x128xf32>
    %187 = arith.truncf %186 : vector<32x128xf32> to vector<32x128xbf16>
    %c64_154 = arith.constant 64 : index
    %c0_155 = arith.constant 0 : index
    %188 = vector.load %arg8[%c64_154, %c0_155] : memref<288x128xbf16, #tpu.memory_space<vmem>>, vector<32x128xbf16>
    tpu.vector_store %arg8[%c64_154, %c0_155], %187 {strides = array<i32>} : memref<288x128xbf16, #tpu.memory_space<vmem>>, vector<32x128xbf16>,
    %c0_156 = arith.constant 0 : index
    %c127 = arith.constant 127 : index
    %189 = vector.load %arg7[%c0_156, %c127] : memref<32x384xf32, #tpu.memory_space<vmem>>, vector<32x128xf32>
    %c3_157 = arith.constant 3 : index
    %c0_158 = arith.constant 0 : index
    %190 = vector.load %arg3[%c3_157, %c0_158] : memref<9x128xf32, #tpu.memory_space<vmem>>, vector<1x128xf32>
    %191 = vector.broadcast %190 : vector<1x128xf32> to vector<32x128xf32>
    %192 = arith.mulf %189, %191 : vector<32x128xf32>
    %193 = arith.truncf %192 : vector<32x128xf32> to vector<32x128xbf16>
    %c96 = arith.constant 96 : index
    %c0_159 = arith.constant 0 : index
    %194 = vector.load %arg8[%c96, %c0_159] : memref<288x128xbf16, #tpu.memory_space<vmem>>, vector<32x128xbf16>
    tpu.vector_store %arg8[%c96, %c0_159], %193 {strides = array<i32>} : memref<288x128xbf16, #tpu.memory_space<vmem>>, vector<32x128xbf16>,
    %c0_160 = arith.constant 0 : index
    %c128_161 = arith.constant 128 : index
    %195 = vector.load %arg7[%c0_160, %c128_161] : memref<32x384xf32, #tpu.memory_space<vmem>>, vector<32x128xf32>
    %c4_162 = arith.constant 4 : index
    %c0_163 = arith.constant 0 : index
    %196 = vector.load %arg3[%c4_162, %c0_163] : memref<9x128xf32, #tpu.memory_space<vmem>>, vector<1x128xf32>
    %197 = vector.broadcast %196 : vector<1x128xf32> to vector<32x128xf32>
    %198 = arith.mulf %195, %197 : vector<32x128xf32>
    %199 = arith.truncf %198 : vector<32x128xf32> to vector<32x128xbf16>
    %c128_164 = arith.constant 128 : index
    %c0_165 = arith.constant 0 : index
    %200 = vector.load %arg8[%c128_164, %c0_165] : memref<288x128xbf16, #tpu.memory_space<vmem>>, vector<32x128xbf16>
    tpu.vector_store %arg8[%c128_164, %c0_165], %199 {strides = array<i32>} : memref<288x128xbf16, #tpu.memory_space<vmem>>, vector<32x128xbf16>,
    %c0_166 = arith.constant 0 : index
    %c129 = arith.constant 129 : index
    %201 = vector.load %arg7[%c0_166, %c129] : memref<32x384xf32, #tpu.memory_space<vmem>>, vector<32x128xf32>
    %c5_167 = arith.constant 5 : index
    %c0_168 = arith.constant 0 : index
    %202 = vector.load %arg3[%c5_167, %c0_168] : memref<9x128xf32, #tpu.memory_space<vmem>>, vector<1x128xf32>
    %203 = vector.broadcast %202 : vector<1x128xf32> to vector<32x128xf32>
    %204 = arith.mulf %201, %203 : vector<32x128xf32>
    %205 = arith.truncf %204 : vector<32x128xf32> to vector<32x128xbf16>
    %c160 = arith.constant 160 : index
    %c0_169 = arith.constant 0 : index
    %206 = vector.load %arg8[%c160, %c0_169] : memref<288x128xbf16, #tpu.memory_space<vmem>>, vector<32x128xbf16>
    tpu.vector_store %arg8[%c160, %c0_169], %205 {strides = array<i32>} : memref<288x128xbf16, #tpu.memory_space<vmem>>, vector<32x128xbf16>,
    %c0_170 = arith.constant 0 : index
    %c135 = arith.constant 135 : index
    %207 = vector.load %arg7[%c0_170, %c135] : memref<32x384xf32, #tpu.memory_space<vmem>>, vector<32x128xf32>
    %c6_171 = arith.constant 6 : index
    %c0_172 = arith.constant 0 : index
    %208 = vector.load %arg3[%c6_171, %c0_172] : memref<9x128xf32, #tpu.memory_space<vmem>>, vector<1x128xf32>
    %209 = vector.broadcast %208 : vector<1x128xf32> to vector<32x128xf32>
    %210 = arith.mulf %207, %209 : vector<32x128xf32>
    %211 = arith.truncf %210 : vector<32x128xf32> to vector<32x128xbf16>
    %c192_173 = arith.constant 192 : index
    %c0_174 = arith.constant 0 : index
    %212 = vector.load %arg8[%c192_173, %c0_174] : memref<288x128xbf16, #tpu.memory_space<vmem>>, vector<32x128xbf16>
    tpu.vector_store %arg8[%c192_173, %c0_174], %211 {strides = array<i32>} : memref<288x128xbf16, #tpu.memory_space<vmem>>, vector<32x128xbf16>,
    %c0_175 = arith.constant 0 : index
    %c136 = arith.constant 136 : index
    %213 = vector.load %arg7[%c0_175, %c136] : memref<32x384xf32, #tpu.memory_space<vmem>>, vector<32x128xf32>
    %c7_176 = arith.constant 7 : index
    %c0_177 = arith.constant 0 : index
    %214 = vector.load %arg3[%c7_176, %c0_177] : memref<9x128xf32, #tpu.memory_space<vmem>>, vector<1x128xf32>
    %215 = vector.broadcast %214 : vector<1x128xf32> to vector<32x128xf32>
    %216 = arith.mulf %213, %215 : vector<32x128xf32>
    %217 = arith.truncf %216 : vector<32x128xf32> to vector<32x128xbf16>
    %c224 = arith.constant 224 : index
    %c0_178 = arith.constant 0 : index
    %218 = vector.load %arg8[%c224, %c0_178] : memref<288x128xbf16, #tpu.memory_space<vmem>>, vector<32x128xbf16>
    tpu.vector_store %arg8[%c224, %c0_178], %217 {strides = array<i32>} : memref<288x128xbf16, #tpu.memory_space<vmem>>, vector<32x128xbf16>,
    %c0_179 = arith.constant 0 : index
    %c137 = arith.constant 137 : index
    %219 = vector.load %arg7[%c0_179, %c137] : memref<32x384xf32, #tpu.memory_space<vmem>>, vector<32x128xf32>
    %c8_180 = arith.constant 8 : index
    %c0_181 = arith.constant 0 : index
    %220 = vector.load %arg3[%c8_180, %c0_181] : memref<9x128xf32, #tpu.memory_space<vmem>>, vector<1x128xf32>
    %221 = vector.broadcast %220 : vector<1x128xf32> to vector<32x128xf32>
    %222 = arith.mulf %219, %221 : vector<32x128xf32>
    %223 = arith.truncf %222 : vector<32x128xf32> to vector<32x128xbf16>
    %c256_182 = arith.constant 256 : index
    %c0_183 = arith.constant 0 : index
    %224 = vector.load %arg8[%c256_182, %c0_183] : memref<288x128xbf16, #tpu.memory_space<vmem>>, vector<32x128xbf16>
    tpu.vector_store %arg8[%c256_182, %c0_183], %223 {strides = array<i32>} : memref<288x128xbf16, #tpu.memory_space<vmem>>, vector<32x128xbf16>,
    %c0_184 = arith.constant 0 : index
    %c0_185 = arith.constant 0 : index
    %225 = vector.load %arg2[%c0_184, %c0_185] : memref<48x288xbf16, #tpu.memory_space<vmem>>, vector<48x288xbf16>
    %c0_186 = arith.constant 0 : index
    %c0_187 = arith.constant 0 : index
    %226 = vector.load %arg8[%c0_186, %c0_187] : memref<288x128xbf16, #tpu.memory_space<vmem>>, vector<288x128xbf16>
    %cst_188 = arith.constant dense<0.000000e+00> : vector<48x128xf32>
    %227 = tpu.matmul %225, %226, %cst_188 {dimension_numbers = #tpu.dot_dimension_numbers<[1], [0], [0], [1], [0, 0, 1, 1], [], []>} : vector<48x288xbf16>, vector<288x128xbf16>, vector<48x128xf32> -> vector<48x128xf32>
    %c0_189 = arith.constant 0 : index
    %c0_190 = arith.constant 0 : index
    %228 = vector.load %arg4[%c0_189, %c0_190] : memref<48x1xf32, #tpu.memory_space<vmem>>, vector<48x1xf32>
    %229 = vector.broadcast %228 : vector<48x1xf32> to vector<48x128xf32>
    %230 = arith.addf %227, %229 : vector<48x128xf32>
    %cst_191 = arith.constant 0.000000e+00 : f32
    %231 = vector.broadcast %cst_191 : f32 to vector<48x128xf32>
    %232 = arith.subf %231, %230 : vector<48x128xf32>
    %233 = math.exp %232 : vector<48x128xf32>
    %cst_192 = arith.constant 1.000000e+00 : f32
    %234 = vector.broadcast %cst_192 : f32 to vector<48x128xf32>
    %235 = arith.addf %234, %233 : vector<48x128xf32>
    %236 = tpu.reciprocal %235 {approx = true} : vector<48x128xf32> -> vector<48x128xf32>
    %c0_193 = arith.constant 0 : index
    %c0_194 = arith.constant 0 : index
    %237 = vector.load %arg5[%c0_193, %c0_194] : memref<48x128xf32, #tpu.memory_space<vmem>>, vector<48x128xf32>
    tpu.vector_store %arg5[%c0_193, %c0_194], %236 {strides = array<i32>} : memref<48x128xf32, #tpu.memory_space<vmem>>, vector<48x128xf32>,
    return
  }
}

</mosaic_0001>

<llo_original>
// kernel: decoder_forward.1
$region0: #{decoder_forward.1}
  #allocation0 [shape = 'u32[]', space=smem, size = 0x4, offset = 0x4, fixed_abs, tag = 'smem constant byte address 0x4 - core index']
  #allocation1 [shape = 'u32[144,128]{1,0:T(1,128)}', space=vmem, size = 0x12000, scoped, tag = 'internal scratch']
  #allocation2 [shape = 'f32[8,2048]{1,0:T(8,128)}', space=vmem, size = 0x10000, scoped, tag = 'scratch operand']
  #allocation3 [shape = 'f32[32,384]{1,0:T(8,128)}', space=vmem, size = 0xc000, scoped, tag = 'scratch operand']
  #allocation4 [shape = 'bf16[288,128]{1,0:T(16,128)(2,1)}', space=vmem, size = 0x12000, scoped, tag = 'scratch operand']
  %s0 = inlined_call_operand.vmem [shape: bf16[8,256], index: 0, kind: input, shape index: {}]
  %s1 = inlined_call_operand.hbm [shape: bf16[256,2048], index: 1, kind: input, shape index: {}]
  %s2 = inlined_call_operand.hbm [shape: bf16[48,288], index: 2, kind: input, shape index: {}]
  %s3 = inlined_call_operand.hbm [shape: f32[9,128], index: 3, kind: input, shape index: {}]
  %s4 = inlined_call_operand.vmem [shape: f32[48,1], index: 4, kind: input, shape index: {}]
  %s5 = inlined_call_operand.vmem [shape: f32[48,128], index: 5, kind: output, shape index: {}]
  %s6 = sld [smem:[#allocation0]]
  $region42: #{decoder_forward.1} parent=0
    _
  %s8 = ssub.s32 1, %s6
  %s9 = scalar_select 0, %s8, %s6
  $region1: #{decoder_forward.1} parent=0
    #allocation5 [shape = 'u8[1048576]{0}', space=vmem, size = 0x100000, scoped, tag = 'input window, operand 1, single buffered']
    #allocation6 [shape = 's32[1]{0}', space=sflag, size = 0x4, scoped, tag = 'scoped memory for decoder_forward.1']
    #allocation7 [shape = 'u8[36864]{0}', space=vmem, size = 0x9000, scoped, tag = 'input window, operand 2, single buffered']
    #allocation8 [shape = 's32[1]{0}', space=sflag, size = 0x4, scoped, tag = 'scoped memory for decoder_forward.1']
    #allocation9 [shape = 'u8[8192]{0}', space=vmem, size = 0x2000, scoped, tag = 'input window, operand 3, single buffered']
    %10 = vsyncpa [#allocation6], 0
    %11 = vsyncpa [#allocation8], 0
    // Predicated region
    $region2: #{decoder_forward.1} parent=1 // pred_check
      _
    $region3: #{decoder_forward.1} parent=1 // pred_check_branch
      %13 = sbr.rel (0) target = $region5
    $region4: #{decoder_forward.1} parent=1 // pred_region
      _
    $region5: #{decoder_forward.1} parent=1 // pred_fallthru
      _
    // Predicated region
    $region6: #{decoder_forward.1} parent=1 // pred_check
      _
    $region7: #{decoder_forward.1} parent=1 // pred_check_branch
      %15 = sbr.rel (0) target = $region9
    $region8: #{decoder_forward.1} parent=1 // pred_region
      %s17 = ssub.s32 32768, 32768
      %18 = vsyncadd [#allocation6], %s17
      %s19 = sshll.u32 [#allocation5], 4
      %s20 = int_to_ptr.vmem [resolvable:$true] %s19
      %25 = dma.hbm_to_vmem [thread:$0]  %s1, 32768, %s20, [#allocation6], 1024, 1024, 64
    $region9: #{decoder_forward.1} parent=1 // pred_fallthru
      _
    // Predicated region
    $region10: #{decoder_forward.1} parent=1 // pred_check
      _
    $region11: #{decoder_forward.1} parent=1 // pred_check_branch
      %27 = sbr.rel (0) target = $region13
    $region12: #{decoder_forward.1} parent=1 // pred_region
      %s29 = ssub.s32 1152, 1152
      %30 = vsyncadd [#allocation8], %s29
      %s31 = sshll.u32 [#allocation7], 4
      %s32 = int_to_ptr.vmem [resolvable:$true] %s31
      %37 = dma.hbm_to_vmem [thread:$0]  %s2, 1152, %s32, [#allocation8], 192, 192, 12
    $region13: #{decoder_forward.1} parent=1 // pred_fallthru
      _
    // Predicated region
    $region14: #{decoder_forward.1} parent=1 // pred_check
      _
    $region15: #{decoder_forward.1} parent=1 // pred_check_branch
      %39 = sbr.rel (0) target = $region17
    $region16: #{decoder_forward.1} parent=1 // pred_region
      %s41 = ssub.s32 256, 256
      %42 = vsyncadd [#allocation8], %s41
      %s43 = sshll.u32 [#allocation9], 4
      %s44 = int_to_ptr.vmem [resolvable:$true] %s43
      %49 = dma.hbm_to_vmem [thread:$0]  %s3, 256, %s44, [#allocation8], 128, 128, 8
    $region17: #{decoder_forward.1} parent=1 // pred_fallthru
      _
    // Predicated region
    $region18: #{decoder_forward.1} parent=1 // pred_check
      _
    $region19: #{decoder_forward.1} parent=1 // pred_check_branch
      %51 = sbr.rel (0) target = $region21
    $region20: #{decoder_forward.1} parent=1 // pred_region
      _
    $region21: #{decoder_forward.1} parent=1 // pred_fallthru
      _
    // Predicated region
    $region22: #{decoder_forward.1} parent=1 // pred_check
      _
    $region23: #{decoder_forward.1} parent=1 // pred_check_branch
      %53 = sbr.rel (0) target = $region25
    $region24: #{decoder_forward.1} parent=1 // pred_region
      %54 = dma.done [#allocation6], 32768
    $region25: #{decoder_forward.1} parent=1 // pred_fallthru
      _
    // Predicated region
    $region26: #{decoder_forward.1} parent=1 // pred_check
      _
    $region27: #{decoder_forward.1} parent=1 // pred_check_branch
      %56 = sbr.rel (0) target = $region29
    $region28: #{decoder_forward.1} parent=1 // pred_region
      %57 = dma.done [#allocation8], 1152
    $region29: #{decoder_forward.1} parent=1 // pred_fallthru
      _
    // Predicated region
    $region30: #{decoder_forward.1} parent=1 // pred_check
      _
    $region31: #{decoder_forward.1} parent=1 // pred_check_branch
      %59 = sbr.rel (0) target = $region33
    $region32: #{decoder_forward.1} parent=1 // pred_region
      %60 = dma.done [#allocation8], 256
    $region33: #{decoder_forward.1} parent=1 // pred_fallthru
      _
    %v62 = vld [vmem:[%s0] sm:$0xff]
    %v63 = vld [vmem:[#allocation5] sm:$0xff]
    %v64 = vld [vmem:[#allocation5 + $0x8] sm:$0xff]
    %v65 = vld [vmem:[#allocation5 + $0x10] sm:$0xff]
    %v66 = vld [vmem:[#allocation5 + $0x18] sm:$0xff]
    %v67 = vld [vmem:[#allocation5 + $0x20] sm:$0xff]
    %v68 = vld [vmem:[#allocation5 + $0x28] sm:$0xff]
    %v69 = vld [vmem:[#allocation5 + $0x30] sm:$0xff]
    %v70 = vld [vmem:[#allocation5 + $0x38] sm:$0xff]
    %v71 = vld [vmem:[#allocation5 + $0x40] sm:$0xff]
    %v72 = vld [vmem:[#allocation5 + $0x48] sm:$0xff]
    %v73 = vld [vmem:[#allocation5 + $0x50] sm:$0xff]
    %v74 = vld [vmem:[#allocation5 + $0x58] sm:$0xff]
    %v75 = vld [vmem:[#allocation5 + $0x60] sm:$0xff]
    %v76 = vld [vmem:[#allocation5 + $0x68] sm:$0xff]
    %v77 = vld [vmem:[#allocation5 + $0x70] sm:$0xff]
    %v78 = vld [vmem:[#allocation5 + $0x78] sm:$0xff]
    %v79 = vld [vmem:[#allocation5 + $0x80] sm:$0xff]
    %v80 = vld [vmem:[#allocation5 + $0x88] sm:$0xff]
    %v81 = vld [vmem:[#allocation5 + $0x90] sm:$0xff]
    %v82 = vld [vmem:[#allocation5 + $0x98] sm:$0xff]
    %v83 = vld [vmem:[#allocation5 + $0xa0] sm:$0xff]
    %v84 = vld [vmem:[#allocation5 + $0xa8] sm:$0xff]
    %v85 = vld [vmem:[#allocation5 + $0xb0] sm:$0xff]
    %v86 = vld [vmem:[#allocation5 + $0xb8] sm:$0xff]
    %v87 = vld [vmem:[#allocation5 + $0xc0] sm:$0xff]
    %v88 = vld [vmem:[#allocation5 + $0xc8] sm:$0xff]
    %v89 = vld [vmem:[#allocation5 + $0xd0] sm:$0xff]
    %v90 = vld [vmem:[#allocation5 + $0xd8] sm:$0xff]
    %v91 = vld [vmem:[#allocation5 + $0xe0] sm:$0xff]
    %v92 = vld [vmem:[#allocation5 + $0xe8] sm:$0xff]
    %v93 = vld [vmem:[#allocation5 + $0xf0] sm:$0xff]
    %v94 = vld [vmem:[#allocation5 + $0xf8] sm:$0xff]
    %v95 = vld [vmem:[#allocation5 + $0x100] sm:$0xff]
    %v96 = vld [vmem:[#allocation5 + $0x108] sm:$0xff]
    %v97 = vld [vmem:[#allocation5 + $0x110] sm:$0xff]
    %v98 = vld [vmem:[#allocation5 + $0x118] sm:$0xff]
    %v99 = vld [vmem:[#allocation5 + $0x120] sm:$0xff]
    %v100 = vld [vmem:[#allocation5 + $0x128] sm:$0xff]
    %v101 = vld [vmem:[#allocation5 + $0x130] sm:$0xff]
    %v102 = vld [vmem:[#allocation5 + $0x138] sm:$0xff]
    %v103 = vld [vmem:[#allocation5 + $0x140] sm:$0xff]
    %v104 = vld [vmem:[#allocation5 + $0x148] sm:$0xff]
    %v105 = vld [vmem:[#allocation5 + $0x150] sm:$0xff]
    %v106 = vld [vmem:[#allocation5 + $0x158] sm:$0xff]
    %v107 = vld [vmem:[#allocation5 + $0x160] sm:$0xff]
    %v108 = vld [vmem:[#allocation5 + $0x168] sm:$0xff]
    %v109 = vld [vmem:[#allocation5 + $0x170] sm:$0xff]
    %v110 = vld [vmem:[#allocation5 + $0x178] sm:$0xff]
    %v111 = vld [vmem:[#allocation5 + $0x180] sm:$0xff]
    %v112 = vld [vmem:[#allocation5 + $0x188] sm:$0xff]
    %v113 = vld [vmem:[#allocation5 + $0x190] sm:$0xff]
    %v114 = vld [vmem:[#allocation5 + $0x198] sm:$0xff]
    %v115 = vld [vmem:[#allocation5 + $0x1a0] sm:$0xff]
    %v116 = vld [vmem:[#allocation5 + $0x1a8] sm:$0xff]
    %v117 = vld [vmem:[#allocation5 + $0x1b0] sm:$0xff]
    %v118 = vld [vmem:[#allocation5 + $0x1b8] sm:$0xff]
    %v119 = vld [vmem:[#allocation5 + $0x1c0] sm:$0xff]
    %v120 = vld [vmem:[#allocation5 + $0x1c8] sm:$0xff]
    %v121 = vld [vmem:[#allocation5 + $0x1d0] sm:$0xff]
    %v122 = vld [vmem:[#allocation5 + $0x1d8] sm:$0xff]
    %v123 = vld [vmem:[#allocation5 + $0x1e0] sm:$0xff]
    %v124 = vld [vmem:[#allocation5 + $0x1e8] sm:$0xff]
    %v125 = vld [vmem:[#allocation5 + $0x1f0] sm:$0xff]
    %v126 = vld [vmem:[#allocation5 + $0x1f8] sm:$0xff]
    %v127 = vld [vmem:[#allocation5 + $0x200] sm:$0xff]
    %v128 = vld [vmem:[#allocation5 + $0x208] sm:$0xff]
    %v129 = vld [vmem:[#allocation5 + $0x210] sm:$0xff]
    %v130 = vld [vmem:[#allocation5 + $0x218] sm:$0xff]
    %v131 = vld [vmem:[#allocation5 + $0x220] sm:$0xff]
    %v132 = vld [vmem:[#allocation5 + $0x228] sm:$0xff]
    %v133 = vld [vmem:[#allocation5 + $0x230] sm:$0xff]
    %v134 = vld [vmem:[#allocation5 + $0x238] sm:$0xff]
    %v135 = vld [vmem:[#allocation5 + $0x240] sm:$0xff]
    %v136 = vld [vmem:[#allocation5 + $0x248] sm:$0xff]
    %v137 = vld [vmem:[#allocation5 + $0x250] sm:$0xff]
    %v138 = vld [vmem:[#allocation5 + $0x258] sm:$0xff]
    %v139 = vld [vmem:[#allocation5 + $0x260] sm:$0xff]
    %v140 = vld [vmem:[#allocation5 + $0x268] sm:$0xff]
    %v141 = vld [vmem:[#allocation5 + $0x270] sm:$0xff]
    %v142 = vld [vmem:[#allocation5 + $0x278] sm:$0xff]
    %v143 = vld [vmem:[#allocation5 + $0x280] sm:$0xff]
    %v144 = vld [vmem:[#allocation5 + $0x288] sm:$0xff]
    %v145 = vld [vmem:[#allocation5 + $0x290] sm:$0xff]
    %v146 = vld [vmem:[#allocation5 + $0x298] sm:$0xff]
    %v147 = vld [vmem:[#allocation5 + $0x2a0] sm:$0xff]
    %v148 = vld [vmem:[#allocation5 + $0x2a8] sm:$0xff]
    %v149 = vld [vmem:[#allocation5 + $0x2b0] sm:$0xff]
    %v150 = vld [vmem:[#allocation5 + $0x2b8] sm:$0xff]
    %v151 = vld [vmem:[#allocation5 + $0x2c0] sm:$0xff]
    %v152 = vld [vmem:[#allocation5 + $0x2c8] sm:$0xff]
    %v153 = vld [vmem:[#allocation5 + $0x2d0] sm:$0xff]
    %v154 = vld [vmem:[#allocation5 + $0x2d8] sm:$0xff]
    %v155 = vld [vmem:[#allocation5 + $0x2e0] sm:$0xff]
    %v156 = vld [vmem:[#allocation5 + $0x2e8] sm:$0xff]
    %v157 = vld [vmem:[#allocation5 + $0x2f0] sm:$0xff]
    %v158 = vld [vmem:[#allocation5 + $0x2f8] sm:$0xff]
    %v159 = vld [vmem:[#allocation5 + $0x300] sm:$0xff]
    %v160 = vld [vmem:[#allocation5 + $0x308] sm:$0xff]
    %v161 = vld [vmem:[#allocation5 + $0x310] sm:$0xff]
    %v162 = vld [vmem:[#allocation5 + $0x318] sm:$0xff]
    %v163 = vld [vmem:[#allocation5 + $0x320] sm:$0xff]
    %v164 = vld [vmem:[#allocation5 + $0x328] sm:$0xff]
    %v165 = vld [vmem:[#allocation5 + $0x330] sm:$0xff]
    %v166 = vld [vmem:[#allocation5 + $0x338] sm:$0xff]
    %v167 = vld [vmem:[#allocation5 + $0x340] sm:$0xff]
    %v168 = vld [vmem:[#allocation5 + $0x348] sm:$0xff]
    %v169 = vld [vmem:[#allocation5 + $0x350] sm:$0xff]
    %v170 = vld [vmem:[#allocation5 + $0x358] sm:$0xff]
    %v171 = vld [vmem:[#allocation5 + $0x360] sm:$0xff]
    %v172 = vld [vmem:[#allocation5 + $0x368] sm:$0xff]
    %v173 = vld [vmem:[#allocation5 + $0x370] sm:$0xff]
    %v174 = vld [vmem:[#allocation5 + $0x378] sm:$0xff]
    %v175 = vld [vmem:[#allocation5 + $0x380] sm:$0xff]
    %v176 = vld [vmem:[#allocation5 + $0x388] sm:$0xff]
    %v177 = vld [vmem:[#allocation5 + $0x390] sm:$0xff]
    %v178 = vld [vmem:[#allocation5 + $0x398] sm:$0xff]
    %v179 = vld [vmem:[#allocation5 + $0x3a0] sm:$0xff]
    %v180 = vld [vmem:[#allocation5 + $0x3a8] sm:$0xff]
    %v181 = vld [vmem:[#allocation5 + $0x3b0] sm:$0xff]
    %v182 = vld [vmem:[#allocation5 + $0x3b8] sm:$0xff]
    %v183 = vld [vmem:[#allocation5 + $0x3c0] sm:$0xff]
    %v184 = vld [vmem:[#allocation5 + $0x3c8] sm:$0xff]
    %v185 = vld [vmem:[#allocation5 + $0x3d0] sm:$0xff]
    %v186 = vld [vmem:[#allocation5 + $0x3d8] sm:$0xff]
    %v187 = vld [vmem:[#allocation5 + $0x3e0] sm:$0xff]
    %v188 = vld [vmem:[#allocation5 + $0x3e8] sm:$0xff]
    %v189 = vld [vmem:[#allocation5 + $0x3f0] sm:$0xff]
    %v190 = vld [vmem:[#allocation5 + $0x3f8] sm:$0xff]
    %v191 = vld [vmem:[#allocation5 + $0x400] sm:$0xff]
    %v192 = vld [vmem:[#allocation5 + $0x408] sm:$0xff]
    %v193 = vld [vmem:[#allocation5 + $0x410] sm:$0xff]
    %v194 = vld [vmem:[#allocation5 + $0x418] sm:$0xff]
    %v195 = vld [vmem:[#allocation5 + $0x420] sm:$0xff]
    %v196 = vld [vmem:[#allocation5 + $0x428] sm:$0xff]
    %v197 = vld [vmem:[#allocation5 + $0x430] sm:$0xff]
    %v198 = vld [vmem:[#allocation5 + $0x438] sm:$0xff]
    %v199 = vld [vmem:[#allocation5 + $0x440] sm:$0xff]
    %v200 = vld [vmem:[#allocation5 + $0x448] sm:$0xff]
    %v201 = vld [vmem:[#allocation5 + $0x450] sm:$0xff]
    %v202 = vld [vmem:[#allocation5 + $0x458] sm:$0xff]
    %v203 = vld [vmem:[#allocation5 + $0x460] sm:$0xff]
    %v204 = vld [vmem:[#allocation5 + $0x468] sm:$0xff]
    %v205 = vld [vmem:[#allocation5 + $0x470] sm:$0xff]
    %v206 = vld [vmem:[#allocation5 + $0x478] sm:$0xff]
    %v207 = vld [vmem:[#allocation5 + $0x480] sm:$0xff]
    %v208 = vld [vmem:[#allocation5 + $0x488] sm:$0xff]
    %v209 = vld [vmem:[#allocation5 + $0x490] sm:$0xff]
    %v210 = vld [vmem:[#allocation5 + $0x498] sm:$0xff]
    %v211 = vld [vmem:[#allocation5 + $0x4a0] sm:$0xff]
    %v212 = vld [vmem:[#allocation5 + $0x4a8] sm:$0xff]
    %v213 = vld [vmem:[#allocation5 + $0x4b0] sm:$0xff]
    %v214 = vld [vmem:[#allocation5 + $0x4b8] sm:$0xff]
    %v215 = vld [vmem:[#allocation5 + $0x4c0] sm:$0xff]
    %v216 = vld [vmem:[#allocation5 + $0x4c8] sm:$0xff]
    %v217 = vld [vmem:[#allocation5 + $0x4d0] sm:$0xff]
    %v218 = vld [vmem:[#allocation5 + $0x4d8] sm:$0xff]
    %v219 = vld [vmem:[#allocation5 + $0x4e0] sm:$0xff]
    %v220 = vld [vmem:[#allocation5 + $0x4e8] sm:$0xff]
    %v221 = vld [vmem:[#allocation5 + $0x4f0] sm:$0xff]
    %v222 = vld [vmem:[#allocation5 + $0x4f8] sm:$0xff]
    %v223 = vld [vmem:[#allocation5 + $0x500] sm:$0xff]
    %v224 = vld [vmem:[#allocation5 + $0x508] sm:$0xff]
    %v225 = vld [vmem:[#allocation5 + $0x510] sm:$0xff]
    %v226 = vld [vmem:[#allocation5 + $0x518] sm:$0xff]
    %v227 = vld [vmem:[#allocation5 + $0x520] sm:$0xff]
    %v228 = vld [vmem:[#allocation5 + $0x528] sm:$0xff]
    %v229 = vld [vmem:[#allocation5 + $0x530] sm:$0xff]
    %v230 = vld [vmem:[#allocation5 + $0x538] sm:$0xff]
    %v231 = vld [vmem:[#allocation5 + $0x540] sm:$0xff]
    %v232 = vld [vmem:[#allocation5 + $0x548] sm:$0xff]
    %v233 = vld [vmem:[#allocation5 + $0x550] sm:$0xff]
    %v234 = vld [vmem:[#allocation5 + $0x558] sm:$0xff]
    %v235 = vld [vmem:[#allocation5 + $0x560] sm:$0xff]
    %v236 = vld [vmem:[#allocation5 + $0x568] sm:$0xff]
    %v237 = vld [vmem:[#allocation5 + $0x570] sm:$0xff]
    %v238 = vld [vmem:[#allocation5 + $0x578] sm:$0xff]
    %v239 = vld [vmem:[#allocation5 + $0x580] sm:$0xff]
    %v240 = vld [vmem:[#allocation5 + $0x588] sm:$0xff]
    %v241 = vld [vmem:[#allocation5 + $0x590] sm:$0xff]
    %v242 = vld [vmem:[#allocation5 + $0x598] sm:$0xff]
    %v243 = vld [vmem:[#allocation5 + $0x5a0] sm:$0xff]
    %v244 = vld [vmem:[#allocation5 + $0x5a8] sm:$0xff]
    %v245 = vld [vmem:[#allocation5 + $0x5b0] sm:$0xff]
    %v246 = vld [vmem:[#allocation5 + $0x5b8] sm:$0xff]
    %v247 = vld [vmem:[#allocation5 + $0x5c0] sm:$0xff]
    %v248 = vld [vmem:[#allocation5 + $0x5c8] sm:$0xff]
    %v249 = vld [vmem:[#allocation5 + $0x5d0] sm:$0xff]
    %v250 = vld [vmem:[#allocation5 + $0x5d8] sm:$0xff]
    %v251 = vld [vmem:[#allocation5 + $0x5e0] sm:$0xff]
    %v252 = vld [vmem:[#allocation5 + $0x5e8] sm:$0xff]
    %v253 = vld [vmem:[#allocation5 + $0x5f0] sm:$0xff]
    %v254 = vld [vmem:[#allocation5 + $0x5f8] sm:$0xff]
    %v255 = vld [vmem:[#allocation5 + $0x600] sm:$0xff]
    %v256 = vld [vmem:[#allocation5 + $0x608] sm:$0xff]
    %v257 = vld [vmem:[#allocation5 + $0x610] sm:$0xff]
    %v258 = vld [vmem:[#allocation5 + $0x618] sm:$0xff]
    %v259 = vld [vmem:[#allocation5 + $0x620] sm:$0xff]
    %v260 = vld [vmem:[#allocation5 + $0x628] sm:$0xff]
    %v261 = vld [vmem:[#allocation5 + $0x630] sm:$0xff]
    %v262 = vld [vmem:[#allocation5 + $0x638] sm:$0xff]
    %v263 = vld [vmem:[#allocation5 + $0x640] sm:$0xff]
    %v264 = vld [vmem:[#allocation5 + $0x648] sm:$0xff]
    %v265 = vld [vmem:[#allocation5 + $0x650] sm:$0xff]
    %v266 = vld [vmem:[#allocation5 + $0x658] sm:$0xff]
    %v267 = vld [vmem:[#allocation5 + $0x660] sm:$0xff]
    %v268 = vld [vmem:[#allocation5 + $0x668] sm:$0xff]
    %v269 = vld [vmem:[#allocation5 + $0x670] sm:$0xff]
    %v270 = vld [vmem:[#allocation5 + $0x678] sm:$0xff]
    %v271 = vld [vmem:[#allocation5 + $0x680] sm:$0xff]
    %v272 = vld [vmem:[#allocation5 + $0x688] sm:$0xff]
    %v273 = vld [vmem:[#allocation5 + $0x690] sm:$0xff]
    %v274 = vld [vmem:[#allocation5 + $0x698] sm:$0xff]
    %v275 = vld [vmem:[#allocation5 + $0x6a0] sm:$0xff]
    %v276 = vld [vmem:[#allocation5 + $0x6a8] sm:$0xff]
    %v277 = vld [vmem:[#allocation5 + $0x6b0] sm:$0xff]
    %v278 = vld [vmem:[#allocation5 + $0x6b8] sm:$0xff]
    %v279 = vld [vmem:[#allocation5 + $0x6c0] sm:$0xff]
    %v280 = vld [vmem:[#allocation5 + $0x6c8] sm:$0xff]
    %v281 = vld [vmem:[#allocation5 + $0x6d0] sm:$0xff]
    %v282 = vld [vmem:[#allocation5 + $0x6d8] sm:$0xff]
    %v283 = vld [vmem:[#allocation5 + $0x6e0] sm:$0xff]
    %v284 = vld [vmem:[#allocation5 + $0x6e8] sm:$0xff]
    %v285 = vld [vmem:[#allocation5 + $0x6f0] sm:$0xff]
    %v286 = vld [vmem:[#allocation5 + $0x6f8] sm:$0xff]
    %v287 = vld [vmem:[#allocation5 + $0x700] sm:$0xff]
    %v288 = vld [vmem:[#allocation5 + $0x708] sm:$0xff]
    %v289 = vld [vmem:[#allocation5 + $0x710] sm:$0xff]
    %v290 = vld [vmem:[#allocation5 + $0x718] sm:$0xff]
    %v291 = vld [vmem:[#allocation5 + $0x720] sm:$0xff]
    %v292 = vld [vmem:[#allocation5 + $0x728] sm:$0xff]
    %v293 = vld [vmem:[#allocation5 + $0x730] sm:$0xff]
    %v294 = vld [vmem:[#allocation5 + $0x738] sm:$0xff]
    %v295 = vld [vmem:[#allocation5 + $0x740] sm:$0xff]
    %v296 = vld [vmem:[#allocation5 + $0x748] sm:$0xff]
    %v297 = vld [vmem:[#allocation5 + $0x750] sm:$0xff]
    %v298 = vld [vmem:[#allocation5 + $0x758] sm:$0xff]
    %v299 = vld [vmem:[#allocation5 + $0x760] sm:$0xff]
    %v300 = vld [vmem:[#allocation5 + $0x768] sm:$0xff]
    %v301 = vld [vmem:[#allocation5 + $0x770] sm:$0xff]
    %v302 = vld [vmem:[#allocation5 + $0x778] sm:$0xff]
    %v303 = vld [vmem:[#allocation5 + $0x780] sm:$0xff]
    %v304 = vld [vmem:[#allocation5 + $0x788] sm:$0xff]
    %v305 = vld [vmem:[#allocation5 + $0x790] sm:$0xff]
    %v306 = vld [vmem:[#allocation5 + $0x798] sm:$0xff]
    %v307 = vld [vmem:[#allocation5 + $0x7a0] sm:$0xff]
    %v308 = vld [vmem:[#allocation5 + $0x7a8] sm:$0xff]
    %v309 = vld [vmem:[#allocation5 + $0x7b0] sm:$0xff]
    %v310 = vld [vmem:[#allocation5 + $0x7b8] sm:$0xff]
    %v311 = vld [vmem:[#allocation5 + $0x7c0] sm:$0xff]
    %v312 = vld [vmem:[#allocation5 + $0x7c8] sm:$0xff]
    %v313 = vld [vmem:[#allocation5 + $0x7d0] sm:$0xff]
    %v314 = vld [vmem:[#allocation5 + $0x7d8] sm:$0xff]
    %v315 = vld [vmem:[#allocation5 + $0x7e0] sm:$0xff]
    %v316 = vld [vmem:[#allocation5 + $0x7e8] sm:$0xff]
    %v317 = vld [vmem:[#allocation5 + $0x7f0] sm:$0xff]
    %v318 = vld [vmem:[#allocation5 + $0x7f8] sm:$0xff]
    %v320 = vunpack.c.l.b16 %v62
    %v321 = vunpack.c.h.b16 %v62
    %v322 = vpack.c.b16 %v320, %v320
    %v323 = vpack.c.b16 %v321, %v321
    %v582 = vunpack.c.l.b16 %v63
    %v583 = vunpack.c.h.b16 %v63
    %v584 = vunpack.c.l.b16 %v64
    %v585 = vunpack.c.h.b16 %v64
    %v586 = vunpack.c.l.b16 %v65
    %v587 = vunpack.c.h.b16 %v65
    %v588 = vunpack.c.l.b16 %v66
    %v589 = vunpack.c.h.b16 %v66
    %v590 = vunpack.c.l.b16 %v67
    %v591 = vunpack.c.h.b16 %v67
    %v592 = vunpack.c.l.b16 %v68
    %v593 = vunpack.c.h.b16 %v68
    %v594 = vunpack.c.l.b16 %v69
    %v595 = vunpack.c.h.b16 %v69
    %v596 = vunpack.c.l.b16 %v70
    %v597 = vunpack.c.h.b16 %v70
    %v598 = vunpack.c.l.b16 %v71
    %v599 = vunpack.c.h.b16 %v71
    %v600 = vunpack.c.l.b16 %v72
    %v601 = vunpack.c.h.b16 %v72
    %v602 = vunpack.c.l.b16 %v73
    %v603 = vunpack.c.h.b16 %v73
    %v604 = vunpack.c.l.b16 %v74
    %v605 = vunpack.c.h.b16 %v74
    %v606 = vunpack.c.l.b16 %v75
    %v607 = vunpack.c.h.b16 %v75
    %v608 = vunpack.c.l.b16 %v76
    %v609 = vunpack.c.h.b16 %v76
    %v610 = vunpack.c.l.b16 %v77
    %v611 = vunpack.c.h.b16 %v77
    %v612 = vunpack.c.l.b16 %v78
    %v613 = vunpack.c.h.b16 %v78
    %v614 = vunpack.c.l.b16 %v79
    %v615 = vunpack.c.h.b16 %v79
    %v616 = vunpack.c.l.b16 %v80
    %v617 = vunpack.c.h.b16 %v80
    %v618 = vunpack.c.l.b16 %v81
    %v619 = vunpack.c.h.b16 %v81
    %v620 = vunpack.c.l.b16 %v82
    %v621 = vunpack.c.h.b16 %v82
    %v622 = vunpack.c.l.b16 %v83
    %v623 = vunpack.c.h.b16 %v83
    %v624 = vunpack.c.l.b16 %v84
    %v625 = vunpack.c.h.b16 %v84
    %v626 = vunpack.c.l.b16 %v85
    %v627 = vunpack.c.h.b16 %v85
    %v628 = vunpack.c.l.b16 %v86
    %v629 = vunpack.c.h.b16 %v86
    %v630 = vunpack.c.l.b16 %v87
    %v631 = vunpack.c.h.b16 %v87
    %v632 = vunpack.c.l.b16 %v88
    %v633 = vunpack.c.h.b16 %v88
    %v634 = vunpack.c.l.b16 %v89
    %v635 = vunpack.c.h.b16 %v89
    %v636 = vunpack.c.l.b16 %v90
    %v637 = vunpack.c.h.b16 %v90
    %v638 = vunpack.c.l.b16 %v91
    %v639 = vunpack.c.h.b16 %v91
    %v640 = vunpack.c.l.b16 %v92
    %v641 = vunpack.c.h.b16 %v92
    %v642 = vunpack.c.l.b16 %v93
    %v643 = vunpack.c.h.b16 %v93
    %v644 = vunpack.c.l.b16 %v94
    %v645 = vunpack.c.h.b16 %v94
    %v646 = vunpack.c.l.b16 %v95
    %v647 = vunpack.c.h.b16 %v95
    %v648 = vunpack.c.l.b16 %v96
    %v649 = vunpack.c.h.b16 %v96
    %v650 = vunpack.c.l.b16 %v97
    %v651 = vunpack.c.h.b16 %v97
    %v652 = vunpack.c.l.b16 %v98
    %v653 = vunpack.c.h.b16 %v98
    %v654 = vunpack.c.l.b16 %v99
    %v655 = vunpack.c.h.b16 %v99
    %v656 = vunpack.c.l.b16 %v100
    %v657 = vunpack.c.h.b16 %v100
    %v658 = vunpack.c.l.b16 %v101
    %v659 = vunpack.c.h.b16 %v101
    %v660 = vunpack.c.l.b16 %v102
    %v661 = vunpack.c.h.b16 %v102
    %v662 = vunpack.c.l.b16 %v103
    %v663 = vunpack.c.h.b16 %v103
    %v664 = vunpack.c.l.b16 %v104
    %v665 = vunpack.c.h.b16 %v104
    %v666 = vunpack.c.l.b16 %v105
    %v667 = vunpack.c.h.b16 %v105
    %v668 = vunpack.c.l.b16 %v106
    %v669 = vunpack.c.h.b16 %v106
    %v670 = vunpack.c.l.b16 %v107
    %v671 = vunpack.c.h.b16 %v107
    %v672 = vunpack.c.l.b16 %v108
    %v673 = vunpack.c.h.b16 %v108
    %v674 = vunpack.c.l.b16 %v109
    %v675 = vunpack.c.h.b16 %v109
    %v676 = vunpack.c.l.b16 %v110
    %v677 = vunpack.c.h.b16 %v110
    %v678 = vunpack.c.l.b16 %v111
    %v679 = vunpack.c.h.b16 %v111
    %v680 = vunpack.c.l.b16 %v112
    %v681 = vunpack.c.h.b16 %v112
    %v682 = vunpack.c.l.b16 %v113
    %v683 = vunpack.c.h.b16 %v113
    %v684 = vunpack.c.l.b16 %v114
    %v685 = vunpack.c.h.b16 %v114
    %v686 = vunpack.c.l.b16 %v115
    %v687 = vunpack.c.h.b16 %v115
    %v688 = vunpack.c.l.b16 %v116
    %v689 = vunpack.c.h.b16 %v116
    %v690 = vunpack.c.l.b16 %v117
    %v691 = vunpack.c.h.b16 %v117
    %v692 = vunpack.c.l.b16 %v118
    %v693 = vunpack.c.h.b16 %v118
    %v694 = vunpack.c.l.b16 %v119
    %v695 = vunpack.c.h.b16 %v119
    %v696 = vunpack.c.l.b16 %v120
    %v697 = vunpack.c.h.b16 %v120
    %v698 = vunpack.c.l.b16 %v121
    %v699 = vunpack.c.h.b16 %v121
    %v700 = vunpack.c.l.b16 %v122
    %v701 = vunpack.c.h.b16 %v122
    %v702 = vunpack.c.l.b16 %v123
    %v703 = vunpack.c.h.b16 %v123
    %v704 = vunpack.c.l.b16 %v124
    %v705 = vunpack.c.h.b16 %v124
    %v706 = vunpack.c.l.b16 %v125
    %v707 = vunpack.c.h.b16 %v125
    %v708 = vunpack.c.l.b16 %v126
    %v709 = vunpack.c.h.b16 %v126
    %v710 = vunpack.c.l.b16 %v127
    %v711 = vunpack.c.h.b16 %v127
    %v712 = vunpack.c.l.b16 %v128
    %v713 = vunpack.c.h.b16 %v128
    %v714 = vunpack.c.l.b16 %v129
    %v715 = vunpack.c.h.b16 %v129
    %v716 = vunpack.c.l.b16 %v130
    %v717 = vunpack.c.h.b16 %v130
    %v718 = vunpack.c.l.b16 %v131
    %v719 = vunpack.c.h.b16 %v131
    %v720 = vunpack.c.l.b16 %v132
    %v721 = vunpack.c.h.b16 %v132
    %v722 = vunpack.c.l.b16 %v133
    %v723 = vunpack.c.h.b16 %v133
    %v724 = vunpack.c.l.b16 %v134
    %v725 = vunpack.c.h.b16 %v134
    %v726 = vunpack.c.l.b16 %v135
    %v727 = vunpack.c.h.b16 %v135
    %v728 = vunpack.c.l.b16 %v136
    %v729 = vunpack.c.h.b16 %v136
    %v730 = vunpack.c.l.b16 %v137
    %v731 = vunpack.c.h.b16 %v137
    %v732 = vunpack.c.l.b16 %v138
    %v733 = vunpack.c.h.b16 %v138
    %v734 = vunpack.c.l.b16 %v139
    %v735 = vunpack.c.h.b16 %v139
    %v736 = vunpack.c.l.b16 %v140
    %v737 = vunpack.c.h.b16 %v140
    %v738 = vunpack.c.l.b16 %v141
    %v739 = vunpack.c.h.b16 %v141
    %v740 = vunpack.c.l.b16 %v142
    %v741 = vunpack.c.h.b16 %v142
    %v742 = vunpack.c.l.b16 %v143
    %v743 = vunpack.c.h.b16 %v143
    %v744 = vunpack.c.l.b16 %v144
    %v745 = vunpack.c.h.b16 %v144
    %v746 = vunpack.c.l.b16 %v145
    %v747 = vunpack.c.h.b16 %v145
    %v748 = vunpack.c.l.b16 %v146
    %v749 = vunpack.c.h.b16 %v146
    %v750 = vunpack.c.l.b16 %v147
    %v751 = vunpack.c.h.b16 %v147
    %v752 = vunpack.c.l.b16 %v148
    %v753 = vunpack.c.h.b16 %v148
    %v754 = vunpack.c.l.b16 %v149
    %v755 = vunpack.c.h.b16 %v149
    %v756 = vunpack.c.l.b16 %v150
    %v757 = vunpack.c.h.b16 %v150
    %v758 = vunpack.c.l.b16 %v151
    %v759 = vunpack.c.h.b16 %v151
    %v760 = vunpack.c.l.b16 %v152
    %v761 = vunpack.c.h.b16 %v152
    %v762 = vunpack.c.l.b16 %v153
    %v763 = vunpack.c.h.b16 %v153
    %v764 = vunpack.c.l.b16 %v154
    %v765 = vunpack.c.h.b16 %v154
    %v766 = vunpack.c.l.b16 %v155
    %v767 = vunpack.c.h.b16 %v155
    %v768 = vunpack.c.l.b16 %v156
    %v769 = vunpack.c.h.b16 %v156
    %v770 = vunpack.c.l.b16 %v157
    %v771 = vunpack.c.h.b16 %v157
    %v772 = vunpack.c.l.b16 %v158
    %v773 = vunpack.c.h.b16 %v158
    %v774 = vunpack.c.l.b16 %v159
    %v775 = vunpack.c.h.b16 %v159
    %v776 = vunpack.c.l.b16 %v160
    %v777 = vunpack.c.h.b16 %v160
    %v778 = vunpack.c.l.b16 %v161
    %v779 = vunpack.c.h.b16 %v161
    %v780 = vunpack.c.l.b16 %v162
    %v781 = vunpack.c.h.b16 %v162
    %v782 = vunpack.c.l.b16 %v163
    %v783 = vunpack.c.h.b16 %v163
    %v784 = vunpack.c.l.b16 %v164
    %v785 = vunpack.c.h.b16 %v164
    %v786 = vunpack.c.l.b16 %v165
    %v787 = vunpack.c.h.b16 %v165
    %v788 = vunpack.c.l.b16 %v166
    %v789 = vunpack.c.h.b16 %v166
    %v790 = vunpack.c.l.b16 %v167
    %v791 = vunpack.c.h.b16 %v167
    %v792 = vunpack.c.l.b16 %v168
    %v793 = vunpack.c.h.b16 %v168
    %v794 = vunpack.c.l.b16 %v169
    %v795 = vunpack.c.h.b16 %v169
    %v796 = vunpack.c.l.b16 %v170
    %v797 = vunpack.c.h.b16 %v170
    %v798 = vunpack.c.l.b16 %v171
    %v799 = vunpack.c.h.b16 %v171
    %v800 = vunpack.c.l.b16 %v172
    %v801 = vunpack.c.h.b16 %v172
    %v802 = vunpack.c.l.b16 %v173
    %v803 = vunpack.c.h.b16 %v173
    %v804 = vunpack.c.l.b16 %v174
    %v805 = vunpack.c.h.b16 %v174
    %v806 = vunpack.c.l.b16 %v175
    %v807 = vunpack.c.h.b16 %v175
    %v808 = vunpack.c.l.b16 %v176
    %v809 = vunpack.c.h.b16 %v176
    %v810 = vunpack.c.l.b16 %v177
    %v811 = vunpack.c.h.b16 %v177
    %v812 = vunpack.c.l.b16 %v178
    %v813 = vunpack.c.h.b16 %v178
    %v814 = vunpack.c.l.b16 %v179
    %v815 = vunpack.c.h.b16 %v179
    %v816 = vunpack.c.l.b16 %v180
    %v817 = vunpack.c.h.b16 %v180
    %v818 = vunpack.c.l.b16 %v181
    %v819 = vunpack.c.h.b16 %v181
    %v820 = vunpack.c.l.b16 %v182
    %v821 = vunpack.c.h.b16 %v182
    %v822 = vunpack.c.l.b16 %v183
    %v823 = vunpack.c.h.b16 %v183
    %v824 = vunpack.c.l.b16 %v184
    %v825 = vunpack.c.h.b16 %v184
    %v826 = vunpack.c.l.b16 %v185
    %v827 = vunpack.c.h.b16 %v185
    %v828 = vunpack.c.l.b16 %v186
    %v829 = vunpack.c.h.b16 %v186
    %v830 = vunpack.c.l.b16 %v187
    %v831 = vunpack.c.h.b16 %v187
    %v832 = vunpack.c.l.b16 %v188
    %v833 = vunpack.c.h.b16 %v188
    %v834 = vunpack.c.l.b16 %v189
    %v835 = vunpack.c.h.b16 %v189
    %v836 = vunpack.c.l.b16 %v190
    %v837 = vunpack.c.h.b16 %v190
    %v838 = vunpack.c.l.b16 %v191
    %v839 = vunpack.c.h.b16 %v191
    %v840 = vunpack.c.l.b16 %v192
    %v841 = vunpack.c.h.b16 %v192
    %v842 = vunpack.c.l.b16 %v193
    %v843 = vunpack.c.h.b16 %v193
    %v844 = vunpack.c.l.b16 %v194
    %v845 = vunpack.c.h.b16 %v194
    %v846 = vunpack.c.l.b16 %v195
    %v847 = vunpack.c.h.b16 %v195
    %v848 = vunpack.c.l.b16 %v196
    %v849 = vunpack.c.h.b16 %v196
    %v850 = vunpack.c.l.b16 %v197
    %v851 = vunpack.c.h.b16 %v197
    %v852 = vunpack.c.l.b16 %v198
    %v853 = vunpack.c.h.b16 %v198
    %v854 = vunpack.c.l.b16 %v199
    %v855 = vunpack.c.h.b16 %v199
    %v856 = vunpack.c.l.b16 %v200
    %v857 = vunpack.c.h.b16 %v200
    %v858 = vunpack.c.l.b16 %v201
    %v859 = vunpack.c.h.b16 %v201
    %v860 = vunpack.c.l.b16 %v202
    %v861 = vunpack.c.h.b16 %v202
    %v862 = vunpack.c.l.b16 %v203
    %v863 = vunpack.c.h.b16 %v203
    %v864 = vunpack.c.l.b16 %v204
    %v865 = vunpack.c.h.b16 %v204
    %v866 = vunpack.c.l.b16 %v205
    %v867 = vunpack.c.h.b16 %v205
    %v868 = vunpack.c.l.b16 %v206
    %v869 = vunpack.c.h.b16 %v206
    %v870 = vunpack.c.l.b16 %v207
    %v871 = vunpack.c.h.b16 %v207
    %v872 = vunpack.c.l.b16 %v208
    %v873 = vunpack.c.h.b16 %v208
    %v874 = vunpack.c.l.b16 %v209
    %v875 = vunpack.c.h.b16 %v209
    %v876 = vunpack.c.l.b16 %v210
    %v877 = vunpack.c.h.b16 %v210
    %v878 = vunpack.c.l.b16 %v211
    %v879 = vunpack.c.h.b16 %v211
    %v880 = vunpack.c.l.b16 %v212
    %v881 = vunpack.c.h.b16 %v212
    %v882 = vunpack.c.l.b16 %v213
    %v883 = vunpack.c.h.b16 %v213
    %v884 = vunpack.c.l.b16 %v214
    %v885 = vunpack.c.h.b16 %v214
    %v886 = vunpack.c.l.b16 %v215
    %v887 = vunpack.c.h.b16 %v215
    %v888 = vunpack.c.l.b16 %v216
    %v889 = vunpack.c.h.b16 %v216
    %v890 = vunpack.c.l.b16 %v217
    %v891 = vunpack.c.h.b16 %v217
    %v892 = vunpack.c.l.b16 %v218
    %v893 = vunpack.c.h.b16 %v218
    %v894 = vunpack.c.l.b16 %v219
    %v895 = vunpack.c.h.b16 %v219
    %v896 = vunpack.c.l.b16 %v220
    %v897 = vunpack.c.h.b16 %v220
    %v898 = vunpack.c.l.b16 %v221
    %v899 = vunpack.c.h.b16 %v221
    %v900 = vunpack.c.l.b16 %v222
    %v901 = vunpack.c.h.b16 %v222
    %v902 = vunpack.c.l.b16 %v223
    %v903 = vunpack.c.h.b16 %v223
    %v904 = vunpack.c.l.b16 %v224
    %v905 = vunpack.c.h.b16 %v224
    %v906 = vunpack.c.l.b16 %v225
    %v907 = vunpack.c.h.b16 %v225
    %v908 = vunpack.c.l.b16 %v226
    %v909 = vunpack.c.h.b16 %v226
    %v910 = vunpack.c.l.b16 %v227
    %v911 = vunpack.c.h.b16 %v227
    %v912 = vunpack.c.l.b16 %v228
    %v913 = vunpack.c.h.b16 %v228
    %v914 = vunpack.c.l.b16 %v229
    %v915 = vunpack.c.h.b16 %v229
    %v916 = vunpack.c.l.b16 %v230
    %v917 = vunpack.c.h.b16 %v230
    %v918 = vunpack.c.l.b16 %v231
    %v919 = vunpack.c.h.b16 %v231
    %v920 = vunpack.c.l.b16 %v232
    %v921 = vunpack.c.h.b16 %v232
    %v922 = vunpack.c.l.b16 %v233
    %v923 = vunpack.c.h.b16 %v233
    %v924 = vunpack.c.l.b16 %v234
    %v925 = vunpack.c.h.b16 %v234
    %v926 = vunpack.c.l.b16 %v235
    %v927 = vunpack.c.h.b16 %v235
    %v928 = vunpack.c.l.b16 %v236
    %v929 = vunpack.c.h.b16 %v236
    %v930 = vunpack.c.l.b16 %v237
    %v931 = vunpack.c.h.b16 %v237
    %v932 = vunpack.c.l.b16 %v238
    %v933 = vunpack.c.h.b16 %v238
    %v934 = vunpack.c.l.b16 %v239
    %v935 = vunpack.c.h.b16 %v239
    %v936 = vunpack.c.l.b16 %v240
    %v937 = vunpack.c.h.b16 %v240
    %v938 = vunpack.c.l.b16 %v241
    %v939 = vunpack.c.h.b16 %v241
    %v940 = vunpack.c.l.b16 %v242
    %v941 = vunpack.c.h.b16 %v242
    %v942 = vunpack.c.l.b16 %v243
    %v943 = vunpack.c.h.b16 %v243
    %v944 = vunpack.c.l.b16 %v244
    %v945 = vunpack.c.h.b16 %v244
    %v946 = vunpack.c.l.b16 %v245
    %v947 = vunpack.c.h.b16 %v245
    %v948 = vunpack.c.l.b16 %v246
    %v949 = vunpack.c.h.b16 %v246
    %v950 = vunpack.c.l.b16 %v247
    %v951 = vunpack.c.h.b16 %v247
    %v952 = vunpack.c.l.b16 %v248
    %v953 = vunpack.c.h.b16 %v248
    %v954 = vunpack.c.l.b16 %v249
    %v955 = vunpack.c.h.b16 %v249
    %v956 = vunpack.c.l.b16 %v250
    %v957 = vunpack.c.h.b16 %v250
    %v958 = vunpack.c.l.b16 %v251
    %v959 = vunpack.c.h.b16 %v251
    %v960 = vunpack.c.l.b16 %v252
    %v961 = vunpack.c.h.b16 %v252
    %v962 = vunpack.c.l.b16 %v253
    %v963 = vunpack.c.h.b16 %v253
    %v964 = vunpack.c.l.b16 %v254
    %v965 = vunpack.c.h.b16 %v254
    %v966 = vunpack.c.l.b16 %v255
    %v967 = vunpack.c.h.b16 %v255
    %v968 = vunpack.c.l.b16 %v256
    %v969 = vunpack.c.h.b16 %v256
    %v970 = vunpack.c.l.b16 %v257
    %v971 = vunpack.c.h.b16 %v257
    %v972 = vunpack.c.l.b16 %v258
    %v973 = vunpack.c.h.b16 %v258
    %v974 = vunpack.c.l.b16 %v259
    %v975 = vunpack.c.h.b16 %v259
    %v976 = vunpack.c.l.b16 %v260
    %v977 = vunpack.c.h.b16 %v260
    %v978 = vunpack.c.l.b16 %v261
    %v979 = vunpack.c.h.b16 %v261
    %v980 = vunpack.c.l.b16 %v262
    %v981 = vunpack.c.h.b16 %v262
    %v982 = vunpack.c.l.b16 %v263
    %v983 = vunpack.c.h.b16 %v263
    %v984 = vunpack.c.l.b16 %v264
    %v985 = vunpack.c.h.b16 %v264
    %v986 = vunpack.c.l.b16 %v265
    %v987 = vunpack.c.h.b16 %v265
    %v988 = vunpack.c.l.b16 %v266
    %v989 = vunpack.c.h.b16 %v266
    %v990 = vunpack.c.l.b16 %v267
    %v991 = vunpack.c.h.b16 %v267
    %v992 = vunpack.c.l.b16 %v268
    %v993 = vunpack.c.h.b16 %v268
    %v994 = vunpack.c.l.b16 %v269
    %v995 = vunpack.c.h.b16 %v269
    %v996 = vunpack.c.l.b16 %v270
    %v997 = vunpack.c.h.b16 %v270
    %v998 = vunpack.c.l.b16 %v271
    %v999 = vunpack.c.h.b16 %v271
    %v1000 = vunpack.c.l.b16 %v272
    %v1001 = vunpack.c.h.b16 %v272
    %v1002 = vunpack.c.l.b16 %v273
    %v1003 = vunpack.c.h.b16 %v273
    %v1004 = vunpack.c.l.b16 %v274
    %v1005 = vunpack.c.h.b16 %v274
    %v1006 = vunpack.c.l.b16 %v275
    %v1007 = vunpack.c.h.b16 %v275
    %v1008 = vunpack.c.l.b16 %v276
    %v1009 = vunpack.c.h.b16 %v276
    %v1010 = vunpack.c.l.b16 %v277
    %v1011 = vunpack.c.h.b16 %v277
    %v1012 = vunpack.c.l.b16 %v278
    %v1013 = vunpack.c.h.b16 %v278
    %v1014 = vunpack.c.l.b16 %v279
    %v1015 = vunpack.c.h.b16 %v279
    %v1016 = vunpack.c.l.b16 %v280
    %v1017 = vunpack.c.h.b16 %v280
    %v1018 = vunpack.c.l.b16 %v281
    %v1019 = vunpack.c.h.b16 %v281
    %v1020 = vunpack.c.l.b16 %v282
    %v1021 = vunpack.c.h.b16 %v282
    %v1022 = vunpack.c.l.b16 %v283
    %v1023 = vunpack.c.h.b16 %v283
    %v1024 = vunpack.c.l.b16 %v284
    %v1025 = vunpack.c.h.b16 %v284
    %v1026 = vunpack.c.l.b16 %v285
    %v1027 = vunpack.c.h.b16 %v285
    %v1028 = vunpack.c.l.b16 %v286
    %v1029 = vunpack.c.h.b16 %v286
    %v1030 = vunpack.c.l.b16 %v287
    %v1031 = vunpack.c.h.b16 %v287
    %v1032 = vunpack.c.l.b16 %v288
    %v1033 = vunpack.c.h.b16 %v288
    %v1034 = vunpack.c.l.b16 %v289
    %v1035 = vunpack.c.h.b16 %v289
    %v1036 = vunpack.c.l.b16 %v290
    %v1037 = vunpack.c.h.b16 %v290
    %v1038 = vunpack.c.l.b16 %v291
    %v1039 = vunpack.c.h.b16 %v291
    %v1040 = vunpack.c.l.b16 %v292
    %v1041 = vunpack.c.h.b16 %v292
    %v1042 = vunpack.c.l.b16 %v293
    %v1043 = vunpack.c.h.b16 %v293
    %v1044 = vunpack.c.l.b16 %v294
    %v1045 = vunpack.c.h.b16 %v294
    %v1046 = vunpack.c.l.b16 %v295
    %v1047 = vunpack.c.h.b16 %v295
    %v1048 = vunpack.c.l.b16 %v296
    %v1049 = vunpack.c.h.b16 %v296
    %v1050 = vunpack.c.l.b16 %v297
    %v1051 = vunpack.c.h.b16 %v297
    %v1052 = vunpack.c.l.b16 %v298
    %v1053 = vunpack.c.h.b16 %v298
    %v1054 = vunpack.c.l.b16 %v299
    %v1055 = vunpack.c.h.b16 %v299
    %v1056 = vunpack.c.l.b16 %v300
    %v1057 = vunpack.c.h.b16 %v300
    %v1058 = vunpack.c.l.b16 %v301
    %v1059 = vunpack.c.h.b16 %v301
    %v1060 = vunpack.c.l.b16 %v302
    %v1061 = vunpack.c.h.b16 %v302
    %v1062 = vunpack.c.l.b16 %v303
    %v1063 = vunpack.c.h.b16 %v303
    %v1064 = vunpack.c.l.b16 %v304
    %v1065 = vunpack.c.h.b16 %v304
    %v1066 = vunpack.c.l.b16 %v305
    %v1067 = vunpack.c.h.b16 %v305
    %v1068 = vunpack.c.l.b16 %v306
    %v1069 = vunpack.c.h.b16 %v306
    %v1070 = vunpack.c.l.b16 %v307
    %v1071 = vunpack.c.h.b16 %v307
    %v1072 = vunpack.c.l.b16 %v308
    %v1073 = vunpack.c.h.b16 %v308
    %v1074 = vunpack.c.l.b16 %v309
    %v1075 = vunpack.c.h.b16 %v309
    %v1076 = vunpack.c.l.b16 %v310
    %v1077 = vunpack.c.h.b16 %v310
    %v1078 = vunpack.c.l.b16 %v311
    %v1079 = vunpack.c.h.b16 %v311
    %v1080 = vunpack.c.l.b16 %v312
    %v1081 = vunpack.c.h.b16 %v312
    %v1082 = vunpack.c.l.b16 %v313
    %v1083 = vunpack.c.h.b16 %v313
    %v1084 = vunpack.c.l.b16 %v314
    %v1085 = vunpack.c.h.b16 %v314
    %v1086 = vunpack.c.l.b16 %v315
    %v1087 = vunpack.c.h.b16 %v315
    %v1088 = vunpack.c.l.b16 %v316
    %v1089 = vunpack.c.h.b16 %v316
    %v1090 = vunpack.c.l.b16 %v317
    %v1091 = vunpack.c.h.b16 %v317
    %v1092 = vunpack.c.l.b16 %v318
    %v1093 = vunpack.c.h.b16 %v318
    %v1094 = vpack.c.b16 %v598, %v582
    %v1095 = vpack.c.b16 %v599, %v583
    %v1096 = vpack.c.b16 %v600, %v584
    %v1097 = vpack.c.b16 %v601, %v585
    %v1098 = vpack.c.b16 %v602, %v586
    %v1099 = vpack.c.b16 %v603, %v587
    %v1100 = vpack.c.b16 %v604, %v588
    %v1101 = vpack.c.b16 %v605, %v589
    %v1102 = vpack.c.b16 %v606, %v590
    %v1103 = vpack.c.b16 %v607, %v591
    %v1104 = vpack.c.b16 %v608, %v592
    %v1105 = vpack.c.b16 %v609, %v593
    %v1106 = vpack.c.b16 %v610, %v594
    %v1107 = vpack.c.b16 %v611, %v595
    %v1108 = vpack.c.b16 %v612, %v596
    %v1109 = vpack.c.b16 %v613, %v597
    %v1110 = vpack.c.b16 %v630, %v614
    %v1111 = vpack.c.b16 %v631, %v615
    %v1112 = vpack.c.b16 %v632, %v616
    %v1113 = vpack.c.b16 %v633, %v617
    %v1114 = vpack.c.b16 %v634, %v618
    %v1115 = vpack.c.b16 %v635, %v619
    %v1116 = vpack.c.b16 %v636, %v620
    %v1117 = vpack.c.b16 %v637, %v621
    %v1118 = vpack.c.b16 %v638, %v622
    %v1119 = vpack.c.b16 %v639, %v623
    %v1120 = vpack.c.b16 %v640, %v624
    %v1121 = vpack.c.b16 %v641, %v625
    %v1122 = vpack.c.b16 %v642, %v626
    %v1123 = vpack.c.b16 %v643, %v627
    %v1124 = vpack.c.b16 %v644, %v628
    %v1125 = vpack.c.b16 %v645, %v629
    %v1126 = vpack.c.b16 %v662, %v646
    %v1127 = vpack.c.b16 %v663, %v647
    %v1128 = vpack.c.b16 %v664, %v648
    %v1129 = vpack.c.b16 %v665, %v649
    %v1130 = vpack.c.b16 %v666, %v650
    %v1131 = vpack.c.b16 %v667, %v651
    %v1132 = vpack.c.b16 %v668, %v652
    %v1133 = vpack.c.b16 %v669, %v653
    %v1134 = vpack.c.b16 %v670, %v654
    %v1135 = vpack.c.b16 %v671, %v655
    %v1136 = vpack.c.b16 %v672, %v656
    %v1137 = vpack.c.b16 %v673, %v657
    %v1138 = vpack.c.b16 %v674, %v658
    %v1139 = vpack.c.b16 %v675, %v659
    %v1140 = vpack.c.b16 %v676, %v660
    %v1141 = vpack.c.b16 %v677, %v661
    %v1142 = vpack.c.b16 %v694, %v678
    %v1143 = vpack.c.b16 %v695, %v679
    %v1144 = vpack.c.b16 %v696, %v680
    %v1145 = vpack.c.b16 %v697, %v681
    %v1146 = vpack.c.b16 %v698, %v682
    %v1147 = vpack.c.b16 %v699, %v683
    %v1148 = vpack.c.b16 %v700, %v684
    %v1149 = vpack.c.b16 %v701, %v685
    %v1150 = vpack.c.b16 %v702, %v686
    %v1151 = vpack.c.b16 %v703, %v687
    %v1152 = vpack.c.b16 %v704, %v688
    %v1153 = vpack.c.b16 %v705, %v689
    %v1154 = vpack.c.b16 %v706, %v690
    %v1155 = vpack.c.b16 %v707, %v691
    %v1156 = vpack.c.b16 %v708, %v692
    %v1157 = vpack.c.b16 %v709, %v693
    %v1158 = vpack.c.b16 %v726, %v710
    %v1159 = vpack.c.b16 %v727, %v711
    %v1160 = vpack.c.b16 %v728, %v712
    %v1161 = vpack.c.b16 %v729, %v713
    %v1162 = vpack.c.b16 %v730, %v714
    %v1163 = vpack.c.b16 %v731, %v715
    %v1164 = vpack.c.b16 %v732, %v716
    %v1165 = vpack.c.b16 %v733, %v717
    %v1166 = vpack.c.b16 %v734, %v718
    %v1167 = vpack.c.b16 %v735, %v719
    %v1168 = vpack.c.b16 %v736, %v720
    %v1169 = vpack.c.b16 %v737, %v721
    %v1170 = vpack.c.b16 %v738, %v722
    %v1171 = vpack.c.b16 %v739, %v723
    %v1172 = vpack.c.b16 %v740, %v724
    %v1173 = vpack.c.b16 %v741, %v725
    %v1174 = vpack.c.b16 %v758, %v742
    %v1175 = vpack.c.b16 %v759, %v743
    %v1176 = vpack.c.b16 %v760, %v744
    %v1177 = vpack.c.b16 %v761, %v745
    %v1178 = vpack.c.b16 %v762, %v746
    %v1179 = vpack.c.b16 %v763, %v747
    %v1180 = vpack.c.b16 %v764, %v748
    %v1181 = vpack.c.b16 %v765, %v749
    %v1182 = vpack.c.b16 %v766, %v750
    %v1183 = vpack.c.b16 %v767, %v751
    %v1184 = vpack.c.b16 %v768, %v752
    %v1185 = vpack.c.b16 %v769, %v753
    %v1186 = vpack.c.b16 %v770, %v754
    %v1187 = vpack.c.b16 %v771, %v755
    %v1188 = vpack.c.b16 %v772, %v756
    %v1189 = vpack.c.b16 %v773, %v757
    %v1190 = vpack.c.b16 %v790, %v774
    %v1191 = vpack.c.b16 %v791, %v775
    %v1192 = vpack.c.b16 %v792, %v776
    %v1193 = vpack.c.b16 %v793, %v777
    %v1194 = vpack.c.b16 %v794, %v778
    %v1195 = vpack.c.b16 %v795, %v779
    %v1196 = vpack.c.b16 %v796, %v780
    %v1197 = vpack.c.b16 %v797, %v781
    %v1198 = vpack.c.b16 %v798, %v782
    %v1199 = vpack.c.b16 %v799, %v783
    %v1200 = vpack.c.b16 %v800, %v784
    %v1201 = vpack.c.b16 %v801, %v785
    %v1202 = vpack.c.b16 %v802, %v786
    %v1203 = vpack.c.b16 %v803, %v787
    %v1204 = vpack.c.b16 %v804, %v788
    %v1205 = vpack.c.b16 %v805, %v789
    %v1206 = vpack.c.b16 %v822, %v806
    %v1207 = vpack.c.b16 %v823, %v807
    %v1208 = vpack.c.b16 %v824, %v808
    %v1209 = vpack.c.b16 %v825, %v809
    %v1210 = vpack.c.b16 %v826, %v810
    %v1211 = vpack.c.b16 %v827, %v811
    %v1212 = vpack.c.b16 %v828, %v812
    %v1213 = vpack.c.b16 %v829, %v813
    %v1214 = vpack.c.b16 %v830, %v814
    %v1215 = vpack.c.b16 %v831, %v815
    %v1216 = vpack.c.b16 %v832, %v816
    %v1217 = vpack.c.b16 %v833, %v817
    %v1218 = vpack.c.b16 %v834, %v818
    %v1219 = vpack.c.b16 %v835, %v819
    %v1220 = vpack.c.b16 %v836, %v820
    %v1221 = vpack.c.b16 %v837, %v821
    %v1222 = vpack.c.b16 %v854, %v838
    %v1223 = vpack.c.b16 %v855, %v839
    %v1224 = vpack.c.b16 %v856, %v840
    %v1225 = vpack.c.b16 %v857, %v841
    %v1226 = vpack.c.b16 %v858, %v842
    %v1227 = vpack.c.b16 %v859, %v843
    %v1228 = vpack.c.b16 %v860, %v844
    %v1229 = vpack.c.b16 %v861, %v845
    %v1230 = vpack.c.b16 %v862, %v846
    %v1231 = vpack.c.b16 %v863, %v847
    %v1232 = vpack.c.b16 %v864, %v848
    %v1233 = vpack.c.b16 %v865, %v849
    %v1234 = vpack.c.b16 %v866, %v850
    %v1235 = vpack.c.b16 %v867, %v851
    %v1236 = vpack.c.b16 %v868, %v852
    %v1237 = vpack.c.b16 %v869, %v853
    %v1238 = vpack.c.b16 %v886, %v870
    %v1239 = vpack.c.b16 %v887, %v871
    %v1240 = vpack.c.b16 %v888, %v872
    %v1241 = vpack.c.b16 %v889, %v873
    %v1242 = vpack.c.b16 %v890, %v874
    %v1243 = vpack.c.b16 %v891, %v875
    %v1244 = vpack.c.b16 %v892, %v876
    %v1245 = vpack.c.b16 %v893, %v877
    %v1246 = vpack.c.b16 %v894, %v878
    %v1247 = vpack.c.b16 %v895, %v879
    %v1248 = vpack.c.b16 %v896, %v880
    %v1249 = vpack.c.b16 %v897, %v881
    %v1250 = vpack.c.b16 %v898, %v882
    %v1251 = vpack.c.b16 %v899, %v883
    %v1252 = vpack.c.b16 %v900, %v884
    %v1253 = vpack.c.b16 %v901, %v885
    %v1254 = vpack.c.b16 %v918, %v902
    %v1255 = vpack.c.b16 %v919, %v903
    %v1256 = vpack.c.b16 %v920, %v904
    %v1257 = vpack.c.b16 %v921, %v905
    %v1258 = vpack.c.b16 %v922, %v906
    %v1259 = vpack.c.b16 %v923, %v907
    %v1260 = vpack.c.b16 %v924, %v908
    %v1261 = vpack.c.b16 %v925, %v909
    %v1262 = vpack.c.b16 %v926, %v910
    %v1263 = vpack.c.b16 %v927, %v911
    %v1264 = vpack.c.b16 %v928, %v912
    %v1265 = vpack.c.b16 %v929, %v913
    %v1266 = vpack.c.b16 %v930, %v914
    %v1267 = vpack.c.b16 %v931, %v915
    %v1268 = vpack.c.b16 %v932, %v916
    %v1269 = vpack.c.b16 %v933, %v917
    %v1270 = vpack.c.b16 %v950, %v934
    %v1271 = vpack.c.b16 %v951, %v935
    %v1272 = vpack.c.b16 %v952, %v936
    %v1273 = vpack.c.b16 %v953, %v937
    %v1274 = vpack.c.b16 %v954, %v938
    %v1275 = vpack.c.b16 %v955, %v939
    %v1276 = vpack.c.b16 %v956, %v940
    %v1277 = vpack.c.b16 %v957, %v941
    %v1278 = vpack.c.b16 %v958, %v942
    %v1279 = vpack.c.b16 %v959, %v943
    %v1280 = vpack.c.b16 %v960, %v944
    %v1281 = vpack.c.b16 %v961, %v945
    %v1282 = vpack.c.b16 %v962, %v946
    %v1283 = vpack.c.b16 %v963, %v947
    %v1284 = vpack.c.b16 %v964, %v948
    %v1285 = vpack.c.b16 %v965, %v949
    %v1286 = vpack.c.b16 %v982, %v966
    %v1287 = vpack.c.b16 %v983, %v967
    %v1288 = vpack.c.b16 %v984, %v968
    %v1289 = vpack.c.b16 %v985, %v969
    %v1290 = vpack.c.b16 %v986, %v970
    %v1291 = vpack.c.b16 %v987, %v971
    %v1292 = vpack.c.b16 %v988, %v972
    %v1293 = vpack.c.b16 %v989, %v973
    %v1294 = vpack.c.b16 %v990, %v974
    %v1295 = vpack.c.b16 %v991, %v975
    %v1296 = vpack.c.b16 %v992, %v976
    %v1297 = vpack.c.b16 %v993, %v977
    %v1298 = vpack.c.b16 %v994, %v978
    %v1299 = vpack.c.b16 %v995, %v979
    %v1300 = vpack.c.b16 %v996, %v980
    %v1301 = vpack.c.b16 %v997, %v981
    %v1302 = vpack.c.b16 %v1014, %v998
    %v1303 = vpack.c.b16 %v1015, %v999
    %v1304 = vpack.c.b16 %v1016, %v1000
    %v1305 = vpack.c.b16 %v1017, %v1001
    %v1306 = vpack.c.b16 %v1018, %v1002
    %v1307 = vpack.c.b16 %v1019, %v1003
    %v1308 = vpack.c.b16 %v1020, %v1004
    %v1309 = vpack.c.b16 %v1021, %v1005
    %v1310 = vpack.c.b16 %v1022, %v1006
    %v1311 = vpack.c.b16 %v1023, %v1007
    %v1312 = vpack.c.b16 %v1024, %v1008
    %v1313 = vpack.c.b16 %v1025, %v1009
    %v1314 = vpack.c.b16 %v1026, %v1010
    %v1315 = vpack.c.b16 %v1027, %v1011
    %v1316 = vpack.c.b16 %v1028, %v1012
    %v1317 = vpack.c.b16 %v1029, %v1013
    %v1318 = vpack.c.b16 %v1046, %v1030
    %v1319 = vpack.c.b16 %v1047, %v1031
    %v1320 = vpack.c.b16 %v1048, %v1032
    %v1321 = vpack.c.b16 %v1049, %v1033
    %v1322 = vpack.c.b16 %v1050, %v1034
    %v1323 = vpack.c.b16 %v1051, %v1035
    %v1324 = vpack.c.b16 %v1052, %v1036
    %v1325 = vpack.c.b16 %v1053, %v1037
    %v1326 = vpack.c.b16 %v1054, %v1038
    %v1327 = vpack.c.b16 %v1055, %v1039
    %v1328 = vpack.c.b16 %v1056, %v1040
    %v1329 = vpack.c.b16 %v1057, %v1041
    %v1330 = vpack.c.b16 %v1058, %v1042
    %v1331 = vpack.c.b16 %v1059, %v1043
    %v1332 = vpack.c.b16 %v1060, %v1044
    %v1333 = vpack.c.b16 %v1061, %v1045
    %v1334 = vpack.c.b16 %v1078, %v1062
    %v1335 = vpack.c.b16 %v1079, %v1063
    %v1336 = vpack.c.b16 %v1080, %v1064
    %v1337 = vpack.c.b16 %v1081, %v1065
    %v1338 = vpack.c.b16 %v1082, %v1066
    %v1339 = vpack.c.b16 %v1083, %v1067
    %v1340 = vpack.c.b16 %v1084, %v1068
    %v1341 = vpack.c.b16 %v1085, %v1069
    %v1342 = vpack.c.b16 %v1086, %v1070
    %v1343 = vpack.c.b16 %v1087, %v1071
    %v1344 = vpack.c.b16 %v1088, %v1072
    %v1345 = vpack.c.b16 %v1089, %v1073
    %v1346 = vpack.c.b16 %v1090, %v1074
    %v1347 = vpack.c.b16 %v1091, %v1075
    %v1348 = vpack.c.b16 %v1092, %v1076
    %v1349 = vpack.c.b16 %v1093, %v1077
    %1606 = vmatprep.subr.bf16.mxu0 %v1095
    %1607 = vmatpush1.bf16.msra.mxu0 %v1094
    %1608 = vmatprep.subr.bf16.mxu0 %v1111
    %1609 = vmatpush1.bf16.msra.mxu0 %v1110
    %1610 = vmatprep.subr.bf16.mxu0 %v1127
    %1611 = vmatpush1.bf16.msra.mxu0 %v1126
    %1612 = vmatprep.subr.bf16.mxu0 %v1143
    %1613 = vmatpush1.bf16.msra.mxu0 %v1142
    %1614 = vmatprep.subr.bf16.mxu0 %v1159
    %1615 = vmatpush1.bf16.msra.mxu0 %v1158
    %1616 = vmatprep.subr.bf16.mxu0 %v1175
    %1617 = vmatpush1.bf16.msra.mxu0 %v1174
    %1618 = vmatprep.subr.bf16.mxu0 %v1191
    %1619 = vmatpush1.bf16.msra.mxu0 %v1190
    %1620 = vmatprep.subr.bf16.mxu0 %v1207
    %1621 = vmatpush1.bf16.msra.mxu0 %v1206
    %1622 = vmatprep.subr.bf16.mxu0 %v1223
    %1623 = vmatpush1.bf16.msra.mxu0 %v1222
    %1624 = vmatprep.subr.bf16.mxu0 %v1239
    %1625 = vmatpush1.bf16.msra.mxu0 %v1238
    %1626 = vmatprep.subr.bf16.mxu0 %v1255
    %1627 = vmatpush1.bf16.msra.mxu0 %v1254
    %1628 = vmatprep.subr.bf16.mxu0 %v1271
    %1629 = vmatpush1.bf16.msra.mxu0 %v1270
    %1630 = vmatprep.subr.bf16.mxu0 %v1287
    %1631 = vmatpush1.bf16.msra.mxu0 %v1286
    %1632 = vmatprep.subr.bf16.mxu0 %v1303
    %1633 = vmatpush1.bf16.msra.mxu0 %v1302
    %1634 = vmatprep.subr.bf16.mxu0 %v1319
    %1635 = vmatpush1.bf16.msra.mxu0 %v1318
    %1636 = vmatprep.subr.bf16.mxu0 %v1335
    %1637 = vmatpush1.bf16.msra.mxu0 %v1334
    %1638 = vmatprep.mubr.bf16.mxu0 %v323
    %1639 = vmatmul.mubr.bf16.gmra.mrb[0].mxu0 %v322
    %v1640 = vpop.f32.mrb[0].mxu0
    %v1641 = vadd.f32 0.0, %v1640
    %v1642 = vpop.f32.mrb[0].mxu0
    %v1643 = vadd.f32 0.0, %v1642
    %v1644 = vpop.f32.mrb[0].mxu0
    %v1645 = vpop.f32.mrb[0].mxu0
    %1646 = vdwg.mxu0
    %1647 = vmatprep.subr.bf16.mxu0 %v1097
    %1648 = vmatpush1.bf16.msra.mxu0 %v1096
    %1649 = vmatprep.subr.bf16.mxu0 %v1113
    %1650 = vmatpush1.bf16.msra.mxu0 %v1112
    %1651 = vmatprep.subr.bf16.mxu0 %v1129
    %1652 = vmatpush1.bf16.msra.mxu0 %v1128
    %1653 = vmatprep.subr.bf16.mxu0 %v1145
    %1654 = vmatpush1.bf16.msra.mxu0 %v1144
    %1655 = vmatprep.subr.bf16.mxu0 %v1161
    %1656 = vmatpush1.bf16.msra.mxu0 %v1160
    %1657 = vmatprep.subr.bf16.mxu0 %v1177
    %1658 = vmatpush1.bf16.msra.mxu0 %v1176
    %1659 = vmatprep.subr.bf16.mxu0 %v1193
    %1660 = vmatpush1.bf16.msra.mxu0 %v1192
    %1661 = vmatprep.subr.bf16.mxu0 %v1209
    %1662 = vmatpush1.bf16.msra.mxu0 %v1208
    %1663 = vmatprep.subr.bf16.mxu0 %v1225
    %1664 = vmatpush1.bf16.msra.mxu0 %v1224
    %1665 = vmatprep.subr.bf16.mxu0 %v1241
    %1666 = vmatpush1.bf16.msra.mxu0 %v1240
    %1667 = vmatprep.subr.bf16.mxu0 %v1257
    %1668 = vmatpush1.bf16.msra.mxu0 %v1256
    %1669 = vmatprep.subr.bf16.mxu0 %v1273
    %1670 = vmatpush1.bf16.msra.mxu0 %v1272
    %1671 = vmatprep.subr.bf16.mxu0 %v1289
    %1672 = vmatpush1.bf16.msra.mxu0 %v1288
    %1673 = vmatprep.subr.bf16.mxu0 %v1305
    %1674 = vmatpush1.bf16.msra.mxu0 %v1304
    %1675 = vmatprep.subr.bf16.mxu0 %v1321
    %1676 = vmatpush1.bf16.msra.mxu0 %v1320
    %1677 = vmatprep.subr.bf16.mxu0 %v1337
    %1678 = vmatpush1.bf16.msra.mxu0 %v1336
    %1679 = vmatprep.mubr.bf16.mxu0 %v323
    %1680 = vmatmul.mubr.bf16.gmra.mrb[0].mxu0 %v322
    %v1681 = vpop.f32.mrb[0].mxu0
    %v1682 = vadd.f32 0.0, %v1681
    %v1683 = vpop.f32.mrb[0].mxu0
    %v1684 = vadd.f32 0.0, %v1683
    %v1685 = vpop.f32.mrb[0].mxu0
    %v1686 = vpop.f32.mrb[0].mxu0
    %1687 = vdwg.mxu0
    %1688 = vmatprep.subr.bf16.mxu0 %v1099
    %1689 = vmatpush1.bf16.msra.mxu0 %v1098
    %1690 = vmatprep.subr.bf16.mxu0 %v1115
    %1691 = vmatpush1.bf16.msra.mxu0 %v1114
    %1692 = vmatprep.subr.bf16.mxu0 %v1131
    %1693 = vmatpush1.bf16.msra.mxu0 %v1130
    %1694 = vmatprep.subr.bf16.mxu0 %v1147
    %1695 = vmatpush1.bf16.msra.mxu0 %v1146
    %1696 = vmatprep.subr.bf16.mxu0 %v1163
    %1697 = vmatpush1.bf16.msra.mxu0 %v1162
    %1698 = vmatprep.subr.bf16.mxu0 %v1179
    %1699 = vmatpush1.bf16.msra.mxu0 %v1178
    %1700 = vmatprep.subr.bf16.mxu0 %v1195
    %1701 = vmatpush1.bf16.msra.mxu0 %v1194
    %1702 = vmatprep.subr.bf16.mxu0 %v1211
    %1703 = vmatpush1.bf16.msra.mxu0 %v1210
    %1704 = vmatprep.subr.bf16.mxu0 %v1227
    %1705 = vmatpush1.bf16.msra.mxu0 %v1226
    %1706 = vmatprep.subr.bf16.mxu0 %v1243
    %1707 = vmatpush1.bf16.msra.mxu0 %v1242
    %1708 = vmatprep.subr.bf16.mxu0 %v1259
    %1709 = vmatpush1.bf16.msra.mxu0 %v1258
    %1710 = vmatprep.subr.bf16.mxu0 %v1275
    %1711 = vmatpush1.bf16.msra.mxu0 %v1274
    %1712 = vmatprep.subr.bf16.mxu0 %v1291
    %1713 = vmatpush1.bf16.msra.mxu0 %v1290
    %1714 = vmatprep.subr.bf16.mxu0 %v1307
    %1715 = vmatpush1.bf16.msra.mxu0 %v1306
    %1716 = vmatprep.subr.bf16.mxu0 %v1323
    %1717 = vmatpush1.bf16.msra.mxu0 %v1322
    %1718 = vmatprep.subr.bf16.mxu0 %v1339
    %1719 = vmatpush1.bf16.msra.mxu0 %v1338
    %1720 = vmatprep.mubr.bf16.mxu0 %v323
    %1721 = vmatmul.mubr.bf16.gmra.mrb[0].mxu0 %v322
    %v1722 = vpop.f32.mrb[0].mxu0
    %v1723 = vadd.f32 0.0, %v1722
    %v1724 = vpop.f32.mrb[0].mxu0
    %v1725 = vadd.f32 0.0, %v1724
    %v1726 = vpop.f32.mrb[0].mxu0
    %v1727 = vpop.f32.mrb[0].mxu0
    %1728 = vdwg.mxu0
    %1729 = vmatprep.subr.bf16.mxu0 %v1101
    %1730 = vmatpush1.bf16.msra.mxu0 %v1100
    %1731 = vmatprep.subr.bf16.mxu0 %v1117
    %1732 = vmatpush1.bf16.msra.mxu0 %v1116
    %1733 = vmatprep.subr.bf16.mxu0 %v1133
    %1734 = vmatpush1.bf16.msra.mxu0 %v1132
    %1735 = vmatprep.subr.bf16.mxu0 %v1149
    %1736 = vmatpush1.bf16.msra.mxu0 %v1148
    %1737 = vmatprep.subr.bf16.mxu0 %v1165
    %1738 = vmatpush1.bf16.msra.mxu0 %v1164
    %1739 = vmatprep.subr.bf16.mxu0 %v1181
    %1740 = vmatpush1.bf16.msra.mxu0 %v1180
    %1741 = vmatprep.subr.bf16.mxu0 %v1197
    %1742 = vmatpush1.bf16.msra.mxu0 %v1196
    %1743 = vmatprep.subr.bf16.mxu0 %v1213
    %1744 = vmatpush1.bf16.msra.mxu0 %v1212
    %1745 = vmatprep.subr.bf16.mxu0 %v1229
    %1746 = vmatpush1.bf16.msra.mxu0 %v1228
    %1747 = vmatprep.subr.bf16.mxu0 %v1245
    %1748 = vmatpush1.bf16.msra.mxu0 %v1244
    %1749 = vmatprep.subr.bf16.mxu0 %v1261
    %1750 = vmatpush1.bf16.msra.mxu0 %v1260
    %1751 = vmatprep.subr.bf16.mxu0 %v1277
    %1752 = vmatpush1.bf16.msra.mxu0 %v1276
    %1753 = vmatprep.subr.bf16.mxu0 %v1293
    %1754 = vmatpush1.bf16.msra.mxu0 %v1292
    %1755 = vmatprep.subr.bf16.mxu0 %v1309
    %1756 = vmatpush1.bf16.msra.mxu0 %v1308
    %1757 = vmatprep.subr.bf16.mxu0 %v1325
    %1758 = vmatpush1.bf16.msra.mxu0 %v1324
    %1759 = vmatprep.subr.bf16.mxu0 %v1341
    %1760 = vmatpush1.bf16.msra.mxu0 %v1340
    %1761 = vmatprep.mubr.bf16.mxu0 %v323
    %1762 = vmatmul.mubr.bf16.gmra.mrb[0].mxu0 %v322
    %v1763 = vpop.f32.mrb[0].mxu0
    %v1764 = vadd.f32 0.0, %v1763
    %v1765 = vpop.f32.mrb[0].mxu0
    %v1766 = vadd.f32 0.0, %v1765
    %v1767 = vpop.f32.mrb[0].mxu0
    %v1768 = vpop.f32.mrb[0].mxu0
    %1769 = vdwg.mxu0
    %1770 = vmatprep.subr.bf16.mxu0 %v1103
    %1771 = vmatpush1.bf16.msra.mxu0 %v1102
    %1772 = vmatprep.subr.bf16.mxu0 %v1119
    %1773 = vmatpush1.bf16.msra.mxu0 %v1118
    %1774 = vmatprep.subr.bf16.mxu0 %v1135
    %1775 = vmatpush1.bf16.msra.mxu0 %v1134
    %1776 = vmatprep.subr.bf16.mxu0 %v1151
    %1777 = vmatpush1.bf16.msra.mxu0 %v1150
    %1778 = vmatprep.subr.bf16.mxu0 %v1167
    %1779 = vmatpush1.bf16.msra.mxu0 %v1166
    %1780 = vmatprep.subr.bf16.mxu0 %v1183
    %1781 = vmatpush1.bf16.msra.mxu0 %v1182
    %1782 = vmatprep.subr.bf16.mxu0 %v1199
    %1783 = vmatpush1.bf16.msra.mxu0 %v1198
    %1784 = vmatprep.subr.bf16.mxu0 %v1215
    %1785 = vmatpush1.bf16.msra.mxu0 %v1214
    %1786 = vmatprep.subr.bf16.mxu0 %v1231
    %1787 = vmatpush1.bf16.msra.mxu0 %v1230
    %1788 = vmatprep.subr.bf16.mxu0 %v1247
    %1789 = vmatpush1.bf16.msra.mxu0 %v1246
    %1790 = vmatprep.subr.bf16.mxu0 %v1263
    %1791 = vmatpush1.bf16.msra.mxu0 %v1262
    %1792 = vmatprep.subr.bf16.mxu0 %v1279
    %1793 = vmatpush1.bf16.msra.mxu0 %v1278
    %1794 = vmatprep.subr.bf16.mxu0 %v1295
    %1795 = vmatpush1.bf16.msra.mxu0 %v1294
    %1796 = vmatprep.subr.bf16.mxu0 %v1311
    %1797 = vmatpush1.bf16.msra.mxu0 %v1310
    %1798 = vmatprep.subr.bf16.mxu0 %v1327
    %1799 = vmatpush1.bf16.msra.mxu0 %v1326
    %1800 = vmatprep.subr.bf16.mxu0 %v1343
    %1801 = vmatpush1.bf16.msra.mxu0 %v1342
    %1802 = vmatprep.mubr.bf16.mxu0 %v323
    %1803 = vmatmul.mubr.bf16.gmra.mrb[0].mxu0 %v322
    %v1804 = vpop.f32.mrb[0].mxu0
    %v1805 = vadd.f32 0.0, %v1804
    %v1806 = vpop.f32.mrb[0].mxu0
    %v1807 = vadd.f32 0.0, %v1806
    %v1808 = vpop.f32.mrb[0].mxu0
    %v1809 = vpop.f32.mrb[0].mxu0
    %1810 = vdwg.mxu0
    %1811 = vmatprep.subr.bf16.mxu0 %v1105
    %1812 = vmatpush1.bf16.msra.mxu0 %v1104
    %1813 = vmatprep.subr.bf16.mxu0 %v1121
    %1814 = vmatpush1.bf16.msra.mxu0 %v1120
    %1815 = vmatprep.subr.bf16.mxu0 %v1137
    %1816 = vmatpush1.bf16.msra.mxu0 %v1136
    %1817 = vmatprep.subr.bf16.mxu0 %v1153
    %1818 = vmatpush1.bf16.msra.mxu0 %v1152
    %1819 = vmatprep.subr.bf16.mxu0 %v1169
    %1820 = vmatpush1.bf16.msra.mxu0 %v1168
    %1821 = vmatprep.subr.bf16.mxu0 %v1185
    %1822 = vmatpush1.bf16.msra.mxu0 %v1184
    %1823 = vmatprep.subr.bf16.mxu0 %v1201
    %1824 = vmatpush1.bf16.msra.mxu0 %v1200
    %1825 = vmatprep.subr.bf16.mxu0 %v1217
    %1826 = vmatpush1.bf16.msra.mxu0 %v1216
    %1827 = vmatprep.subr.bf16.mxu0 %v1233
    %1828 = vmatpush1.bf16.msra.mxu0 %v1232
    %1829 = vmatprep.subr.bf16.mxu0 %v1249
    %1830 = vmatpush1.bf16.msra.mxu0 %v1248
    %1831 = vmatprep.subr.bf16.mxu0 %v1265
    %1832 = vmatpush1.bf16.msra.mxu0 %v1264
    %1833 = vmatprep.subr.bf16.mxu0 %v1281
    %1834 = vmatpush1.bf16.msra.mxu0 %v1280
    %1835 = vmatprep.subr.bf16.mxu0 %v1297
    %1836 = vmatpush1.bf16.msra.mxu0 %v1296
    %1837 = vmatprep.subr.bf16.mxu0 %v1313
    %1838 = vmatpush1.bf16.msra.mxu0 %v1312
    %1839 = vmatprep.subr.bf16.mxu0 %v1329
    %1840 = vmatpush1.bf16.msra.mxu0 %v1328
    %1841 = vmatprep.subr.bf16.mxu0 %v1345
    %1842 = vmatpush1.bf16.msra.mxu0 %v1344
    %1843 = vmatprep.mubr.bf16.mxu0 %v323
    %1844 = vmatmul.mubr.bf16.gmra.mrb[0].mxu0 %v322
    %v1845 = vpop.f32.mrb[0].mxu0
    %v1846 = vadd.f32 0.0, %v1845
    %v1847 = vpop.f32.mrb[0].mxu0
    %v1848 = vadd.f32 0.0, %v1847
    %v1849 = vpop.f32.mrb[0].mxu0
    %v1850 = vpop.f32.mrb[0].mxu0
    %1851 = vdwg.mxu0
    %1852 = vmatprep.subr.bf16.mxu0 %v1107
    %1853 = vmatpush1.bf16.msra.mxu0 %v1106
    %1854 = vmatprep.subr.bf16.mxu0 %v1123
    %1855 = vmatpush1.bf16.msra.mxu0 %v1122
    %1856 = vmatprep.subr.bf16.mxu0 %v1139
    %1857 = vmatpush1.bf16.msra.mxu0 %v1138
    %1858 = vmatprep.subr.bf16.mxu0 %v1155
    %1859 = vmatpush1.bf16.msra.mxu0 %v1154
    %1860 = vmatprep.subr.bf16.mxu0 %v1171
    %1861 = vmatpush1.bf16.msra.mxu0 %v1170
    %1862 = vmatprep.subr.bf16.mxu0 %v1187
    %1863 = vmatpush1.bf16.msra.mxu0 %v1186
    %1864 = vmatprep.subr.bf16.mxu0 %v1203
    %1865 = vmatpush1.bf16.msra.mxu0 %v1202
    %1866 = vmatprep.subr.bf16.mxu0 %v1219
    %1867 = vmatpush1.bf16.msra.mxu0 %v1218
    %1868 = vmatprep.subr.bf16.mxu0 %v1235
    %1869 = vmatpush1.bf16.msra.mxu0 %v1234
    %1870 = vmatprep.subr.bf16.mxu0 %v1251
    %1871 = vmatpush1.bf16.msra.mxu0 %v1250
    %1872 = vmatprep.subr.bf16.mxu0 %v1267
    %1873 = vmatpush1.bf16.msra.mxu0 %v1266
    %1874 = vmatprep.subr.bf16.mxu0 %v1283
    %1875 = vmatpush1.bf16.msra.mxu0 %v1282
    %1876 = vmatprep.subr.bf16.mxu0 %v1299
    %1877 = vmatpush1.bf16.msra.mxu0 %v1298
    %1878 = vmatprep.subr.bf16.mxu0 %v1315
    %1879 = vmatpush1.bf16.msra.mxu0 %v1314
    %1880 = vmatprep.subr.bf16.mxu0 %v1331
    %1881 = vmatpush1.bf16.msra.mxu0 %v1330
    %1882 = vmatprep.subr.bf16.mxu0 %v1347
    %1883 = vmatpush1.bf16.msra.mxu0 %v1346
    %1884 = vmatprep.mubr.bf16.mxu0 %v323
    %1885 = vmatmul.mubr.bf16.gmra.mrb[0].mxu0 %v322
    %v1886 = vpop.f32.mrb[0].mxu0
    %v1887 = vadd.f32 0.0, %v1886
    %v1888 = vpop.f32.mrb[0].mxu0
    %v1889 = vadd.f32 0.0, %v1888
    %v1890 = vpop.f32.mrb[0].mxu0
    %v1891 = vpop.f32.mrb[0].mxu0
    %1892 = vdwg.mxu0
    %1893 = vmatprep.subr.bf16.mxu0 %v1109
    %1894 = vmatpush1.bf16.msra.mxu0 %v1108
    %1895 = vmatprep.subr.bf16.mxu0 %v1125
    %1896 = vmatpush1.bf16.msra.mxu0 %v1124
    %1897 = vmatprep.subr.bf16.mxu0 %v1141
    %1898 = vmatpush1.bf16.msra.mxu0 %v1140
    %1899 = vmatprep.subr.bf16.mxu0 %v1157
    %1900 = vmatpush1.bf16.msra.mxu0 %v1156
    %1901 = vmatprep.subr.bf16.mxu0 %v1173
    %1902 = vmatpush1.bf16.msra.mxu0 %v1172
    %1903 = vmatprep.subr.bf16.mxu0 %v1189
    %1904 = vmatpush1.bf16.msra.mxu0 %v1188
    %1905 = vmatprep.subr.bf16.mxu0 %v1205
    %1906 = vmatpush1.bf16.msra.mxu0 %v1204
    %1907 = vmatprep.subr.bf16.mxu0 %v1221
    %1908 = vmatpush1.bf16.msra.mxu0 %v1220
    %1909 = vmatprep.subr.bf16.mxu0 %v1237
    %1910 = vmatpush1.bf16.msra.mxu0 %v1236
    %1911 = vmatprep.subr.bf16.mxu0 %v1253
    %1912 = vmatpush1.bf16.msra.mxu0 %v1252
    %1913 = vmatprep.subr.bf16.mxu0 %v1269
    %1914 = vmatpush1.bf16.msra.mxu0 %v1268
    %1915 = vmatprep.subr.bf16.mxu0 %v1285
    %1916 = vmatpush1.bf16.msra.mxu0 %v1284
    %1917 = vmatprep.subr.bf16.mxu0 %v1301
    %1918 = vmatpush1.bf16.msra.mxu0 %v1300
    %1919 = vmatprep.subr.bf16.mxu0 %v1317
    %1920 = vmatpush1.bf16.msra.mxu0 %v1316
    %1921 = vmatprep.subr.bf16.mxu0 %v1333
    %1922 = vmatpush1.bf16.msra.mxu0 %v1332
    %1923 = vmatprep.subr.bf16.mxu0 %v1349
    %1924 = vmatpush1.bf16.msra.mxu0 %v1348
    %1925 = vmatprep.mubr.bf16.mxu0 %v323
    %1926 = vmatmul.mubr.bf16.gmra.mrb[0].mxu0 %v322
    %v1927 = vpop.f32.mrb[0].mxu0
    %v1928 = vadd.f32 0.0, %v1927
    %v1929 = vpop.f32.mrb[0].mxu0
    %v1930 = vadd.f32 0.0, %v1929
    %v1931 = vpop.f32.mrb[0].mxu0
    %v1932 = vpop.f32.mrb[0].mxu0
    %1933 = vdwg.mxu0
    %v1934 = vmul.f32 %v1641, 0.01
    %v1935 = vmul.f32 %v1643, 0.01
    %v1936 = vmul.f32 %v1682, 0.01
    %v1937 = vmul.f32 %v1684, 0.01
    %v1938 = vmul.f32 %v1723, 0.01
    %v1939 = vmul.f32 %v1725, 0.01
    %v1940 = vmul.f32 %v1764, 0.01
    %v1941 = vmul.f32 %v1766, 0.01
    %v1942 = vmul.f32 %v1805, 0.01
    %v1943 = vmul.f32 %v1807, 0.01
    %v1944 = vmul.f32 %v1846, 0.01
    %v1945 = vmul.f32 %v1848, 0.01
    %v1946 = vmul.f32 %v1887, 0.01
    %v1947 = vmul.f32 %v1889, 0.01
    %v1948 = vmul.f32 %v1928, 0.01
    %v1949 = vmul.f32 %v1930, 0.01
    %v1950 = vmax.f32 %v1641, %v1934
    %v1951 = vmax.f32 %v1643, %v1935
    %v1952 = vmax.f32 %v1682, %v1936
    %v1953 = vmax.f32 %v1684, %v1937
    %v1954 = vmax.f32 %v1723, %v1938
    %v1955 = vmax.f32 %v1725, %v1939
    %v1956 = vmax.f32 %v1764, %v1940
    %v1957 = vmax.f32 %v1766, %v1941
    %v1958 = vmax.f32 %v1805, %v1942
    %v1959 = vmax.f32 %v1807, %v1943
    %v1960 = vmax.f32 %v1846, %v1944
    %v1961 = vmax.f32 %v1848, %v1945
    %v1962 = vmax.f32 %v1887, %v1946
    %v1963 = vmax.f32 %v1889, %v1947
    %v1964 = vmax.f32 %v1928, %v1948
    %v1965 = vmax.f32 %v1930, %v1949
    %1966 = vst [vmem:[#allocation2] sm:$0xff] %v1950
    %1967 = vst [vmem:[#allocation2 + $0x8] sm:$0xff] %v1951
    %1968 = vst [vmem:[#allocation2 + $0x10] sm:$0xff] %v1952
    %1969 = vst [vmem:[#allocation2 + $0x18] sm:$0xff] %v1953
    %1970 = vst [vmem:[#allocation2 + $0x20] sm:$0xff] %v1954
    %1971 = vst [vmem:[#allocation2 + $0x28] sm:$0xff] %v1955
    %1972 = vst [vmem:[#allocation2 + $0x30] sm:$0xff] %v1956
    %1973 = vst [vmem:[#allocation2 + $0x38] sm:$0xff] %v1957
    %1974 = vst [vmem:[#allocation2 + $0x40] sm:$0xff] %v1958
    %1975 = vst [vmem:[#allocation2 + $0x48] sm:$0xff] %v1959
    %1976 = vst [vmem:[#allocation2 + $0x50] sm:$0xff] %v1960
    %1977 = vst [vmem:[#allocation2 + $0x58] sm:$0xff] %v1961
    %1978 = vst [vmem:[#allocation2 + $0x60] sm:$0xff] %v1962
    %1979 = vst [vmem:[#allocation2 + $0x68] sm:$0xff] %v1963
    %1980 = vst [vmem:[#allocation2 + $0x70] sm:$0xff] %v1964
    %1981 = vst [vmem:[#allocation2 + $0x78] sm:$0xff] %v1965
    %1982 = vst [vmem:[#allocation3] sm:$0xff] 0.0
    %1983 = vst [vmem:[#allocation3 + $0x18] sm:$0xff] 0.0
    %1984 = vst [vmem:[#allocation3 + $0x30] sm:$0xff] 0.0
    %1985 = vst [vmem:[#allocation3 + $0x48] sm:$0xff] 0.0
    %1986 = vst [vmem:[#allocation3 + $0x10] sm:$0xff] 0.0
    %1987 = vst [vmem:[#allocation3 + $0x28] sm:$0xff] 0.0
    %1988 = vst [vmem:[#allocation3 + $0x40] sm:$0xff] 0.0
    %1989 = vst [vmem:[#allocation3 + $0x58] sm:$0xff] 0.0
    %v1990 = vld [vmem:[#allocation2] sm:$0xff]
    %vm1991 = vcmask 516096
    %1992 = vst.msk [vmem:[#allocation3 + $0x8] sm:$0x1] %vm1991, %v1990
    %v1994 = vrot.slane %v1990, 1
    %1995 = vrot.lane.b32.xlu0 %v1994, 64
    %v1996 = vpop.permute.xlu0 %1995
    %vm1998 = vcmask 1040896
    %1999 = vst.msk [vmem:[#allocation3 + $0x8] sm:$0x1] %vm1998, %v1996
    %v2000 = vld [vmem:[#allocation2] sm:$0xff]
    %2002 = vrot.lane.b32.xlu0 %v2000, 64
    %v2003 = vpop.permute.xlu0 %2002
    %2005 = vst.msk [vmem:[#allocation3 + $0x9] sm:$0x1] %vm1991, %v2003
    %v2006 = vrot.slane %v2000, 1
    %2008 = vst.msk [vmem:[#allocation3 + $0x9] sm:$0x1] %vm1998, %v2006
    %v2009 = vld [vmem:[#allocation2 + $0x8] sm:$0xff]
    %2010 = vst.msk [vmem:[#allocation3 + $0xa] sm:$0x1] %vm1991, %v2009
    %v2012 = vrot.slane %v2009, 1
    %2013 = vrot.lane.b32.xlu0 %v2012, 64
    %v2014 = vpop.permute.xlu0 %2013
    %2016 = vst.msk [vmem:[#allocation3 + $0xa] sm:$0x1] %vm1998, %v2014
    %v2017 = vld [vmem:[#allocation2 + $0x8] sm:$0xff]
    %2019 = vrot.lane.b32.xlu0 %v2017, 64
    %v2020 = vpop.permute.xlu0 %2019
    %2022 = vst.msk [vmem:[#allocation3 + $0xb] sm:$0x1] %vm1991, %v2020
    %v2023 = vrot.slane %v2017, 1
    %2025 = vst.msk [vmem:[#allocation3 + $0xb] sm:$0x1] %vm1998, %v2023
    %v2026 = vld [vmem:[#allocation2 + $0x10] sm:$0xff]
    %2027 = vst.msk [vmem:[#allocation3 + $0xc] sm:$0x1] %vm1991, %v2026
    %v2029 = vrot.slane %v2026, 1
    %2030 = vrot.lane.b32.xlu0 %v2029, 64
    %v2031 = vpop.permute.xlu0 %2030
    %2033 = vst.msk [vmem:[#allocation3 + $0xc] sm:$0x1] %vm1998, %v2031
    %v2034 = vld [vmem:[#allocation2 + $0x10] sm:$0xff]
    %2036 = vrot.lane.b32.xlu0 %v2034, 64
    %v2037 = vpop.permute.xlu0 %2036
    %2039 = vst.msk [vmem:[#allocation3 + $0xd] sm:$0x1] %vm1991, %v2037
    %v2040 = vrot.slane %v2034, 1
    %2042 = vst.msk [vmem:[#allocation3 + $0xd] sm:$0x1] %vm1998, %v2040
    %v2043 = vld [vmem:[#allocation2 + $0x18] sm:$0xff]
    %2044 = vst.msk [vmem:[#allocation3 + $0xe] sm:$0x1] %vm1991, %v2043
    %v2046 = vrot.slane %v2043, 1
    %2047 = vrot.lane.b32.xlu0 %v2046, 64
    %v2048 = vpop.permute.xlu0 %2047
    %2050 = vst.msk [vmem:[#allocation3 + $0xe] sm:$0x1] %vm1998, %v2048
    %v2051 = vld [vmem:[#allocation2 + $0x18] sm:$0xff]
    %2053 = vrot.lane.b32.xlu0 %v2051, 64
    %v2054 = vpop.permute.xlu0 %2053
    %2056 = vst.msk [vmem:[#allocation3 + $0xf] sm:$0x1] %vm1991, %v2054
    %v2057 = vrot.slane %v2051, 1
    %2059 = vst.msk [vmem:[#allocation3 + $0xf] sm:$0x1] %vm1998, %v2057
    %v2060 = vld [vmem:[#allocation2 + $0x20] sm:$0xff]
    %2061 = vst.msk [vmem:[#allocation3 + $0x20] sm:$0x1] %vm1991, %v2060
    %v2063 = vrot.slane %v2060, 1
    %2064 = vrot.lane.b32.xlu0 %v2063, 64
    %v2065 = vpop.permute.xlu0 %2064
    %2067 = vst.msk [vmem:[#allocation3 + $0x20] sm:$0x1] %vm1998, %v2065
    %v2068 = vld [vmem:[#allocation2 + $0x20] sm:$0xff]
    %2070 = vrot.lane.b32.xlu0 %v2068, 64
    %v2071 = vpop.permute.xlu0 %2070
    %2073 = vst.msk [vmem:[#allocation3 + $0x21] sm:$0x1] %vm1991, %v2071
    %v2074 = vrot.slane %v2068, 1
    %2076 = vst.msk [vmem:[#allocation3 + $0x21] sm:$0x1] %vm1998, %v2074
    %v2077 = vld [vmem:[#allocation2 + $0x28] sm:$0xff]
    %2078 = vst.msk [vmem:[#allocation3 + $0x22] sm:$0x1] %vm1991, %v2077
    %v2080 = vrot.slane %v2077, 1
    %2081 = vrot.lane.b32.xlu0 %v2080, 64
    %v2082 = vpop.permute.xlu0 %2081
    %2084 = vst.msk [vmem:[#allocation3 + $0x22] sm:$0x1] %vm1998, %v2082
    %v2085 = vld [vmem:[#allocation2 + $0x28] sm:$0xff]
    %2087 = vrot.lane.b32.xlu0 %v2085, 64
    %v2088 = vpop.permute.xlu0 %2087
    %2090 = vst.msk [vmem:[#allocation3 + $0x23] sm:$0x1] %vm1991, %v2088
    %v2091 = vrot.slane %v2085, 1
    %2093 = vst.msk [vmem:[#allocation3 + $0x23] sm:$0x1] %vm1998, %v2091
    %v2094 = vld [vmem:[#allocation2 + $0x30] sm:$0xff]
    %2095 = vst.msk [vmem:[#allocation3 + $0x24] sm:$0x1] %vm1991, %v2094
    %v2097 = vrot.slane %v2094, 1
    %2098 = vrot.lane.b32.xlu0 %v2097, 64
    %v2099 = vpop.permute.xlu0 %2098
    %2101 = vst.msk [vmem:[#allocation3 + $0x24] sm:$0x1] %vm1998, %v2099
    %v2102 = vld [vmem:[#allocation2 + $0x30] sm:$0xff]
    %2104 = vrot.lane.b32.xlu0 %v2102, 64
    %v2105 = vpop.permute.xlu0 %2104
    %2107 = vst.msk [vmem:[#allocation3 + $0x25] sm:$0x1] %vm1991, %v2105
    %v2108 = vrot.slane %v2102, 1
    %2110 = vst.msk [vmem:[#allocation3 + $0x25] sm:$0x1] %vm1998, %v2108
    %v2111 = vld [vmem:[#allocation2 + $0x38] sm:$0xff]
    %2112 = vst.msk [vmem:[#allocation3 + $0x26] sm:$0x1] %vm1991, %v2111
    %v2114 = vrot.slane %v2111, 1
    %2115 = vrot.lane.b32.xlu0 %v2114, 64
    %v2116 = vpop.permute.xlu0 %2115
    %2118 = vst.msk [vmem:[#allocation3 + $0x26] sm:$0x1] %vm1998, %v2116
    %v2119 = vld [vmem:[#allocation2 + $0x38] sm:$0xff]
    %2121 = vrot.lane.b32.xlu0 %v2119, 64
    %v2122 = vpop.permute.xlu0 %2121
    %2124 = vst.msk [vmem:[#allocation3 + $0x27] sm:$0x1] %vm1991, %v2122
    %v2125 = vrot.slane %v2119, 1
    %2127 = vst.msk [vmem:[#allocation3 + $0x27] sm:$0x1] %vm1998, %v2125
    %v2128 = vld [vmem:[#allocation2 + $0x40] sm:$0xff]
    %2129 = vst.msk [vmem:[#allocation3 + $0x38] sm:$0x1] %vm1991, %v2128
    %v2131 = vrot.slane %v2128, 1
    %2132 = vrot.lane.b32.xlu0 %v2131, 64
    %v2133 = vpop.permute.xlu0 %2132
    %2135 = vst.msk [vmem:[#allocation3 + $0x38] sm:$0x1] %vm1998, %v2133
    %v2136 = vld [vmem:[#allocation2 + $0x40] sm:$0xff]
    %2138 = vrot.lane.b32.xlu0 %v2136, 64
    %v2139 = vpop.permute.xlu0 %2138
    %2141 = vst.msk [vmem:[#allocation3 + $0x39] sm:$0x1] %vm1991, %v2139
    %v2142 = vrot.slane %v2136, 1
    %2144 = vst.msk [vmem:[#allocation3 + $0x39] sm:$0x1] %vm1998, %v2142
    %v2145 = vld [vmem:[#allocation2 + $0x48] sm:$0xff]
    %2146 = vst.msk [vmem:[#allocation3 + $0x3a] sm:$0x1] %vm1991, %v2145
    %v2148 = vrot.slane %v2145, 1
    %2149 = vrot.lane.b32.xlu0 %v2148, 64
    %v2150 = vpop.permute.xlu0 %2149
    %2152 = vst.msk [vmem:[#allocation3 + $0x3a] sm:$0x1] %vm1998, %v2150
    %v2153 = vld [vmem:[#allocation2 + $0x48] sm:$0xff]
    %2155 = vrot.lane.b32.xlu0 %v2153, 64
    %v2156 = vpop.permute.xlu0 %2155
    %2158 = vst.msk [vmem:[#allocation3 + $0x3b] sm:$0x1] %vm1991, %v2156
    %v2159 = vrot.slane %v2153, 1
    %2161 = vst.msk [vmem:[#allocation3 + $0x3b] sm:$0x1] %vm1998, %v2159
    %v2162 = vld [vmem:[#allocation2 + $0x50] sm:$0xff]
    %2163 = vst.msk [vmem:[#allocation3 + $0x3c] sm:$0x1] %vm1991, %v2162
    %v2165 = vrot.slane %v2162, 1
    %2166 = vrot.lane.b32.xlu0 %v2165, 64
    %v2167 = vpop.permute.xlu0 %2166
    %2169 = vst.msk [vmem:[#allocation3 + $0x3c] sm:$0x1] %vm1998, %v2167
    %v2170 = vld [vmem:[#allocation2 + $0x50] sm:$0xff]
    %2172 = vrot.lane.b32.xlu0 %v2170, 64
    %v2173 = vpop.permute.xlu0 %2172
    %2175 = vst.msk [vmem:[#allocation3 + $0x3d] sm:$0x1] %vm1991, %v2173
    %v2176 = vrot.slane %v2170, 1
    %2178 = vst.msk [vmem:[#allocation3 + $0x3d] sm:$0x1] %vm1998, %v2176
    %v2179 = vld [vmem:[#allocation2 + $0x58] sm:$0xff]
    %2180 = vst.msk [vmem:[#allocation3 + $0x3e] sm:$0x1] %vm1991, %v2179
    %v2182 = vrot.slane %v2179, 1
    %2183 = vrot.lane.b32.xlu0 %v2182, 64
    %v2184 = vpop.permute.xlu0 %2183
    %2186 = vst.msk [vmem:[#allocation3 + $0x3e] sm:$0x1] %vm1998, %v2184
    %v2187 = vld [vmem:[#allocation2 + $0x58] sm:$0xff]
    %2189 = vrot.lane.b32.xlu0 %v2187, 64
    %v2190 = vpop.permute.xlu0 %2189
    %2192 = vst.msk [vmem:[#allocation3 + $0x3f] sm:$0x1] %vm1991, %v2190
    %v2193 = vrot.slane %v2187, 1
    %2195 = vst.msk [vmem:[#allocation3 + $0x3f] sm:$0x1] %vm1998, %v2193
    %v2196 = vld [vmem:[#allocation2 + $0x60] sm:$0xff]
    %2197 = vst.msk [vmem:[#allocation3 + $0x50] sm:$0x1] %vm1991, %v2196
    %v2199 = vrot.slane %v2196, 1
    %2200 = vrot.lane.b32.xlu0 %v2199, 64
    %v2201 = vpop.permute.xlu0 %2200
    %2203 = vst.msk [vmem:[#allocation3 + $0x50] sm:$0x1] %vm1998, %v2201
    %v2204 = vld [vmem:[#allocation2 + $0x60] sm:$0xff]
    %2206 = vrot.lane.b32.xlu0 %v2204, 64
    %v2207 = vpop.permute.xlu0 %2206
    %2209 = vst.msk [vmem:[#allocation3 + $0x51] sm:$0x1] %vm1991, %v2207
    %v2210 = vrot.slane %v2204, 1
    %2212 = vst.msk [vmem:[#allocation3 + $0x51] sm:$0x1] %vm1998, %v2210
    %v2213 = vld [vmem:[#allocation2 + $0x68] sm:$0xff]
    %2214 = vst.msk [vmem:[#allocation3 + $0x52] sm:$0x1] %vm1991, %v2213
    %v2216 = vrot.slane %v2213, 1
    %2217 = vrot.lane.b32.xlu0 %v2216, 64
    %v2218 = vpop.permute.xlu0 %2217
    %2220 = vst.msk [vmem:[#allocation3 + $0x52] sm:$0x1] %vm1998, %v2218
    %v2221 = vld [vmem:[#allocation2 + $0x68] sm:$0xff]
    %2223 = vrot.lane.b32.xlu0 %v2221, 64
    %v2224 = vpop.permute.xlu0 %2223
    %2226 = vst.msk [vmem:[#allocation3 + $0x53] sm:$0x1] %vm1991, %v2224
    %v2227 = vrot.slane %v2221, 1
    %2229 = vst.msk [vmem:[#allocation3 + $0x53] sm:$0x1] %vm1998, %v2227
    %v2230 = vld [vmem:[#allocation2 + $0x70] sm:$0xff]
    %2231 = vst.msk [vmem:[#allocation3 + $0x54] sm:$0x1] %vm1991, %v2230
    %v2233 = vrot.slane %v2230, 1
    %2234 = vrot.lane.b32.xlu0 %v2233, 64
    %v2235 = vpop.permute.xlu0 %2234
    %2237 = vst.msk [vmem:[#allocation3 + $0x54] sm:$0x1] %vm1998, %v2235
    %v2238 = vld [vmem:[#allocation2 + $0x70] sm:$0xff]
    %2240 = vrot.lane.b32.xlu0 %v2238, 64
    %v2241 = vpop.permute.xlu0 %2240
    %2243 = vst.msk [vmem:[#allocation3 + $0x55] sm:$0x1] %vm1991, %v2241
    %v2244 = vrot.slane %v2238, 1
    %2246 = vst.msk [vmem:[#allocation3 + $0x55] sm:$0x1] %vm1998, %v2244
    %v2247 = vld [vmem:[#allocation2 + $0x78] sm:$0xff]
    %2248 = vst.msk [vmem:[#allocation3 + $0x56] sm:$0x1] %vm1991, %v2247
    %v2250 = vrot.slane %v2247, 1
    %2251 = vrot.lane.b32.xlu0 %v2250, 64
    %v2252 = vpop.permute.xlu0 %2251
    %2254 = vst.msk [vmem:[#allocation3 + $0x56] sm:$0x1] %vm1998, %v2252
    %v2255 = vld [vmem:[#allocation2 + $0x78] sm:$0xff]
    %2257 = vrot.lane.b32.xlu0 %v2255, 64
    %v2258 = vpop.permute.xlu0 %2257
    %2260 = vst.msk [vmem:[#allocation3 + $0x57] sm:$0x1] %vm1991, %v2258
    %v2261 = vrot.slane %v2255, 1
    %2263 = vst.msk [vmem:[#allocation3 + $0x57] sm:$0x1] %vm1998, %v2261
    %v2264 = vld [vmem:[#allocation3] sm:$0xff]
    %v2265 = vld [vmem:[#allocation3 + $0x8] sm:$0xff]
    %v2266 = vld [vmem:[#allocation3 + $0x18] sm:$0xff]
    %v2267 = vld [vmem:[#allocation3 + $0x20] sm:$0xff]
    %v2268 = vld [vmem:[#allocation3 + $0x30] sm:$0xff]
    %v2269 = vld [vmem:[#allocation3 + $0x38] sm:$0xff]
    %v2270 = vld [vmem:[#allocation3 + $0x48] sm:$0xff]
    %v2271 = vld [vmem:[#allocation3 + $0x50] sm:$0xff]
    %v2272 = vld [vmem:[#allocation9] sm:$0x1]
    %v2273 = vlaneseq
    %v2274 = vshrl.u32 %v2273, 7
    %v2275 = vsub.s32 0, %v2274
    %v2276 = vrot.slane %v2272, %v2275
    %2278 = vrot.lane.b32.xlu0 %v2276, 119
    %v2279 = vpop.permute.xlu0 %2278
    %v2281 = vmul.f32 %v2264, %v2279
    %v2282 = vmul.f32 %v2265, %v2279
    %v2283 = vmul.f32 %v2266, %v2279
    %v2284 = vmul.f32 %v2267, %v2279
    %v2285 = vmul.f32 %v2268, %v2279
    %v2286 = vmul.f32 %v2269, %v2279
    %v2287 = vmul.f32 %v2270, %v2279
    %v2288 = vmul.f32 %v2271, %v2279
    %v2289 = vpack.c.bf16 %v2283, %v2281
    %v2290 = vpack.c.bf16 %v2284, %v2282
    %v2291 = vpack.c.bf16 %v2287, %v2285
    %v2292 = vpack.c.bf16 %v2288, %v2286
    %2297 = vrot.lane.b32.xlu0 %v2289, 9
    %v2298 = vpop.permute.xlu0 %2297
    %2299 = vrot.lane.b32.xlu0 %v2290, 9
    %v2300 = vpop.permute.xlu0 %2299
    %2301 = vrot.lane.b32.xlu0 %v2291, 9
    %v2302 = vpop.permute.xlu0 %2301
    %2303 = vrot.lane.b32.xlu0 %v2292, 9
    %v2304 = vpop.permute.xlu0 %2303
    %vm2305 = vcmask 72704
    %v2306 = vsel %vm2305, %v2298, %v2300
    %v2307 = vsel %vm2305, %v2302, %v2304
    %2310 = vst [vmem:[#allocation4] sm:$0xff] %v2306
    %2311 = vst [vmem:[#allocation4 + $0x8] sm:$0xff] %v2307
    %v2312 = vld [vmem:[#allocation3] sm:$0xff]
    %v2313 = vld [vmem:[#allocation3 + $0x8] sm:$0xff]
    %v2314 = vld [vmem:[#allocation3 + $0x18] sm:$0xff]
    %v2315 = vld [vmem:[#allocation3 + $0x20] sm:$0xff]
    %v2316 = vld [vmem:[#allocation3 + $0x30] sm:$0xff]
    %v2317 = vld [vmem:[#allocation3 + $0x38] sm:$0xff]
    %v2318 = vld [vmem:[#allocation3 + $0x48] sm:$0xff]
    %v2319 = vld [vmem:[#allocation3 + $0x50] sm:$0xff]
    %v2320 = vld [vmem:[#allocation9 + $0x1] sm:$0x1]
    %v2321 = vlaneseq
    %v2322 = vshrl.u32 %v2321, 7
    %v2323 = vsub.s32 0, %v2322
    %v2324 = vrot.slane %v2320, %v2323
    %2326 = vrot.lane.b32.xlu0 %v2324, 120
    %v2327 = vpop.permute.xlu0 %2326
    %v2329 = vmul.f32 %v2312, %v2327
    %v2330 = vmul.f32 %v2313, %v2327
    %v2331 = vmul.f32 %v2314, %v2327
    %v2332 = vmul.f32 %v2315, %v2327
    %v2333 = vmul.f32 %v2316, %v2327
    %v2334 = vmul.f32 %v2317, %v2327
    %v2335 = vmul.f32 %v2318, %v2327
    %v2336 = vmul.f32 %v2319, %v2327
    %v2337 = vpack.c.bf16 %v2331, %v2329
    %v2338 = vpack.c.bf16 %v2332, %v2330
    %v2339 = vpack.c.bf16 %v2335, %v2333
    %v2340 = vpack.c.bf16 %v2336, %v2334
    %2345 = vrot.lane.b32.xlu0 %v2337, 8
    %v2346 = vpop.permute.xlu0 %2345
    %2347 = vrot.lane.b32.xlu0 %v2338, 8
    %v2348 = vpop.permute.xlu0 %2347
    %2349 = vrot.lane.b32.xlu0 %v2339, 8
    %v2350 = vpop.permute.xlu0 %2349
    %2351 = vrot.lane.b32.xlu0 %v2340, 8
    %v2352 = vpop.permute.xlu0 %2351
    %vm2353 = vcmask 64512
    %v2354 = vsel %vm2353, %v2346, %v2348
    %v2355 = vsel %vm2353, %v2350, %v2352
    %2358 = vst [vmem:[#allocation4 + $0x10] sm:$0xff] %v2354
    %2359 = vst [vmem:[#allocation4 + $0x18] sm:$0xff] %v2355
    %v2360 = vld [vmem:[#allocation3] sm:$0xff]
    %v2361 = vld [vmem:[#allocation3 + $0x8] sm:$0xff]
    %v2362 = vld [vmem:[#allocation3 + $0x18] sm:$0xff]
    %v2363 = vld [vmem:[#allocation3 + $0x20] sm:$0xff]
    %v2364 = vld [vmem:[#allocation3 + $0x30] sm:$0xff]
    %v2365 = vld [vmem:[#allocation3 + $0x38] sm:$0xff]
    %v2366 = vld [vmem:[#allocation3 + $0x48] sm:$0xff]
    %v2367 = vld [vmem:[#allocation3 + $0x50] sm:$0xff]
    %v2368 = vld [vmem:[#allocation9 + $0x2] sm:$0x1]
    %v2369 = vlaneseq
    %v2370 = vshrl.u32 %v2369, 7
    %v2371 = vsub.s32 0, %v2370
    %v2372 = vrot.slane %v2368, %v2371
    %2374 = vrot.lane.b32.xlu0 %v2372, 121
    %v2375 = vpop.permute.xlu0 %2374
    %v2377 = vmul.f32 %v2360, %v2375
    %v2378 = vmul.f32 %v2361, %v2375
    %v2379 = vmul.f32 %v2362, %v2375
    %v2380 = vmul.f32 %v2363, %v2375
    %v2381 = vmul.f32 %v2364, %v2375
    %v2382 = vmul.f32 %v2365, %v2375
    %v2383 = vmul.f32 %v2366, %v2375
    %v2384 = vmul.f32 %v2367, %v2375
    %v2385 = vpack.c.bf16 %v2379, %v2377
    %v2386 = vpack.c.bf16 %v2380, %v2378
    %v2387 = vpack.c.bf16 %v2383, %v2381
    %v2388 = vpack.c.bf16 %v2384, %v2382
    %2393 = vrot.lane.b32.xlu0 %v2385, 7
    %v2394 = vpop.permute.xlu0 %2393
    %2395 = vrot.lane.b32.xlu0 %v2386, 7
    %v2396 = vpop.permute.xlu0 %2395
    %2397 = vrot.lane.b32.xlu0 %v2387, 7
    %v2398 = vpop.permute.xlu0 %2397
    %2399 = vrot.lane.b32.xlu0 %v2388, 7
    %v2400 = vpop.permute.xlu0 %2399
    %vm2401 = vcmask 56320
    %v2402 = vsel %vm2401, %v2394, %v2396
    %v2403 = vsel %vm2401, %v2398, %v2400
    %2406 = vst [vmem:[#allocation4 + $0x20] sm:$0xff] %v2402
    %2407 = vst [vmem:[#allocation4 + $0x28] sm:$0xff] %v2403
    %v2408 = vld [vmem:[#allocation3] sm:$0xff]
    %v2409 = vld [vmem:[#allocation3 + $0x8] sm:$0xff]
    %v2410 = vld [vmem:[#allocation3 + $0x18] sm:$0xff]
    %v2411 = vld [vmem:[#allocation3 + $0x20] sm:$0xff]
    %v2412 = vld [vmem:[#allocation3 + $0x30] sm:$0xff]
    %v2413 = vld [vmem:[#allocation3 + $0x38] sm:$0xff]
    %v2414 = vld [vmem:[#allocation3 + $0x48] sm:$0xff]
    %v2415 = vld [vmem:[#allocation3 + $0x50] sm:$0xff]
    %v2416 = vld [vmem:[#allocation9 + $0x3] sm:$0x1]
    %v2417 = vlaneseq
    %v2418 = vshrl.u32 %v2417, 7
    %v2419 = vsub.s32 0, %v2418
    %v2420 = vrot.slane %v2416, %v2419
    %2422 = vrot.lane.b32.xlu0 %v2420, 127
    %v2423 = vpop.permute.xlu0 %2422
    %v2425 = vmul.f32 %v2408, %v2423
    %v2426 = vmul.f32 %v2409, %v2423
    %v2427 = vmul.f32 %v2410, %v2423
    %v2428 = vmul.f32 %v2411, %v2423
    %v2429 = vmul.f32 %v2412, %v2423
    %v2430 = vmul.f32 %v2413, %v2423
    %v2431 = vmul.f32 %v2414, %v2423
    %v2432 = vmul.f32 %v2415, %v2423
    %v2433 = vpack.c.bf16 %v2427, %v2425
    %v2434 = vpack.c.bf16 %v2428, %v2426
    %v2435 = vpack.c.bf16 %v2431, %v2429
    %v2436 = vpack.c.bf16 %v2432, %v2430
    %2441 = vrot.lane.b32.xlu0 %v2433, 1
    %v2442 = vpop.permute.xlu0 %2441
    %2443 = vrot.lane.b32.xlu0 %v2434, 1
    %v2444 = vpop.permute.xlu0 %2443
    %2445 = vrot.lane.b32.xlu0 %v2435, 1
    %v2446 = vpop.permute.xlu0 %2445
    %2447 = vrot.lane.b32.xlu0 %v2436, 1
    %v2448 = vpop.permute.xlu0 %2447
    %vm2449 = vcmask 7168
    %v2450 = vsel %vm2449, %v2442, %v2444
    %v2451 = vsel %vm2449, %v2446, %v2448
    %2454 = vst [vmem:[#allocation4 + $0x30] sm:$0xff] %v2450
    %2455 = vst [vmem:[#allocation4 + $0x38] sm:$0xff] %v2451
    %v2456 = vld [vmem:[#allocation3 + $0x8] sm:$0xff]
    %v2457 = vld [vmem:[#allocation3 + $0x20] sm:$0xff]
    %v2458 = vld [vmem:[#allocation3 + $0x38] sm:$0xff]
    %v2459 = vld [vmem:[#allocation3 + $0x50] sm:$0xff]
    %v2460 = vld [vmem:[#allocation9 + $0x4] sm:$0x1]
    %v2461 = vlaneseq
    %v2462 = vshrl.u32 %v2461, 7
    %v2463 = vsub.s32 0, %v2462
    %v2464 = vrot.slane %v2460, %v2463
    %v2465 = vmul.f32 %v2456, %v2464
    %v2466 = vmul.f32 %v2457, %v2464
    %v2467 = vmul.f32 %v2458, %v2464
    %v2468 = vmul.f32 %v2459, %v2464
    %v2469 = vpack.c.bf16 %v2466, %v2465
    %v2470 = vpack.c.bf16 %v2468, %v2467
    %2471 = vst [vmem:[#allocation4 + $0x40] sm:$0xff] %v2469
    %2472 = vst [vmem:[#allocation4 + $0x48] sm:$0xff] %v2470
    %v2473 = vld [vmem:[#allocation3 + $0x8] sm:$0xff]
    %v2474 = vld [vmem:[#allocation3 + $0x10] sm:$0xff]
    %v2475 = vld [vmem:[#allocation3 + $0x20] sm:$0xff]
    %v2476 = vld [vmem:[#allocation3 + $0x28] sm:$0xff]
    %v2477 = vld [vmem:[#allocation3 + $0x38] sm:$0xff]
    %v2478 = vld [vmem:[#allocation3 + $0x40] sm:$0xff]
    %v2479 = vld [vmem:[#allocation3 + $0x50] sm:$0xff]
    %v2480 = vld [vmem:[#allocation3 + $0x58] sm:$0xff]
    %v2481 = vld [vmem:[#allocation9 + $0x5] sm:$0x1]
    %v2482 = vlaneseq
    %v2483 = vshrl.u32 %v2482, 7
    %v2484 = vsub.s32 0, %v2483
    %v2485 = vrot.slane %v2481, %v2484
    %2487 = vrot.lane.b32.xlu0 %v2485, 1
    %v2488 = vpop.permute.xlu0 %2487
    %v2490 = vmul.f32 %v2473, %v2488
    %v2491 = vmul.f32 %v2474, %v2488
    %v2492 = vmul.f32 %v2475, %v2488
    %v2493 = vmul.f32 %v2476, %v2488
    %v2494 = vmul.f32 %v2477, %v2488
    %v2495 = vmul.f32 %v2478, %v2488
    %v2496 = vmul.f32 %v2479, %v2488
    %v2497 = vmul.f32 %v2480, %v2488
    %v2498 = vpack.c.bf16 %v2492, %v2490
    %v2499 = vpack.c.bf16 %v2493, %v2491
    %v2500 = vpack.c.bf16 %v2496, %v2494
    %v2501 = vpack.c.bf16 %v2497, %v2495
    %2506 = vrot.lane.b32.xlu0 %v2498, 127
    %v2507 = vpop.permute.xlu0 %2506
    %2508 = vrot.lane.b32.xlu0 %v2499, 127
    %v2509 = vpop.permute.xlu0 %2508
    %2510 = vrot.lane.b32.xlu0 %v2500, 127
    %v2511 = vpop.permute.xlu0 %2510
    %2512 = vrot.lane.b32.xlu0 %v2501, 127
    %v2513 = vpop.permute.xlu0 %2512
    %vm2514 = vcmask 1039360
    %v2515 = vsel %vm2514, %v2507, %v2509
    %v2516 = vsel %vm2514, %v2511, %v2513
    %2519 = vst [vmem:[#allocation4 + $0x50] sm:$0xff] %v2515
    %2520 = vst [vmem:[#allocation4 + $0x58] sm:$0xff] %v2516
    %v2521 = vld [vmem:[#allocation3 + $0x8] sm:$0xff]
    %v2522 = vld [vmem:[#allocation3 + $0x10] sm:$0xff]
    %v2523 = vld [vmem:[#allocation3 + $0x20] sm:$0xff]
    %v2524 = vld [vmem:[#allocation3 + $0x28] sm:$0xff]
    %v2525 = vld [vmem:[#allocation3 + $0x38] sm:$0xff]
    %v2526 = vld [vmem:[#allocation3 + $0x40] sm:$0xff]
    %v2527 = vld [vmem:[#allocation3 + $0x50] sm:$0xff]
    %v2528 = vld [vmem:[#allocation3 + $0x58] sm:$0xff]
    %v2529 = vld [vmem:[#allocation9 + $0x6] sm:$0x1]
    %v2530 = vlaneseq
    %v2531 = vshrl.u32 %v2530, 7
    %v2532 = vsub.s32 0, %v2531
    %v2533 = vrot.slane %v2529, %v2532
    %2535 = vrot.lane.b32.xlu0 %v2533, 7
    %v2536 = vpop.permute.xlu0 %2535
    %v2538 = vmul.f32 %v2521, %v2536
    %v2539 = vmul.f32 %v2522, %v2536
    %v2540 = vmul.f32 %v2523, %v2536
    %v2541 = vmul.f32 %v2524, %v2536
    %v2542 = vmul.f32 %v2525, %v2536
    %v2543 = vmul.f32 %v2526, %v2536
    %v2544 = vmul.f32 %v2527, %v2536
    %v2545 = vmul.f32 %v2528, %v2536
    %v2546 = vpack.c.bf16 %v2540, %v2538
    %v2547 = vpack.c.bf16 %v2541, %v2539
    %v2548 = vpack.c.bf16 %v2544, %v2542
    %v2549 = vpack.c.bf16 %v2545, %v2543
    %2554 = vrot.lane.b32.xlu0 %v2546, 121
    %v2555 = vpop.permute.xlu0 %2554
    %2556 = vrot.lane.b32.xlu0 %v2547, 121
    %v2557 = vpop.permute.xlu0 %2556
    %2558 = vrot.lane.b32.xlu0 %v2548, 121
    %v2559 = vpop.permute.xlu0 %2558
    %2560 = vrot.lane.b32.xlu0 %v2549, 121
    %v2561 = vpop.permute.xlu0 %2560
    %vm2562 = vcmask 990208
    %v2563 = vsel %vm2562, %v2555, %v2557
    %v2564 = vsel %vm2562, %v2559, %v2561
    %2567 = vst [vmem:[#allocation4 + $0x60] sm:$0xff] %v2563
    %2568 = vst [vmem:[#allocation4 + $0x68] sm:$0xff] %v2564
    %v2569 = vld [vmem:[#allocation3 + $0x8] sm:$0xff]
    %v2570 = vld [vmem:[#allocation3 + $0x10] sm:$0xff]
    %v2571 = vld [vmem:[#allocation3 + $0x20] sm:$0xff]
    %v2572 = vld [vmem:[#allocation3 + $0x28] sm:$0xff]
    %v2573 = vld [vmem:[#allocation3 + $0x38] sm:$0xff]
    %v2574 = vld [vmem:[#allocation3 + $0x40] sm:$0xff]
    %v2575 = vld [vmem:[#allocation3 + $0x50] sm:$0xff]
    %v2576 = vld [vmem:[#allocation3 + $0x58] sm:$0xff]
    %v2577 = vld [vmem:[#allocation9 + $0x7] sm:$0x1]
    %v2578 = vlaneseq
    %v2579 = vshrl.u32 %v2578, 7
    %v2580 = vsub.s32 0, %v2579
    %v2581 = vrot.slane %v2577, %v2580
    %2583 = vrot.lane.b32.xlu0 %v2581, 8
    %v2584 = vpop.permute.xlu0 %2583
    %v2586 = vmul.f32 %v2569, %v2584
    %v2587 = vmul.f32 %v2570, %v2584
    %v2588 = vmul.f32 %v2571, %v2584
    %v2589 = vmul.f32 %v2572, %v2584
    %v2590 = vmul.f32 %v2573, %v2584
    %v2591 = vmul.f32 %v2574, %v2584
    %v2592 = vmul.f32 %v2575, %v2584
    %v2593 = vmul.f32 %v2576, %v2584
    %v2594 = vpack.c.bf16 %v2588, %v2586
    %v2595 = vpack.c.bf16 %v2589, %v2587
    %v2596 = vpack.c.bf16 %v2592, %v2590
    %v2597 = vpack.c.bf16 %v2593, %v2591
    %2602 = vrot.lane.b32.xlu0 %v2594, 120
    %v2603 = vpop.permute.xlu0 %2602
    %2604 = vrot.lane.b32.xlu0 %v2595, 120
    %v2605 = vpop.permute.xlu0 %2604
    %2606 = vrot.lane.b32.xlu0 %v2596, 120
    %v2607 = vpop.permute.xlu0 %2606
    %2608 = vrot.lane.b32.xlu0 %v2597, 120
    %v2609 = vpop.permute.xlu0 %2608
    %vm2610 = vcmask 982016
    %v2611 = vsel %vm2610, %v2603, %v2605
    %v2612 = vsel %vm2610, %v2607, %v2609
    %2615 = vst [vmem:[#allocation4 + $0x70] sm:$0xff] %v2611
    %2616 = vst [vmem:[#allocation4 + $0x78] sm:$0xff] %v2612
    %v2617 = vld [vmem:[#allocation3 + $0x8] sm:$0xff]
    %v2618 = vld [vmem:[#allocation3 + $0x10] sm:$0xff]
    %v2619 = vld [vmem:[#allocation3 + $0x20] sm:$0xff]
    %v2620 = vld [vmem:[#allocation3 + $0x28] sm:$0xff]
    %v2621 = vld [vmem:[#allocation3 + $0x38] sm:$0xff]
    %v2622 = vld [vmem:[#allocation3 + $0x40] sm:$0xff]
    %v2623 = vld [vmem:[#allocation3 + $0x50] sm:$0xff]
    %v2624 = vld [vmem:[#allocation3 + $0x58] sm:$0xff]
    %v2625 = vld [vmem:[#allocation9 + $0x8] sm:$0x1]
    %v2626 = vlaneseq
    %v2627 = vshrl.u32 %v2626, 7
    %v2628 = vsub.s32 0, %v2627
    %v2629 = vrot.slane %v2625, %v2628
    %2631 = vrot.lane.b32.xlu0 %v2629, 9
    %v2632 = vpop.permute.xlu0 %2631
    %v2634 = vmul.f32 %v2617, %v2632
    %v2635 = vmul.f32 %v2618, %v2632
    %v2636 = vmul.f32 %v2619, %v2632
    %v2637 = vmul.f32 %v2620, %v2632
    %v2638 = vmul.f32 %v2621, %v2632
    %v2639 = vmul.f32 %v2622, %v2632
    %v2640 = vmul.f32 %v2623, %v2632
    %v2641 = vmul.f32 %v2624, %v2632
    %v2642 = vpack.c.bf16 %v2636, %v2634
    %v2643 = vpack.c.bf16 %v2637, %v2635
    %v2644 = vpack.c.bf16 %v2640, %v2638
    %v2645 = vpack.c.bf16 %v2641, %v2639
    %2650 = vrot.lane.b32.xlu0 %v2642, 119
    %v2651 = vpop.permute.xlu0 %2650
    %2652 = vrot.lane.b32.xlu0 %v2643, 119
    %v2653 = vpop.permute.xlu0 %2652
    %2654 = vrot.lane.b32.xlu0 %v2644, 119
    %v2655 = vpop.permute.xlu0 %2654
    %2656 = vrot.lane.b32.xlu0 %v2645, 119
    %v2657 = vpop.permute.xlu0 %2656
    %vm2658 = vcmask 973824
    %v2659 = vsel %vm2658, %v2651, %v2653
    %v2660 = vsel %vm2658, %v2655, %v2657
    %2663 = vst [vmem:[#allocation4 + $0x80] sm:$0xff] %v2659
    %2664 = vst [vmem:[#allocation4 + $0x88] sm:$0xff] %v2660
    %v2665 = vld [vmem:[#allocation7] sm:$0xff]
    %v2666 = vld [vmem:[#allocation7 + $0x8] sm:$0xf]
    %v2667 = vld [vmem:[#allocation7 + $0xc] sm:$0xff]
    %v2668 = vld [vmem:[#allocation7 + $0x14] sm:$0xf]
    %v2669 = vld [vmem:[#allocation7 + $0x18] sm:$0xff]
    %v2670 = vld [vmem:[#allocation7 + $0x20] sm:$0xf]
    %v2671 = vld [vmem:[#allocation7 + $0x24] sm:$0xff]
    %v2672 = vld [vmem:[#allocation7 + $0x2c] sm:$0xf]
    %v2673 = vld [vmem:[#allocation7 + $0x30] sm:$0xff]
    %v2674 = vld [vmem:[#allocation7 + $0x38] sm:$0xf]
    %v2675 = vld [vmem:[#allocation7 + $0x3c] sm:$0xff]
    %v2676 = vld [vmem:[#allocation7 + $0x44] sm:$0xf]
    %v2677 = vld [vmem:[#allocation4] sm:$0xff]
    %v2678 = vld [vmem:[#allocation4 + $0x8] sm:$0xff]
    %v2679 = vld [vmem:[#allocation4 + $0x10] sm:$0xff]
    %v2680 = vld [vmem:[#allocation4 + $0x18] sm:$0xff]
    %v2681 = vld [vmem:[#allocation4 + $0x20] sm:$0xff]
    %v2682 = vld [vmem:[#allocation4 + $0x28] sm:$0xff]
    %v2683 = vld [vmem:[#allocation4 + $0x30] sm:$0xff]
    %v2684 = vld [vmem:[#allocation4 + $0x38] sm:$0xff]
    %v2685 = vld [vmem:[#allocation4 + $0x40] sm:$0xff]
    %v2686 = vld [vmem:[#allocation4 + $0x48] sm:$0xff]
    %v2687 = vld [vmem:[#allocation4 + $0x50] sm:$0xff]
    %v2688 = vld [vmem:[#allocation4 + $0x58] sm:$0xff]
    %v2689 = vld [vmem:[#allocation4 + $0x60] sm:$0xff]
    %v2690 = vld [vmem:[#allocation4 + $0x68] sm:$0xff]
    %v2691 = vld [vmem:[#allocation4 + $0x70] sm:$0xff]
    %v2692 = vld [vmem:[#allocation4 + $0x78] sm:$0xff]
    %v2693 = vld [vmem:[#allocation4 + $0x80] sm:$0xff]
    %v2694 = vld [vmem:[#allocation4 + $0x88] sm:$0xff]
    %v2695 = vld [vmem:[%s4] sm:$0xff]
    %v2696 = vld [vmem:[%s4 + $0x8] sm:$0xff]
    %v2697 = vld [vmem:[%s4 + $0x10] sm:$0xff]
    %v2698 = vld [vmem:[%s4 + $0x18] sm:$0xff]
    %v2699 = vld [vmem:[%s4 + $0x20] sm:$0xff]
    %v2700 = vld [vmem:[%s4 + $0x28] sm:$0xff]
    %2702 = vset.pattern.permute.xlu0 0
    %2703 = vperm.xlu0 %2702, %v2695
    %v2704 = vpop.permute.xlu0 %2703
    %2707 = vset.pattern.permute.xlu0 0
    %2708 = vperm.xlu0 %2707, %v2696
    %v2709 = vpop.permute.xlu0 %2708
    %2712 = vset.pattern.permute.xlu0 0
    %2713 = vperm.xlu0 %2712, %v2697
    %v2714 = vpop.permute.xlu0 %2713
    %2717 = vset.pattern.permute.xlu0 0
    %2718 = vperm.xlu0 %2717, %v2698
    %v2719 = vpop.permute.xlu0 %2718
    %2722 = vset.pattern.permute.xlu0 0
    %2723 = vperm.xlu0 %2722, %v2699
    %v2724 = vpop.permute.xlu0 %2723
    %2727 = vset.pattern.permute.xlu0 0
    %2728 = vperm.xlu0 %2727, %v2700
    %v2729 = vpop.permute.xlu0 %2728
    %v2743 = vunpack.c.l.b16 %v2665
    %v2744 = vunpack.c.h.b16 %v2665
    %v2745 = vunpack.c.l.b16 %v2666
    %v2746 = vunpack.c.l.b16 %v2667
    %v2747 = vunpack.c.h.b16 %v2667
    %v2748 = vunpack.c.l.b16 %v2668
    %v2749 = vunpack.c.l.b16 %v2669
    %v2750 = vunpack.c.h.b16 %v2669
    %v2751 = vunpack.c.l.b16 %v2670
    %v2752 = vunpack.c.l.b16 %v2671
    %v2753 = vunpack.c.h.b16 %v2671
    %v2754 = vunpack.c.l.b16 %v2672
    %v2755 = vunpack.c.l.b16 %v2673
    %v2756 = vunpack.c.h.b16 %v2673
    %v2757 = vunpack.c.l.b16 %v2674
    %v2758 = vunpack.c.l.b16 %v2675
    %v2759 = vunpack.c.h.b16 %v2675
    %v2760 = vunpack.c.l.b16 %v2676
    %v2761 = vpack.c.b16 %v2746, %v2743
    %v2762 = vpack.c.b16 %v2747, %v2744
    %v2763 = vpack.c.b16 %v2748, %v2745
    %v2764 = vpack.c.b16 %v2752, %v2749
    %v2765 = vpack.c.b16 %v2753, %v2750
    %v2766 = vpack.c.b16 %v2754, %v2751
    %v2767 = vpack.c.b16 %v2758, %v2755
    %v2768 = vpack.c.b16 %v2759, %v2756
    %v2769 = vpack.c.b16 %v2760, %v2757
    %vm2776 = vcmask 261120
    %v2778 = vsel %vm2776, %v2763, 0
    %v2781 = vsel %vm2776, %v2766, 0
    %v2784 = vsel %vm2776, %v2769, 0
    %2786 = vmatprep.subr.bf16.mxu0 0
    %2787 = vmatpush1.bf16.msra.mxu0 %v2677
    %2788 = vmatprep.subr.bf16.mxu0 0
    %2789 = vmatpush1.bf16.msra.mxu0 %v2678
    %2790 = vmatprep.subr.bf16.mxu0 0
    %2791 = vmatpush1.bf16.msra.mxu0 %v2679
    %2792 = vmatprep.subr.bf16.mxu0 0
    %2793 = vmatpush1.bf16.msra.mxu0 %v2680
    %2794 = vmatprep.subr.bf16.mxu0 0
    %2795 = vmatpush1.bf16.msra.mxu0 %v2681
    %2796 = vmatprep.subr.bf16.mxu0 0
    %2797 = vmatpush1.bf16.msra.mxu0 %v2682
    %2798 = vmatprep.subr.bf16.mxu0 0
    %2799 = vmatpush1.bf16.msra.mxu0 %v2683
    %2800 = vmatprep.subr.bf16.mxu0 0
    %2801 = vmatpush1.bf16.msra.mxu0 %v2684
    %2802 = vmatprep.subr.bf16.mxu0 0
    %2803 = vmatpush1.bf16.msra.mxu0 %v2685
    %2804 = vmatprep.subr.bf16.mxu0 0
    %2805 = vmatpush1.bf16.msra.mxu0 %v2686
    %2806 = vmatprep.subr.bf16.mxu0 0
    %2807 = vmatpush1.bf16.msra.mxu0 %v2687
    %2808 = vmatprep.subr.bf16.mxu0 0
    %2809 = vmatpush1.bf16.msra.mxu0 %v2688
    %2810 = vmatprep.subr.bf16.mxu0 0
    %2811 = vmatpush1.bf16.msra.mxu0 %v2689
    %2812 = vmatprep.subr.bf16.mxu0 0
    %2813 = vmatpush1.bf16.msra.mxu0 %v2690
    %2814 = vmatprep.subr.bf16.mxu0 0
    %2815 = vmatpush1.bf16.msra.mxu0 %v2691
    %2816 = vmatprep.subr.bf16.mxu0 0
    %2817 = vmatpush1.bf16.msra.mxu0 %v2692
    %2818 = vmatprep.mubr.bf16.mxu0 %v2762
    %2819 = vmatmul.mubr.bf16.gmra.mrb[0].mxu0 %v2761
    %v2820 = vpop.f32.mrb[0].mxu0
    %v2821 = vadd.f32 %v2704, %v2820
    %v2822 = vpop.f32.mrb[0].mxu0
    %v2823 = vpop.f32.mrb[0].mxu0
    %v2824 = vadd.f32 %v2709, %v2823
    %v2825 = vpop.f32.mrb[0].mxu0
    %2826 = vmatprep.mubr.bf16.mxu0 %v2765
    %2827 = vmatmul.mubr.bf16.gmra.mrb[0].mxu0 %v2764
    %v2828 = vpop.f32.mrb[0].mxu0
    %v2829 = vadd.f32 %v2714, %v2828
    %v2830 = vpop.f32.mrb[0].mxu0
    %v2831 = vpop.f32.mrb[0].mxu0
    %v2832 = vadd.f32 %v2719, %v2831
    %v2833 = vpop.f32.mrb[0].mxu0
    %2834 = vmatprep.mubr.bf16.mxu0 %v2768
    %2835 = vmatmul.mubr.bf16.gmra.mrb[0].mxu0 %v2767
    %v2836 = vpop.f32.mrb[0].mxu0
    %v2837 = vadd.f32 %v2724, %v2836
    %v2838 = vpop.f32.mrb[0].mxu0
    %v2839 = vpop.f32.mrb[0].mxu0
    %v2840 = vadd.f32 %v2729, %v2839
    %v2841 = vpop.f32.mrb[0].mxu0
    %2842 = vdwg.mxu0
    %2843 = vmatprep.subr.bf16.mxu0 0
    %2844 = vmatpush1.bf16.msra.mxu0 %v2693
    %2845 = vmatprep.subr.bf16.mxu0 0
    %2846 = vmatpush1.bf16.msra.mxu0 %v2694
    %2847 = vmatprep.subr.bf16.mxu0 0
    %2848 = vmatpush1.bf16.msra.mxu0 0
    %2849 = vmatprep.subr.bf16.mxu0 0
    %2850 = vmatpush1.bf16.msra.mxu0 0
    %2851 = vmatprep.subr.bf16.mxu0 0
    %2852 = vmatpush1.bf16.msra.mxu0 0
    %2853 = vmatprep.subr.bf16.mxu0 0
    %2854 = vmatpush1.bf16.msra.mxu0 0
    %2855 = vmatprep.subr.bf16.mxu0 0
    %2856 = vmatpush1.bf16.msra.mxu0 0
    %2857 = vmatprep.subr.bf16.mxu0 0
    %2858 = vmatpush1.bf16.msra.mxu0 0
    %2859 = vmatprep.subr.bf16.mxu0 0
    %2860 = vmatpush1.bf16.msra.mxu0 0
    %2861 = vmatprep.subr.bf16.mxu0 0
    %2862 = vmatpush1.bf16.msra.mxu0 0
    %2863 = vmatprep.subr.bf16.mxu0 0
    %2864 = vmatpush1.bf16.msra.mxu0 0
    %2865 = vmatprep.subr.bf16.mxu0 0
    %2866 = vmatpush1.bf16.msra.mxu0 0
    %2867 = vmatprep.subr.bf16.mxu0 0
    %2868 = vmatpush1.bf16.msra.mxu0 0
    %2869 = vmatprep.subr.bf16.mxu0 0
    %2870 = vmatpush1.bf16.msra.mxu0 0
    %2871 = vmatprep.subr.bf16.mxu0 0
    %2872 = vmatpush1.bf16.msra.mxu0 0
    %2873 = vmatprep.subr.bf16.mxu0 0
    %2874 = vmatpush1.bf16.msra.mxu0 0
    %2875 = vmatprep.mubr.bf16.mxu0 0
    %2876 = vmatmul.mubr.bf16.gmra.mrb[0].mxu0 %v2778
    %v2877 = vpop.f32.mrb[0].mxu0
    %v2878 = vadd.f32 %v2821, %v2877
    %v2879 = vpop.f32.mrb[0].mxu0
    %v2880 = vpop.f32.mrb[0].mxu0
    %v2881 = vadd.f32 %v2824, %v2880
    %v2882 = vpop.f32.mrb[0].mxu0
    %2883 = vmatprep.mubr.bf16.mxu0 0
    %2884 = vmatmul.mubr.bf16.gmra.mrb[0].mxu0 %v2781
    %v2885 = vpop.f32.mrb[0].mxu0
    %v2886 = vadd.f32 %v2829, %v2885
    %v2887 = vpop.f32.mrb[0].mxu0
    %v2888 = vpop.f32.mrb[0].mxu0
    %v2889 = vadd.f32 %v2832, %v2888
    %v2890 = vpop.f32.mrb[0].mxu0
    %2891 = vmatprep.mubr.bf16.mxu0 0
    %2892 = vmatmul.mubr.bf16.gmra.mrb[0].mxu0 %v2784
    %v2893 = vpop.f32.mrb[0].mxu0
    %v2894 = vadd.f32 %v2837, %v2893
    %v2895 = vpop.f32.mrb[0].mxu0
    %v2896 = vpop.f32.mrb[0].mxu0
    %v2897 = vadd.f32 %v2840, %v2896
    %v2898 = vpop.f32.mrb[0].mxu0
    %2899 = vdwg.mxu0
    %v2900 = vsub.f32 0.0, %v2878
    %v2901 = vsub.f32 0.0, %v2881
    %v2902 = vsub.f32 0.0, %v2886
    %v2903 = vsub.f32 0.0, %v2889
    %v2904 = vsub.f32 0.0, %v2894
    %v2905 = vsub.f32 0.0, %v2897
    %v2906 = vmul.f32 %v2900, 1.442695
    %v2907 = vpow.pop %v2906
    %v2908 = vmul.f32 %v2901, 1.442695
    %v2909 = vpow.pop %v2908
    %v2910 = vmul.f32 %v2902, 1.442695
    %v2911 = vpow.pop %v2910
    %v2912 = vmul.f32 %v2903, 1.442695
    %v2913 = vpow.pop %v2912
    %v2914 = vmul.f32 %v2904, 1.442695
    %v2915 = vpow.pop %v2914
    %v2916 = vmul.f32 %v2905, 1.442695
    %v2917 = vpow.pop %v2916
    %v2918 = vadd.f32 %v2907, 1.0
    %v2919 = vadd.f32 %v2909, 1.0
    %v2920 = vadd.f32 %v2911, 1.0
    %v2921 = vadd.f32 %v2913, 1.0
    %v2922 = vadd.f32 %v2915, 1.0
    %v2923 = vadd.f32 %v2917, 1.0
    %v2924 = vrcp.pop %v2918
    %v2925 = vrcp.pop %v2919
    %v2926 = vrcp.pop %v2920
    %v2927 = vrcp.pop %v2921
    %v2928 = vrcp.pop %v2922
    %v2929 = vrcp.pop %v2923
    %2930 = vst [vmem:[%s5] sm:$0xff] %v2924
    %2931 = vst [vmem:[%s5 + $0x8] sm:$0xff] %v2925
    %2932 = vst [vmem:[%s5 + $0x10] sm:$0xff] %v2926
    %2933 = vst [vmem:[%s5 + $0x18] sm:$0xff] %v2927
    %2934 = vst [vmem:[%s5 + $0x20] sm:$0xff] %v2928
    %2935 = vst [vmem:[%s5 + $0x28] sm:$0xff] %v2929
    // Predicated region
    $region34: #{decoder_forward.1} parent=1 // pred_check
      _
    $region35: #{decoder_forward.1} parent=1 // pred_check_branch
      %2937 = sbr.rel (0) target = $region37
    $region36: #{decoder_forward.1} parent=1 // pred_region
      _
    $region37: #{decoder_forward.1} parent=1 // pred_fallthru
      _
    // Predicated region
    $region38: #{decoder_forward.1} parent=1 // pred_check
      _
    $region39: #{decoder_forward.1} parent=1 // pred_check_branch
      %2939 = sbr.rel (0) target = $region41
    $region40: #{decoder_forward.1} parent=1 // pred_region
      _
    $region41: #{decoder_forward.1} parent=1 // pred_fallthru
      _
    %2940 = vsyncpa [#allocation6], 1
    %2941 = vsyncpa [#allocation8], 1

</llo_original>
